<compile_context>
chip_gen: v6e
topology: v6e:2x2x1
jax: 0.10.0
libtpu: 0.0.40
codegen_flags: <defaults>
</compile_context>

<pallas_src>
import jax
import jax.numpy as jnp
from jax import lax
from jax.experimental import pallas as pl
from jax.experimental.pallas import tpu as pltpu


# ----------------------------------------------------------------------------
# Pallas kernel: full 3-layer LSTM stack + final Linear on one N-tile.
# ----------------------------------------------------------------------------
def lstm_model_v3_kernel(
    x_ref,                                   # [T, tn, D_in]  bf16 time-major input tile
    wih0_ref, whh0_ref, b0_ref,              # layer 0: bf16 [D,4H], bf16 [H,4H], f32 [1,4H]
    wih1_ref, whh1_ref, b1_ref,              # layer 1
    wih2_ref, whh2_ref, b2_ref,              # layer 2
    wlin_ref, blin_ref,                      # linear : bf16 [H,D], f32 [1,D]
    out_ref,                                 # f32 [tn, D]
    gx_ref,                                  # scratch f32  [T, tn, 4H] (hoisted input proj.)
    seq_ref,                                 # scratch bf16 [T, tn, H]  (layer activations)
):
    T, tn, _ = x_ref.shape
    H = whh0_ref.shape[0]
    H3 = 3 * H
    unroll = True if T <= 32 else 4          # full unroll for short static T

    def input_projection(src_ref, wih, b):
        # One batched MXU matmul for all timesteps (+ single bias add), written
        # into gx in T-chunks so no full-size transient is materialized.
        d_in = src_ref.shape[-1]
        bytes_per_t = tn * 4 * H * 4
        t_chunk = max(1, min(T, (4 * 1024 * 1024) // bytes_per_t))
        t0 = 0
        while t0 < T:
            tc = min(t_chunk, T - t0)
            flat = src_ref[t0:t0 + tc].reshape(tc * tn, d_in)   # bf16
            g = jnp.dot(flat, wih, preferred_element_type=jnp.float32) + b
            gx_ref[t0:t0 + tc] = g.reshape(tc, tn, 4 * H)
            t0 += tc

    def recurrence(whh, store_seq):
        def step(t, carry):
            h, c = carry
            # gx already contains x_t @ W_ih + (b_ih + b_hh); only the tiny
            # recurrent matmul stays on the serial critical path (bf16 operands).
            gates = gx_ref[t] + jnp.dot(
                h.astype(jnp.bfloat16), whh, preferred_element_type=jnp.float32)
            # Gate columns pre-ordered [i | f | o | g] with the g columns
            # pre-scaled by 2 -> one lane-dense full-width sigmoid, then
            # tanh(z) = 2*sigmoid(2z) - 1 via a single FMA.
            s = jax.nn.sigmoid(gates)
            i = s[:, :H]
            f = s[:, H:2 * H]
            o = s[:, 2 * H:H3]
            g = 2.0 * s[:, H3:] - 1.0
            c_new = f * c + i * g
            h_new = o * jnp.tanh(c_new)
            if store_seq:
                seq_ref[t] = h_new.astype(jnp.bfloat16)          # feed next layer
            return (h_new, c_new)

        h0 = jnp.zeros((tn, H), jnp.float32)
        c0 = jnp.zeros((tn, H), jnp.float32)
        return lax.fori_loop(0, T, step, (h0, c0), unroll=unroll)

    # Layer 0: reads the raw input tile.
    input_projection(x_ref, wih0_ref[...], b0_ref[...])
    recurrence(whh0_ref[...], store_seq=True)

    # Layer 1: reads layer 0's full hidden sequence (then overwrites it).
    input_projection(seq_ref, wih1_ref[...], b1_ref[...])
    recurrence(whh1_ref[...], store_seq=True)

    # Layer 2: only the last hidden state is needed -> skip seq stores.
    input_projection(seq_ref, wih2_ref[...], b2_ref[...])
    h_last, _ = recurrence(whh2_ref[...], store_seq=False)

    # Final Linear on the last timestep's hidden state.
    out_ref[...] = (
        jnp.dot(h_last.astype(jnp.bfloat16), wlin_ref[...],
                preferred_element_type=jnp.float32)
        + blin_ref[...]
    ).astype(out_ref.dtype)


# ----------------------------------------------------------------------------
# Parameter construction (deterministic, PyTorch-style uniform init).
# ----------------------------------------------------------------------------
def init_params(key, in_dim, hidden_dim, num_layers=3):
    k = 1.0 / jnp.sqrt(hidden_dim)
    params = {}
    for l in range(num_layers):
        d_in = in_dim if l == 0 else hidden_dim
        key, k1, k2, k3, k4 = jax.random.split(key, 5)
        w_ih = jax.random.uniform(k1, (4 * hidden_dim, d_in), jnp.float32, -k, k)
        w_hh = jax.random.uniform(k2, (4 * hidden_dim, hidden_dim), jnp.float32, -k, k)
        b_ih = jax.random.uniform(k3, (4 * hidden_dim,), jnp.float32, -k, k)
        b_hh = jax.random.uniform(k4, (4 * hidden_dim,), jnp.float32, -k, k)
        params[f"w_ih_{l}"] = w_ih
        params[f"w_hh_{l}"] = w_hh
        params[f"b_{l}"] = b_ih + b_hh
    key, k1, k2 = jax.random.split(key, 3)
    kl = 1.0 / jnp.sqrt(hidden_dim)
    params["w_lin"] = jax.random.uniform(k1, (in_dim, hidden_dim), jnp.float32, -kl, kl)
    params["b_lin"] = jax.random.uniform(k2, (in_dim,), jnp.float32, -kl, kl)
    return params


# ----------------------------------------------------------------------------
# Wrapper helpers.
# ----------------------------------------------------------------------------
def _round_up(x, m):
    return (x + m - 1) // m * m


def _prep_gate_matrix(w):
    """Reorder PyTorch gate blocks (i, f, g, o) -> (i, f, o, g) along axis 0
    and pre-scale the g block by 2 (so tanh(z) = 2*sigmoid(2z) - 1 needs only
    one full-width sigmoid in the kernel).  Works for 2-D weights and 1-D bias."""
    H = w.shape[0] // 4
    i, f, g, o = w[:H], w[H:2 * H], w[2 * H:3 * H], w[3 * H:]
    return jnp.concatenate([i, f, o, 2.0 * g], axis=0)


def _choose_tile_n(N, T, D, H, budget_bytes=32 * 1024 * 1024):
    """Largest batch tile (multiple of 8) that fits the VMEM budget, capped at
    256 so the unrolled recurrence's h/c carry + gate slab stay in vregs."""
    per_row = (2 * (2 * T * D)        # x bf16, double-buffered
               + 4 * (T * 4 * H)      # gx scratch f32
               + 2 * (T * H)          # seq scratch bf16
               + 4 * (2 * D))         # out f32, double-buffered
    tn = (budget_bytes // per_row) // 8 * 8
    tn = max(8, min(256, tn))
    return min(tn, _round_up(N, 8))


# ----------------------------------------------------------------------------
# Wrapper: reshape / transpose / dtype glue + pallas_call with an N-tiled grid.
# ----------------------------------------------------------------------------
def lstm_model_v3_forward(x, params, hidden_dim, num_layers=3):
    B, Fdim, T, D = x.shape
    H = hidden_dim
    N = B * Fdim

    # time-major [T, N, D], bf16 MXU operands
    x_k = jnp.transpose(x.reshape(N, T, D), (1, 0, 2)).astype(jnp.bfloat16)

    tn = _choose_tile_n(N, T, D, H)
    # Guarantee >= 2 "parallel" grid steps when the batch allows (v7x: 2 TCs).
    if _round_up(N, tn) // tn < 2 and N > 8:
        tn = min(tn, _round_up(-(-N // 2), 8))
    N_pad = _round_up(N, tn)
    if N_pad != N:
        x_k = jnp.pad(x_k, ((0, 0), (0, N_pad - N), (0, 0)))

    kernel_args = [x_k]
    in_specs = [pl.BlockSpec((T, tn, D), lambda i: (0, i, 0))]
    for l in range(num_layers):
        d_in = D if l == 0 else H
        w_ih = jnp.transpose(_prep_gate_matrix(params[f"w_ih_{l}"])).astype(jnp.bfloat16)
        w_hh = jnp.transpose(_prep_gate_matrix(params[f"w_hh_{l}"])).astype(jnp.bfloat16)
        b = _prep_gate_matrix(params[f"b_{l}"])[None, :].astype(jnp.float32)
        kernel_args += [w_ih, w_hh, b]
        in_specs += [
            pl.BlockSpec((d_in, 4 * H), lambda i: (0, 0)),
            pl.BlockSpec((H, 4 * H), lambda i: (0, 0)),
            pl.BlockSpec((1, 4 * H), lambda i: (0, 0)),
        ]
    kernel_args.append(jnp.transpose(params["w_lin"]).astype(jnp.bfloat16))  # [H, D]
    kernel_args.append(params["b_lin"][None, :].astype(jnp.float32))         # [1, D]
    in_specs += [
        pl.BlockSpec((H, D), lambda i: (0, 0)),
        pl.BlockSpec((1, D), lambda i: (0, 0)),
    ]

    # Scoped VMEM: actual footprint + 25% headroom, capped at 48 MiB so v7x
    # (64 MiB/TC) keeps headroom; floor keeps v5e above its 16 MiB default.
    tile_bytes = (2 * (2 * T * tn * D)      # x bf16, double-buffered
                  + 4 * T * tn * 4 * H      # gx scratch f32
                  + 2 * T * tn * H          # seq scratch bf16
                  + 4 * (2 * tn * D))       # out f32, double-buffered
    w_bytes = sum(int(a.size) * a.dtype.itemsize for a in kernel_args[1:])
    vmem_limit = int(min(48 * 1024 * 1024,
                         max(32 * 1024 * 1024, 1.25 * (tile_bytes + 2 * w_bytes))))

    out = pl.pallas_call(
        lstm_model_v3_kernel,
        out_shape=jax.ShapeDtypeStruct((N_pad, D), jnp.float32),
        grid_spec=pltpu.PrefetchScalarGridSpec(
            num_scalar_prefetch=0,
            grid=(N_pad // tn,),
            in_specs=in_specs,
            out_specs=pl.BlockSpec((tn, D), lambda i: (i, 0)),
            scratch_shapes=[
                pltpu.VMEM((T, tn, 4 * H), jnp.float32),   # hoisted input projections
                pltpu.VMEM((T, tn, H), jnp.bfloat16),      # layer hidden sequence
            ],
        ),
        compiler_params=pltpu.CompilerParams(
            dimension_semantics=("parallel",),
            vmem_limit_bytes=vmem_limit,
        ),
    )(*kernel_args)

    return out[:N].reshape(B, Fdim, D)


# ----------------------------------------------------------------------------
# Pure-JAX f32 reference (matches torch.nn.LSTM / nn.Linear semantics).
# ----------------------------------------------------------------------------
def reference_forward(x, params, hidden_dim, num_layers=3):
    B, Fdim, T, D = x.shape
    N = B * Fdim
    seq = x.reshape(N, T, D).astype(jnp.float32)
    H = hidden_dim
    for l in range(num_layers):
        w_ih_t = jnp.transpose(params[f"w_ih_{l}"])
        w_hh_t = jnp.transpose(params[f"w_hh_{l}"])
        b = params[f"b_{l}"]

        def step(carry, xt):
            h, c = carry
            gates = xt @ w_ih_t + h @ w_hh_t + b
            i = jax.nn.sigmoid(gates[:, 0 * H:1 * H])
            f = jax.nn.sigmoid(gates[:, 1 * H:2 * H])
            g = jnp.tanh(gates[:, 2 * H:3 * H])
            o = jax.nn.sigmoid(gates[:, 3 * H:4 * H])
            c = f * c + i * g
            h = o * jnp.tanh(c)
            return (h, c), h

        h0 = jnp.zeros((N, H), jnp.float32)
        c0 = jnp.zeros((N, H), jnp.float32)
        (_, _), hs = lax.scan(step, (h0, c0), jnp.transpose(seq, (1, 0, 2)))
        seq = jnp.transpose(hs, (1, 0, 2))
    last = seq[:, -1, :]
    out = last @ jnp.transpose(params["w_lin"]) + params["b_lin"]
    return out.reshape(B, Fdim, D)


if __name__ == "__main__":
    B, future_dim, seq_len, feat_dim = 2, 4, 8, 16     # in_dim = feat_dim
    hidden_dim, num_layers = 32, 3

    key = jax.random.PRNGKey(0)
    kx, kp = jax.random.split(key)
    x = jax.random.normal(kx, (B, future_dim, seq_len, feat_dim), jnp.float32)
    params = init_params(kp, feat_dim, hidden_dim, num_layers)

    out = lstm_model_v3_forward(x, params, hidden_dim, num_layers)
    out = jax.block_until_ready(out)

    ref = reference_forward(x, params, hidden_dim, num_layers)
    assert out.shape == (B, future_dim, feat_dim)
    # bf16 MXU operands (f32 accumulation) -> loosened tolerance vs f32 reference.
    assert jnp.allclose(out, ref, atol=5e-2, rtol=5e-2), "mismatch vs JAX reference"

    print("KERNEL_OK")
</pallas_src>

<mosaic_0001>
module attributes {stable_mosaic.version = 11 : i64} {
  func.func @lstm_model_v3_kernel(%arg0: i32, %arg1: memref<8x8x16xbf16, #tpu.memory_space<vmem>>, %arg2: memref<16x128xbf16, #tpu.memory_space<vmem>>, %arg3: memref<32x128xbf16, #tpu.memory_space<vmem>>, %arg4: memref<1x128xf32, #tpu.memory_space<vmem>>, %arg5: memref<32x128xbf16, #tpu.memory_space<vmem>>, %arg6: memref<32x128xbf16, #tpu.memory_space<vmem>>, %arg7: memref<1x128xf32, #tpu.memory_space<vmem>>, %arg8: memref<32x128xbf16, #tpu.memory_space<vmem>>, %arg9: memref<32x128xbf16, #tpu.memory_space<vmem>>, %arg10: memref<1x128xf32, #tpu.memory_space<vmem>>, %arg11: memref<32x16xbf16, #tpu.memory_space<vmem>>, %arg12: memref<1x16xf32, #tpu.memory_space<vmem>>, %arg13: memref<8x16xf32, #tpu.memory_space<vmem>>, %arg14: memref<8x8x128xf32, #tpu.memory_space<vmem>>, %arg15: memref<8x8x32xbf16, #tpu.memory_space<vmem>>) attributes {dimension_semantics = [#tpu.dimension_semantics<parallel>], iteration_bounds = array<i64: 1>, scalar_prefetch = 0 : i64, scratch_operands = 2 : i64, tpu.core_type = #tpu.core_type<tc>, window_params = [{transform_indices = @transform_0, window_bounds = array<i64: 8, 8, 16>}, {pipeline_mode = #tpu.pipeline_mode<synchronous>, transform_indices = @transform_1, window_bounds = array<i64: 16, 128>}, {pipeline_mode = #tpu.pipeline_mode<synchronous>, transform_indices = @transform_2, window_bounds = array<i64: 32, 128>}, {pipeline_mode = #tpu.pipeline_mode<synchronous>, transform_indices = @transform_3, window_bounds = array<i64: 1, 128>}, {pipeline_mode = #tpu.pipeline_mode<synchronous>, transform_indices = @transform_4, window_bounds = array<i64: 32, 128>}, {pipeline_mode = #tpu.pipeline_mode<synchronous>, transform_indices = @transform_5, window_bounds = array<i64: 32, 128>}, {pipeline_mode = #tpu.pipeline_mode<synchronous>, transform_indices = @transform_6, window_bounds = array<i64: 1, 128>}, {pipeline_mode = #tpu.pipeline_mode<synchronous>, transform_indices = @transform_7, window_bounds = array<i64: 32, 128>}, {pipeline_mode = #tpu.pipeline_mode<synchronous>, transform_indices = @transform_8, window_bounds = array<i64: 32, 128>}, {pipeline_mode = #tpu.pipeline_mode<synchronous>, transform_indices = @transform_9, window_bounds = array<i64: 1, 128>}, {pipeline_mode = #tpu.pipeline_mode<synchronous>, transform_indices = @transform_10, window_bounds = array<i64: 32, 16>}, {pipeline_mode = #tpu.pipeline_mode<synchronous>, transform_indices = @transform_11, window_bounds = array<i64: 1, 16>}, {transform_indices = @transform_12, window_bounds = array<i64: 8, 16>}]} {
    %c0 = arith.constant 0 : index
    %c0_0 = arith.constant 0 : index
    %0 = vector.load %arg2[%c0, %c0_0] : memref<16x128xbf16, #tpu.memory_space<vmem>>, vector<16x128xbf16>
    %c0_1 = arith.constant 0 : index
    %c0_2 = arith.constant 0 : index
    %1 = vector.load %arg4[%c0_1, %c0_2] : memref<1x128xf32, #tpu.memory_space<vmem>>, vector<1x128xf32>
    %c0_3 = arith.constant 0 : index
    %c0_4 = arith.constant 0 : index
    %c0_5 = arith.constant 0 : index
    %2 = vector.load %arg1[%c0_3, %c0_4, %c0_5] : memref<8x8x16xbf16, #tpu.memory_space<vmem>>, vector<8x8x16xbf16>
    %3 = vector.shape_cast %2 : vector<8x8x16xbf16> to vector<64x16xbf16>
    %cst = arith.constant dense<0.000000e+00> : vector<64x128xf32>
    %4 = tpu.matmul %3, %0, %cst {dimension_numbers = #tpu.dot_dimension_numbers<[1], [0], [0], [1], [0, 0, 1, 1], [], []>} : vector<64x16xbf16>, vector<16x128xbf16>, vector<64x128xf32> -> vector<64x128xf32>
    %5 = vector.broadcast %1 : vector<1x128xf32> to vector<64x128xf32>
    %6 = arith.addf %4, %5 : vector<64x128xf32>
    %7 = vector.shape_cast %6 : vector<64x128xf32> to vector<8x8x128xf32>
    %c0_6 = arith.constant 0 : index
    %c0_7 = arith.constant 0 : index
    %c0_8 = arith.constant 0 : index
    %8 = vector.load %arg14[%c0_6, %c0_7, %c0_8] : memref<8x8x128xf32, #tpu.memory_space<vmem>>, vector<8x8x128xf32>
    tpu.vector_store %arg14[%c0_6, %c0_7, %c0_8], %7 {strides = array<i32>} : memref<8x8x128xf32, #tpu.memory_space<vmem>>, vector<8x8x128xf32>,
    %c0_9 = arith.constant 0 : index
    %c0_10 = arith.constant 0 : index
    %9 = vector.load %arg3[%c0_9, %c0_10] : memref<32x128xbf16, #tpu.memory_space<vmem>>, vector<32x128xbf16>
    %cst_11 = arith.constant 0.000000e+00 : f32
    %10 = vector.broadcast %cst_11 : f32 to vector<8x32xf32>
    %cst_12 = arith.constant 0.000000e+00 : f32
    %11 = vector.broadcast %cst_12 : f32 to vector<8x32xf32>
    %c0_i32 = arith.constant 0 : i32
    %12 = arith.index_cast %c0_i32 : i32 to index
    %c0_13 = arith.constant 0 : index
    %c0_14 = arith.constant 0 : index
    %13 = vector.load %arg14[%12, %c0_13, %c0_14] : memref<8x8x128xf32, #tpu.memory_space<vmem>>, vector<1x8x128xf32>
    %14 = vector.shape_cast %13 : vector<1x8x128xf32> to vector<8x128xf32>
    %15 = arith.truncf %10 : vector<8x32xf32> to vector<8x32xbf16>
    %cst_15 = arith.constant dense<0.000000e+00> : vector<8x128xf32>
    %16 = tpu.matmul %15, %9, %cst_15 {dimension_numbers = #tpu.dot_dimension_numbers<[1], [0], [0], [1], [0, 0, 1, 1], [], []>} : vector<8x32xbf16>, vector<32x128xbf16>, vector<8x128xf32> -> vector<8x128xf32>
    %17 = arith.addf %14, %16 : vector<8x128xf32>
    %18 = arith.negf %17 : vector<8x128xf32>
    %19 = math.exp %18 : vector<8x128xf32>
    %cst_16 = arith.constant 1.000000e+00 : f32
    %20 = vector.broadcast %cst_16 : f32 to vector<8x128xf32>
    %21 = arith.addf %20, %19 : vector<8x128xf32>
    %22 = arith.divf %20, %21 : vector<8x128xf32>
    %23 = vector.extract_strided_slice %22 {offsets = [0, 0], sizes = [8, 32], strides = [1, 1]} : vector<8x128xf32> to vector<8x32xf32>
    %24 = vector.extract_strided_slice %22 {offsets = [0, 32], sizes = [8, 32], strides = [1, 1]} : vector<8x128xf32> to vector<8x32xf32>
    %25 = vector.extract_strided_slice %22 {offsets = [0, 64], sizes = [8, 32], strides = [1, 1]} : vector<8x128xf32> to vector<8x32xf32>
    %26 = vector.extract_strided_slice %22 {offsets = [0, 96], sizes = [8, 32], strides = [1, 1]} : vector<8x128xf32> to vector<8x32xf32>
    %cst_17 = arith.constant 2.000000e+00 : f32
    %27 = vector.broadcast %cst_17 : f32 to vector<8x32xf32>
    %28 = arith.mulf %27, %26 : vector<8x32xf32>
    %cst_18 = arith.constant 1.000000e+00 : f32
    %29 = vector.broadcast %cst_18 : f32 to vector<8x32xf32>
    %30 = arith.subf %28, %29 : vector<8x32xf32>
    %31 = arith.mulf %24, %11 : vector<8x32xf32>
    %32 = arith.mulf %23, %30 : vector<8x32xf32>
    %33 = arith.addf %31, %32 : vector<8x32xf32>
    %34 = math.tanh %33 : vector<8x32xf32>
    %35 = arith.mulf %25, %34 : vector<8x32xf32>
    %36 = arith.truncf %35 : vector<8x32xf32> to vector<8x32xbf16>
    %37 = arith.index_cast %c0_i32 : i32 to index
    %c0_19 = arith.constant 0 : index
    %c0_20 = arith.constant 0 : index
    %38 = vector.load %arg15[%37, %c0_19, %c0_20] : memref<8x8x32xbf16, #tpu.memory_space<vmem>>, vector<1x8x32xbf16>
    %39 = vector.shape_cast %38 : vector<1x8x32xbf16> to vector<8x32xbf16>
    %40 = vector.shape_cast %36 : vector<8x32xbf16> to vector<1x8x32xbf16>
    tpu.vector_store %arg15[%37, %c0_19, %c0_20], %40 {strides = array<i32>} : memref<8x8x32xbf16, #tpu.memory_space<vmem>>, vector<1x8x32xbf16>,
    %c1_i32 = arith.constant 1 : i32
    %41 = arith.index_cast %c1_i32 : i32 to index
    %c0_21 = arith.constant 0 : index
    %c0_22 = arith.constant 0 : index
    %42 = vector.load %arg14[%41, %c0_21, %c0_22] : memref<8x8x128xf32, #tpu.memory_space<vmem>>, vector<1x8x128xf32>
    %43 = vector.shape_cast %42 : vector<1x8x128xf32> to vector<8x128xf32>
    %44 = arith.truncf %35 : vector<8x32xf32> to vector<8x32xbf16>
    %cst_23 = arith.constant dense<0.000000e+00> : vector<8x128xf32>
    %45 = tpu.matmul %44, %9, %cst_23 {dimension_numbers = #tpu.dot_dimension_numbers<[1], [0], [0], [1], [0, 0, 1, 1], [], []>} : vector<8x32xbf16>, vector<32x128xbf16>, vector<8x128xf32> -> vector<8x128xf32>
    %46 = arith.addf %43, %45 : vector<8x128xf32>
    %47 = arith.negf %46 : vector<8x128xf32>
    %48 = math.exp %47 : vector<8x128xf32>
    %cst_24 = arith.constant 1.000000e+00 : f32
    %49 = vector.broadcast %cst_24 : f32 to vector<8x128xf32>
    %50 = arith.addf %49, %48 : vector<8x128xf32>
    %51 = arith.divf %49, %50 : vector<8x128xf32>
    %52 = vector.extract_strided_slice %51 {offsets = [0, 0], sizes = [8, 32], strides = [1, 1]} : vector<8x128xf32> to vector<8x32xf32>
    %53 = vector.extract_strided_slice %51 {offsets = [0, 32], sizes = [8, 32], strides = [1, 1]} : vector<8x128xf32> to vector<8x32xf32>
    %54 = vector.extract_strided_slice %51 {offsets = [0, 64], sizes = [8, 32], strides = [1, 1]} : vector<8x128xf32> to vector<8x32xf32>
    %55 = vector.extract_strided_slice %51 {offsets = [0, 96], sizes = [8, 32], strides = [1, 1]} : vector<8x128xf32> to vector<8x32xf32>
    %cst_25 = arith.constant 2.000000e+00 : f32
    %56 = vector.broadcast %cst_25 : f32 to vector<8x32xf32>
    %57 = arith.mulf %56, %55 : vector<8x32xf32>
    %cst_26 = arith.constant 1.000000e+00 : f32
    %58 = vector.broadcast %cst_26 : f32 to vector<8x32xf32>
    %59 = arith.subf %57, %58 : vector<8x32xf32>
    %60 = arith.mulf %53, %33 : vector<8x32xf32>
    %61 = arith.mulf %52, %59 : vector<8x32xf32>
    %62 = arith.addf %60, %61 : vector<8x32xf32>
    %63 = math.tanh %62 : vector<8x32xf32>
    %64 = arith.mulf %54, %63 : vector<8x32xf32>
    %65 = arith.truncf %64 : vector<8x32xf32> to vector<8x32xbf16>
    %66 = arith.index_cast %c1_i32 : i32 to index
    %c0_27 = arith.constant 0 : index
    %c0_28 = arith.constant 0 : index
    %67 = vector.load %arg15[%66, %c0_27, %c0_28] : memref<8x8x32xbf16, #tpu.memory_space<vmem>>, vector<1x8x32xbf16>
    %68 = vector.shape_cast %67 : vector<1x8x32xbf16> to vector<8x32xbf16>
    %69 = vector.shape_cast %65 : vector<8x32xbf16> to vector<1x8x32xbf16>
    tpu.vector_store %arg15[%66, %c0_27, %c0_28], %69 {strides = array<i32>} : memref<8x8x32xbf16, #tpu.memory_space<vmem>>, vector<1x8x32xbf16>,
    %c2_i32 = arith.constant 2 : i32
    %70 = arith.index_cast %c2_i32 : i32 to index
    %c0_29 = arith.constant 0 : index
    %c0_30 = arith.constant 0 : index
    %71 = vector.load %arg14[%70, %c0_29, %c0_30] : memref<8x8x128xf32, #tpu.memory_space<vmem>>, vector<1x8x128xf32>
    %72 = vector.shape_cast %71 : vector<1x8x128xf32> to vector<8x128xf32>
    %73 = arith.truncf %64 : vector<8x32xf32> to vector<8x32xbf16>
    %cst_31 = arith.constant dense<0.000000e+00> : vector<8x128xf32>
    %74 = tpu.matmul %73, %9, %cst_31 {dimension_numbers = #tpu.dot_dimension_numbers<[1], [0], [0], [1], [0, 0, 1, 1], [], []>} : vector<8x32xbf16>, vector<32x128xbf16>, vector<8x128xf32> -> vector<8x128xf32>
    %75 = arith.addf %72, %74 : vector<8x128xf32>
    %76 = arith.negf %75 : vector<8x128xf32>
    %77 = math.exp %76 : vector<8x128xf32>
    %cst_32 = arith.constant 1.000000e+00 : f32
    %78 = vector.broadcast %cst_32 : f32 to vector<8x128xf32>
    %79 = arith.addf %78, %77 : vector<8x128xf32>
    %80 = arith.divf %78, %79 : vector<8x128xf32>
    %81 = vector.extract_strided_slice %80 {offsets = [0, 0], sizes = [8, 32], strides = [1, 1]} : vector<8x128xf32> to vector<8x32xf32>
    %82 = vector.extract_strided_slice %80 {offsets = [0, 32], sizes = [8, 32], strides = [1, 1]} : vector<8x128xf32> to vector<8x32xf32>
    %83 = vector.extract_strided_slice %80 {offsets = [0, 64], sizes = [8, 32], strides = [1, 1]} : vector<8x128xf32> to vector<8x32xf32>
    %84 = vector.extract_strided_slice %80 {offsets = [0, 96], sizes = [8, 32], strides = [1, 1]} : vector<8x128xf32> to vector<8x32xf32>
    %cst_33 = arith.constant 2.000000e+00 : f32
    %85 = vector.broadcast %cst_33 : f32 to vector<8x32xf32>
    %86 = arith.mulf %85, %84 : vector<8x32xf32>
    %cst_34 = arith.constant 1.000000e+00 : f32
    %87 = vector.broadcast %cst_34 : f32 to vector<8x32xf32>
    %88 = arith.subf %86, %87 : vector<8x32xf32>
    %89 = arith.mulf %82, %62 : vector<8x32xf32>
    %90 = arith.mulf %81, %88 : vector<8x32xf32>
    %91 = arith.addf %89, %90 : vector<8x32xf32>
    %92 = math.tanh %91 : vector<8x32xf32>
    %93 = arith.mulf %83, %92 : vector<8x32xf32>
    %94 = arith.truncf %93 : vector<8x32xf32> to vector<8x32xbf16>
    %95 = arith.index_cast %c2_i32 : i32 to index
    %c0_35 = arith.constant 0 : index
    %c0_36 = arith.constant 0 : index
    %96 = vector.load %arg15[%95, %c0_35, %c0_36] : memref<8x8x32xbf16, #tpu.memory_space<vmem>>, vector<1x8x32xbf16>
    %97 = vector.shape_cast %96 : vector<1x8x32xbf16> to vector<8x32xbf16>
    %98 = vector.shape_cast %94 : vector<8x32xbf16> to vector<1x8x32xbf16>
    tpu.vector_store %arg15[%95, %c0_35, %c0_36], %98 {strides = array<i32>} : memref<8x8x32xbf16, #tpu.memory_space<vmem>>, vector<1x8x32xbf16>,
    %c3_i32 = arith.constant 3 : i32
    %99 = arith.index_cast %c3_i32 : i32 to index
    %c0_37 = arith.constant 0 : index
    %c0_38 = arith.constant 0 : index
    %100 = vector.load %arg14[%99, %c0_37, %c0_38] : memref<8x8x128xf32, #tpu.memory_space<vmem>>, vector<1x8x128xf32>
    %101 = vector.shape_cast %100 : vector<1x8x128xf32> to vector<8x128xf32>
    %102 = arith.truncf %93 : vector<8x32xf32> to vector<8x32xbf16>
    %cst_39 = arith.constant dense<0.000000e+00> : vector<8x128xf32>
    %103 = tpu.matmul %102, %9, %cst_39 {dimension_numbers = #tpu.dot_dimension_numbers<[1], [0], [0], [1], [0, 0, 1, 1], [], []>} : vector<8x32xbf16>, vector<32x128xbf16>, vector<8x128xf32> -> vector<8x128xf32>
    %104 = arith.addf %101, %103 : vector<8x128xf32>
    %105 = arith.negf %104 : vector<8x128xf32>
    %106 = math.exp %105 : vector<8x128xf32>
    %cst_40 = arith.constant 1.000000e+00 : f32
    %107 = vector.broadcast %cst_40 : f32 to vector<8x128xf32>
    %108 = arith.addf %107, %106 : vector<8x128xf32>
    %109 = arith.divf %107, %108 : vector<8x128xf32>
    %110 = vector.extract_strided_slice %109 {offsets = [0, 0], sizes = [8, 32], strides = [1, 1]} : vector<8x128xf32> to vector<8x32xf32>
    %111 = vector.extract_strided_slice %109 {offsets = [0, 32], sizes = [8, 32], strides = [1, 1]} : vector<8x128xf32> to vector<8x32xf32>
    %112 = vector.extract_strided_slice %109 {offsets = [0, 64], sizes = [8, 32], strides = [1, 1]} : vector<8x128xf32> to vector<8x32xf32>
    %113 = vector.extract_strided_slice %109 {offsets = [0, 96], sizes = [8, 32], strides = [1, 1]} : vector<8x128xf32> to vector<8x32xf32>
    %cst_41 = arith.constant 2.000000e+00 : f32
    %114 = vector.broadcast %cst_41 : f32 to vector<8x32xf32>
    %115 = arith.mulf %114, %113 : vector<8x32xf32>
    %cst_42 = arith.constant 1.000000e+00 : f32
    %116 = vector.broadcast %cst_42 : f32 to vector<8x32xf32>
    %117 = arith.subf %115, %116 : vector<8x32xf32>
    %118 = arith.mulf %111, %91 : vector<8x32xf32>
    %119 = arith.mulf %110, %117 : vector<8x32xf32>
    %120 = arith.addf %118, %119 : vector<8x32xf32>
    %121 = math.tanh %120 : vector<8x32xf32>
    %122 = arith.mulf %112, %121 : vector<8x32xf32>
    %123 = arith.truncf %122 : vector<8x32xf32> to vector<8x32xbf16>
    %124 = arith.index_cast %c3_i32 : i32 to index
    %c0_43 = arith.constant 0 : index
    %c0_44 = arith.constant 0 : index
    %125 = vector.load %arg15[%124, %c0_43, %c0_44] : memref<8x8x32xbf16, #tpu.memory_space<vmem>>, vector<1x8x32xbf16>
    %126 = vector.shape_cast %125 : vector<1x8x32xbf16> to vector<8x32xbf16>
    %127 = vector.shape_cast %123 : vector<8x32xbf16> to vector<1x8x32xbf16>
    tpu.vector_store %arg15[%124, %c0_43, %c0_44], %127 {strides = array<i32>} : memref<8x8x32xbf16, #tpu.memory_space<vmem>>, vector<1x8x32xbf16>,
    %c4_i32 = arith.constant 4 : i32
    %128 = arith.index_cast %c4_i32 : i32 to index
    %c0_45 = arith.constant 0 : index
    %c0_46 = arith.constant 0 : index
    %129 = vector.load %arg14[%128, %c0_45, %c0_46] : memref<8x8x128xf32, #tpu.memory_space<vmem>>, vector<1x8x128xf32>
    %130 = vector.shape_cast %129 : vector<1x8x128xf32> to vector<8x128xf32>
    %131 = arith.truncf %122 : vector<8x32xf32> to vector<8x32xbf16>
    %cst_47 = arith.constant dense<0.000000e+00> : vector<8x128xf32>
    %132 = tpu.matmul %131, %9, %cst_47 {dimension_numbers = #tpu.dot_dimension_numbers<[1], [0], [0], [1], [0, 0, 1, 1], [], []>} : vector<8x32xbf16>, vector<32x128xbf16>, vector<8x128xf32> -> vector<8x128xf32>
    %133 = arith.addf %130, %132 : vector<8x128xf32>
    %134 = arith.negf %133 : vector<8x128xf32>
    %135 = math.exp %134 : vector<8x128xf32>
    %cst_48 = arith.constant 1.000000e+00 : f32
    %136 = vector.broadcast %cst_48 : f32 to vector<8x128xf32>
    %137 = arith.addf %136, %135 : vector<8x128xf32>
    %138 = arith.divf %136, %137 : vector<8x128xf32>
    %139 = vector.extract_strided_slice %138 {offsets = [0, 0], sizes = [8, 32], strides = [1, 1]} : vector<8x128xf32> to vector<8x32xf32>
    %140 = vector.extract_strided_slice %138 {offsets = [0, 32], sizes = [8, 32], strides = [1, 1]} : vector<8x128xf32> to vector<8x32xf32>
    %141 = vector.extract_strided_slice %138 {offsets = [0, 64], sizes = [8, 32], strides = [1, 1]} : vector<8x128xf32> to vector<8x32xf32>
    %142 = vector.extract_strided_slice %138 {offsets = [0, 96], sizes = [8, 32], strides = [1, 1]} : vector<8x128xf32> to vector<8x32xf32>
    %cst_49 = arith.constant 2.000000e+00 : f32
    %143 = vector.broadcast %cst_49 : f32 to vector<8x32xf32>
    %144 = arith.mulf %143, %142 : vector<8x32xf32>
    %cst_50 = arith.constant 1.000000e+00 : f32
    %145 = vector.broadcast %cst_50 : f32 to vector<8x32xf32>
    %146 = arith.subf %144, %145 : vector<8x32xf32>
    %147 = arith.mulf %140, %120 : vector<8x32xf32>
    %148 = arith.mulf %139, %146 : vector<8x32xf32>
    %149 = arith.addf %147, %148 : vector<8x32xf32>
    %150 = math.tanh %149 : vector<8x32xf32>
    %151 = arith.mulf %141, %150 : vector<8x32xf32>
    %152 = arith.truncf %151 : vector<8x32xf32> to vector<8x32xbf16>
    %153 = arith.index_cast %c4_i32 : i32 to index
    %c0_51 = arith.constant 0 : index
    %c0_52 = arith.constant 0 : index
    %154 = vector.load %arg15[%153, %c0_51, %c0_52] : memref<8x8x32xbf16, #tpu.memory_space<vmem>>, vector<1x8x32xbf16>
    %155 = vector.shape_cast %154 : vector<1x8x32xbf16> to vector<8x32xbf16>
    %156 = vector.shape_cast %152 : vector<8x32xbf16> to vector<1x8x32xbf16>
    tpu.vector_store %arg15[%153, %c0_51, %c0_52], %156 {strides = array<i32>} : memref<8x8x32xbf16, #tpu.memory_space<vmem>>, vector<1x8x32xbf16>,
    %c5_i32 = arith.constant 5 : i32
    %157 = arith.index_cast %c5_i32 : i32 to index
    %c0_53 = arith.constant 0 : index
    %c0_54 = arith.constant 0 : index
    %158 = vector.load %arg14[%157, %c0_53, %c0_54] : memref<8x8x128xf32, #tpu.memory_space<vmem>>, vector<1x8x128xf32>
    %159 = vector.shape_cast %158 : vector<1x8x128xf32> to vector<8x128xf32>
    %160 = arith.truncf %151 : vector<8x32xf32> to vector<8x32xbf16>
    %cst_55 = arith.constant dense<0.000000e+00> : vector<8x128xf32>
    %161 = tpu.matmul %160, %9, %cst_55 {dimension_numbers = #tpu.dot_dimension_numbers<[1], [0], [0], [1], [0, 0, 1, 1], [], []>} : vector<8x32xbf16>, vector<32x128xbf16>, vector<8x128xf32> -> vector<8x128xf32>
    %162 = arith.addf %159, %161 : vector<8x128xf32>
    %163 = arith.negf %162 : vector<8x128xf32>
    %164 = math.exp %163 : vector<8x128xf32>
    %cst_56 = arith.constant 1.000000e+00 : f32
    %165 = vector.broadcast %cst_56 : f32 to vector<8x128xf32>
    %166 = arith.addf %165, %164 : vector<8x128xf32>
    %167 = arith.divf %165, %166 : vector<8x128xf32>
    %168 = vector.extract_strided_slice %167 {offsets = [0, 0], sizes = [8, 32], strides = [1, 1]} : vector<8x128xf32> to vector<8x32xf32>
    %169 = vector.extract_strided_slice %167 {offsets = [0, 32], sizes = [8, 32], strides = [1, 1]} : vector<8x128xf32> to vector<8x32xf32>
    %170 = vector.extract_strided_slice %167 {offsets = [0, 64], sizes = [8, 32], strides = [1, 1]} : vector<8x128xf32> to vector<8x32xf32>
    %171 = vector.extract_strided_slice %167 {offsets = [0, 96], sizes = [8, 32], strides = [1, 1]} : vector<8x128xf32> to vector<8x32xf32>
    %cst_57 = arith.constant 2.000000e+00 : f32
    %172 = vector.broadcast %cst_57 : f32 to vector<8x32xf32>
    %173 = arith.mulf %172, %171 : vector<8x32xf32>
    %cst_58 = arith.constant 1.000000e+00 : f32
    %174 = vector.broadcast %cst_58 : f32 to vector<8x32xf32>
    %175 = arith.subf %173, %174 : vector<8x32xf32>
    %176 = arith.mulf %169, %149 : vector<8x32xf32>
    %177 = arith.mulf %168, %175 : vector<8x32xf32>
    %178 = arith.addf %176, %177 : vector<8x32xf32>
    %179 = math.tanh %178 : vector<8x32xf32>
    %180 = arith.mulf %170, %179 : vector<8x32xf32>
    %181 = arith.truncf %180 : vector<8x32xf32> to vector<8x32xbf16>
    %182 = arith.index_cast %c5_i32 : i32 to index
    %c0_59 = arith.constant 0 : index
    %c0_60 = arith.constant 0 : index
    %183 = vector.load %arg15[%182, %c0_59, %c0_60] : memref<8x8x32xbf16, #tpu.memory_space<vmem>>, vector<1x8x32xbf16>
    %184 = vector.shape_cast %183 : vector<1x8x32xbf16> to vector<8x32xbf16>
    %185 = vector.shape_cast %181 : vector<8x32xbf16> to vector<1x8x32xbf16>
    tpu.vector_store %arg15[%182, %c0_59, %c0_60], %185 {strides = array<i32>} : memref<8x8x32xbf16, #tpu.memory_space<vmem>>, vector<1x8x32xbf16>,
    %c6_i32 = arith.constant 6 : i32
    %186 = arith.index_cast %c6_i32 : i32 to index
    %c0_61 = arith.constant 0 : index
    %c0_62 = arith.constant 0 : index
    %187 = vector.load %arg14[%186, %c0_61, %c0_62] : memref<8x8x128xf32, #tpu.memory_space<vmem>>, vector<1x8x128xf32>
    %188 = vector.shape_cast %187 : vector<1x8x128xf32> to vector<8x128xf32>
    %189 = arith.truncf %180 : vector<8x32xf32> to vector<8x32xbf16>
    %cst_63 = arith.constant dense<0.000000e+00> : vector<8x128xf32>
    %190 = tpu.matmul %189, %9, %cst_63 {dimension_numbers = #tpu.dot_dimension_numbers<[1], [0], [0], [1], [0, 0, 1, 1], [], []>} : vector<8x32xbf16>, vector<32x128xbf16>, vector<8x128xf32> -> vector<8x128xf32>
    %191 = arith.addf %188, %190 : vector<8x128xf32>
    %192 = arith.negf %191 : vector<8x128xf32>
    %193 = math.exp %192 : vector<8x128xf32>
    %cst_64 = arith.constant 1.000000e+00 : f32
    %194 = vector.broadcast %cst_64 : f32 to vector<8x128xf32>
    %195 = arith.addf %194, %193 : vector<8x128xf32>
    %196 = arith.divf %194, %195 : vector<8x128xf32>
    %197 = vector.extract_strided_slice %196 {offsets = [0, 0], sizes = [8, 32], strides = [1, 1]} : vector<8x128xf32> to vector<8x32xf32>
    %198 = vector.extract_strided_slice %196 {offsets = [0, 32], sizes = [8, 32], strides = [1, 1]} : vector<8x128xf32> to vector<8x32xf32>
    %199 = vector.extract_strided_slice %196 {offsets = [0, 64], sizes = [8, 32], strides = [1, 1]} : vector<8x128xf32> to vector<8x32xf32>
    %200 = vector.extract_strided_slice %196 {offsets = [0, 96], sizes = [8, 32], strides = [1, 1]} : vector<8x128xf32> to vector<8x32xf32>
    %cst_65 = arith.constant 2.000000e+00 : f32
    %201 = vector.broadcast %cst_65 : f32 to vector<8x32xf32>
    %202 = arith.mulf %201, %200 : vector<8x32xf32>
    %cst_66 = arith.constant 1.000000e+00 : f32
    %203 = vector.broadcast %cst_66 : f32 to vector<8x32xf32>
    %204 = arith.subf %202, %203 : vector<8x32xf32>
    %205 = arith.mulf %198, %178 : vector<8x32xf32>
    %206 = arith.mulf %197, %204 : vector<8x32xf32>
    %207 = arith.addf %205, %206 : vector<8x32xf32>
    %208 = math.tanh %207 : vector<8x32xf32>
    %209 = arith.mulf %199, %208 : vector<8x32xf32>
    %210 = arith.truncf %209 : vector<8x32xf32> to vector<8x32xbf16>
    %211 = arith.index_cast %c6_i32 : i32 to index
    %c0_67 = arith.constant 0 : index
    %c0_68 = arith.constant 0 : index
    %212 = vector.load %arg15[%211, %c0_67, %c0_68] : memref<8x8x32xbf16, #tpu.memory_space<vmem>>, vector<1x8x32xbf16>
    %213 = vector.shape_cast %212 : vector<1x8x32xbf16> to vector<8x32xbf16>
    %214 = vector.shape_cast %210 : vector<8x32xbf16> to vector<1x8x32xbf16>
    tpu.vector_store %arg15[%211, %c0_67, %c0_68], %214 {strides = array<i32>} : memref<8x8x32xbf16, #tpu.memory_space<vmem>>, vector<1x8x32xbf16>,
    %c7_i32 = arith.constant 7 : i32
    %215 = arith.index_cast %c7_i32 : i32 to index
    %c0_69 = arith.constant 0 : index
    %c0_70 = arith.constant 0 : index
    %216 = vector.load %arg14[%215, %c0_69, %c0_70] : memref<8x8x128xf32, #tpu.memory_space<vmem>>, vector<1x8x128xf32>
    %217 = vector.shape_cast %216 : vector<1x8x128xf32> to vector<8x128xf32>
    %218 = arith.truncf %209 : vector<8x32xf32> to vector<8x32xbf16>
    %cst_71 = arith.constant dense<0.000000e+00> : vector<8x128xf32>
    %219 = tpu.matmul %218, %9, %cst_71 {dimension_numbers = #tpu.dot_dimension_numbers<[1], [0], [0], [1], [0, 0, 1, 1], [], []>} : vector<8x32xbf16>, vector<32x128xbf16>, vector<8x128xf32> -> vector<8x128xf32>
    %220 = arith.addf %217, %219 : vector<8x128xf32>
    %221 = arith.negf %220 : vector<8x128xf32>
    %222 = math.exp %221 : vector<8x128xf32>
    %cst_72 = arith.constant 1.000000e+00 : f32
    %223 = vector.broadcast %cst_72 : f32 to vector<8x128xf32>
    %224 = arith.addf %223, %222 : vector<8x128xf32>
    %225 = arith.divf %223, %224 : vector<8x128xf32>
    %226 = vector.extract_strided_slice %225 {offsets = [0, 0], sizes = [8, 32], strides = [1, 1]} : vector<8x128xf32> to vector<8x32xf32>
    %227 = vector.extract_strided_slice %225 {offsets = [0, 32], sizes = [8, 32], strides = [1, 1]} : vector<8x128xf32> to vector<8x32xf32>
    %228 = vector.extract_strided_slice %225 {offsets = [0, 64], sizes = [8, 32], strides = [1, 1]} : vector<8x128xf32> to vector<8x32xf32>
    %229 = vector.extract_strided_slice %225 {offsets = [0, 96], sizes = [8, 32], strides = [1, 1]} : vector<8x128xf32> to vector<8x32xf32>
    %cst_73 = arith.constant 2.000000e+00 : f32
    %230 = vector.broadcast %cst_73 : f32 to vector<8x32xf32>
    %231 = arith.mulf %230, %229 : vector<8x32xf32>
    %cst_74 = arith.constant 1.000000e+00 : f32
    %232 = vector.broadcast %cst_74 : f32 to vector<8x32xf32>
    %233 = arith.subf %231, %232 : vector<8x32xf32>
    %234 = arith.mulf %227, %207 : vector<8x32xf32>
    %235 = arith.mulf %226, %233 : vector<8x32xf32>
    %236 = arith.addf %234, %235 : vector<8x32xf32>
    %237 = math.tanh %236 : vector<8x32xf32>
    %238 = arith.mulf %228, %237 : vector<8x32xf32>
    %239 = arith.truncf %238 : vector<8x32xf32> to vector<8x32xbf16>
    %240 = arith.index_cast %c7_i32 : i32 to index
    %c0_75 = arith.constant 0 : index
    %c0_76 = arith.constant 0 : index
    %241 = vector.load %arg15[%240, %c0_75, %c0_76] : memref<8x8x32xbf16, #tpu.memory_space<vmem>>, vector<1x8x32xbf16>
    %242 = vector.shape_cast %241 : vector<1x8x32xbf16> to vector<8x32xbf16>
    %243 = vector.shape_cast %239 : vector<8x32xbf16> to vector<1x8x32xbf16>
    tpu.vector_store %arg15[%240, %c0_75, %c0_76], %243 {strides = array<i32>} : memref<8x8x32xbf16, #tpu.memory_space<vmem>>, vector<1x8x32xbf16>,
    %c8_i32 = arith.constant 8 : i32
    %c0_77 = arith.constant 0 : index
    %c0_78 = arith.constant 0 : index
    %244 = vector.load %arg5[%c0_77, %c0_78] : memref<32x128xbf16, #tpu.memory_space<vmem>>, vector<32x128xbf16>
    %c0_79 = arith.constant 0 : index
    %c0_80 = arith.constant 0 : index
    %245 = vector.load %arg7[%c0_79, %c0_80] : memref<1x128xf32, #tpu.memory_space<vmem>>, vector<1x128xf32>
    %c0_81 = arith.constant 0 : index
    %c0_82 = arith.constant 0 : index
    %c0_83 = arith.constant 0 : index
    %246 = vector.load %arg15[%c0_81, %c0_82, %c0_83] : memref<8x8x32xbf16, #tpu.memory_space<vmem>>, vector<8x8x32xbf16>
    %247 = vector.shape_cast %246 : vector<8x8x32xbf16> to vector<64x32xbf16>
    %cst_84 = arith.constant dense<0.000000e+00> : vector<64x128xf32>
    %248 = tpu.matmul %247, %244, %cst_84 {dimension_numbers = #tpu.dot_dimension_numbers<[1], [0], [0], [1], [0, 0, 1, 1], [], []>} : vector<64x32xbf16>, vector<32x128xbf16>, vector<64x128xf32> -> vector<64x128xf32>
    %249 = vector.broadcast %245 : vector<1x128xf32> to vector<64x128xf32>
    %250 = arith.addf %248, %249 : vector<64x128xf32>
    %251 = vector.shape_cast %250 : vector<64x128xf32> to vector<8x8x128xf32>
    %c0_85 = arith.constant 0 : index
    %c0_86 = arith.constant 0 : index
    %c0_87 = arith.constant 0 : index
    %252 = vector.load %arg14[%c0_85, %c0_86, %c0_87] : memref<8x8x128xf32, #tpu.memory_space<vmem>>, vector<8x8x128xf32>
    tpu.vector_store %arg14[%c0_85, %c0_86, %c0_87], %251 {strides = array<i32>} : memref<8x8x128xf32, #tpu.memory_space<vmem>>, vector<8x8x128xf32>,
    %c0_88 = arith.constant 0 : index
    %c0_89 = arith.constant 0 : index
    %253 = vector.load %arg6[%c0_88, %c0_89] : memref<32x128xbf16, #tpu.memory_space<vmem>>, vector<32x128xbf16>
    %cst_90 = arith.constant 0.000000e+00 : f32
    %254 = vector.broadcast %cst_90 : f32 to vector<8x32xf32>
    %cst_91 = arith.constant 0.000000e+00 : f32
    %255 = vector.broadcast %cst_91 : f32 to vector<8x32xf32>
    %c0_i32_92 = arith.constant 0 : i32
    %256 = arith.index_cast %c0_i32_92 : i32 to index
    %c0_93 = arith.constant 0 : index
    %c0_94 = arith.constant 0 : index
    %257 = vector.load %arg14[%256, %c0_93, %c0_94] : memref<8x8x128xf32, #tpu.memory_space<vmem>>, vector<1x8x128xf32>
    %258 = vector.shape_cast %257 : vector<1x8x128xf32> to vector<8x128xf32>
    %259 = arith.truncf %254 : vector<8x32xf32> to vector<8x32xbf16>
    %cst_95 = arith.constant dense<0.000000e+00> : vector<8x128xf32>
    %260 = tpu.matmul %259, %253, %cst_95 {dimension_numbers = #tpu.dot_dimension_numbers<[1], [0], [0], [1], [0, 0, 1, 1], [], []>} : vector<8x32xbf16>, vector<32x128xbf16>, vector<8x128xf32> -> vector<8x128xf32>
    %261 = arith.addf %258, %260 : vector<8x128xf32>
    %262 = arith.negf %261 : vector<8x128xf32>
    %263 = math.exp %262 : vector<8x128xf32>
    %cst_96 = arith.constant 1.000000e+00 : f32
    %264 = vector.broadcast %cst_96 : f32 to vector<8x128xf32>
    %265 = arith.addf %264, %263 : vector<8x128xf32>
    %266 = arith.divf %264, %265 : vector<8x128xf32>
    %267 = vector.extract_strided_slice %266 {offsets = [0, 0], sizes = [8, 32], strides = [1, 1]} : vector<8x128xf32> to vector<8x32xf32>
    %268 = vector.extract_strided_slice %266 {offsets = [0, 32], sizes = [8, 32], strides = [1, 1]} : vector<8x128xf32> to vector<8x32xf32>
    %269 = vector.extract_strided_slice %266 {offsets = [0, 64], sizes = [8, 32], strides = [1, 1]} : vector<8x128xf32> to vector<8x32xf32>
    %270 = vector.extract_strided_slice %266 {offsets = [0, 96], sizes = [8, 32], strides = [1, 1]} : vector<8x128xf32> to vector<8x32xf32>
    %cst_97 = arith.constant 2.000000e+00 : f32
    %271 = vector.broadcast %cst_97 : f32 to vector<8x32xf32>
    %272 = arith.mulf %271, %270 : vector<8x32xf32>
    %cst_98 = arith.constant 1.000000e+00 : f32
    %273 = vector.broadcast %cst_98 : f32 to vector<8x32xf32>
    %274 = arith.subf %272, %273 : vector<8x32xf32>
    %275 = arith.mulf %268, %255 : vector<8x32xf32>
    %276 = arith.mulf %267, %274 : vector<8x32xf32>
    %277 = arith.addf %275, %276 : vector<8x32xf32>
    %278 = math.tanh %277 : vector<8x32xf32>
    %279 = arith.mulf %269, %278 : vector<8x32xf32>
    %280 = arith.truncf %279 : vector<8x32xf32> to vector<8x32xbf16>
    %281 = arith.index_cast %c0_i32_92 : i32 to index
    %c0_99 = arith.constant 0 : index
    %c0_100 = arith.constant 0 : index
    %282 = vector.load %arg15[%281, %c0_99, %c0_100] : memref<8x8x32xbf16, #tpu.memory_space<vmem>>, vector<1x8x32xbf16>
    %283 = vector.shape_cast %282 : vector<1x8x32xbf16> to vector<8x32xbf16>
    %284 = vector.shape_cast %280 : vector<8x32xbf16> to vector<1x8x32xbf16>
    tpu.vector_store %arg15[%281, %c0_99, %c0_100], %284 {strides = array<i32>} : memref<8x8x32xbf16, #tpu.memory_space<vmem>>, vector<1x8x32xbf16>,
    %c1_i32_101 = arith.constant 1 : i32
    %285 = arith.index_cast %c1_i32_101 : i32 to index
    %c0_102 = arith.constant 0 : index
    %c0_103 = arith.constant 0 : index
    %286 = vector.load %arg14[%285, %c0_102, %c0_103] : memref<8x8x128xf32, #tpu.memory_space<vmem>>, vector<1x8x128xf32>
    %287 = vector.shape_cast %286 : vector<1x8x128xf32> to vector<8x128xf32>
    %288 = arith.truncf %279 : vector<8x32xf32> to vector<8x32xbf16>
    %cst_104 = arith.constant dense<0.000000e+00> : vector<8x128xf32>
    %289 = tpu.matmul %288, %253, %cst_104 {dimension_numbers = #tpu.dot_dimension_numbers<[1], [0], [0], [1], [0, 0, 1, 1], [], []>} : vector<8x32xbf16>, vector<32x128xbf16>, vector<8x128xf32> -> vector<8x128xf32>
    %290 = arith.addf %287, %289 : vector<8x128xf32>
    %291 = arith.negf %290 : vector<8x128xf32>
    %292 = math.exp %291 : vector<8x128xf32>
    %cst_105 = arith.constant 1.000000e+00 : f32
    %293 = vector.broadcast %cst_105 : f32 to vector<8x128xf32>
    %294 = arith.addf %293, %292 : vector<8x128xf32>
    %295 = arith.divf %293, %294 : vector<8x128xf32>
    %296 = vector.extract_strided_slice %295 {offsets = [0, 0], sizes = [8, 32], strides = [1, 1]} : vector<8x128xf32> to vector<8x32xf32>
    %297 = vector.extract_strided_slice %295 {offsets = [0, 32], sizes = [8, 32], strides = [1, 1]} : vector<8x128xf32> to vector<8x32xf32>
    %298 = vector.extract_strided_slice %295 {offsets = [0, 64], sizes = [8, 32], strides = [1, 1]} : vector<8x128xf32> to vector<8x32xf32>
    %299 = vector.extract_strided_slice %295 {offsets = [0, 96], sizes = [8, 32], strides = [1, 1]} : vector<8x128xf32> to vector<8x32xf32>
    %cst_106 = arith.constant 2.000000e+00 : f32
    %300 = vector.broadcast %cst_106 : f32 to vector<8x32xf32>
    %301 = arith.mulf %300, %299 : vector<8x32xf32>
    %cst_107 = arith.constant 1.000000e+00 : f32
    %302 = vector.broadcast %cst_107 : f32 to vector<8x32xf32>
    %303 = arith.subf %301, %302 : vector<8x32xf32>
    %304 = arith.mulf %297, %277 : vector<8x32xf32>
    %305 = arith.mulf %296, %303 : vector<8x32xf32>
    %306 = arith.addf %304, %305 : vector<8x32xf32>
    %307 = math.tanh %306 : vector<8x32xf32>
    %308 = arith.mulf %298, %307 : vector<8x32xf32>
    %309 = arith.truncf %308 : vector<8x32xf32> to vector<8x32xbf16>
    %310 = arith.index_cast %c1_i32_101 : i32 to index
    %c0_108 = arith.constant 0 : index
    %c0_109 = arith.constant 0 : index
    %311 = vector.load %arg15[%310, %c0_108, %c0_109] : memref<8x8x32xbf16, #tpu.memory_space<vmem>>, vector<1x8x32xbf16>
    %312 = vector.shape_cast %311 : vector<1x8x32xbf16> to vector<8x32xbf16>
    %313 = vector.shape_cast %309 : vector<8x32xbf16> to vector<1x8x32xbf16>
    tpu.vector_store %arg15[%310, %c0_108, %c0_109], %313 {strides = array<i32>} : memref<8x8x32xbf16, #tpu.memory_space<vmem>>, vector<1x8x32xbf16>,
    %c2_i32_110 = arith.constant 2 : i32
    %314 = arith.index_cast %c2_i32_110 : i32 to index
    %c0_111 = arith.constant 0 : index
    %c0_112 = arith.constant 0 : index
    %315 = vector.load %arg14[%314, %c0_111, %c0_112] : memref<8x8x128xf32, #tpu.memory_space<vmem>>, vector<1x8x128xf32>
    %316 = vector.shape_cast %315 : vector<1x8x128xf32> to vector<8x128xf32>
    %317 = arith.truncf %308 : vector<8x32xf32> to vector<8x32xbf16>
    %cst_113 = arith.constant dense<0.000000e+00> : vector<8x128xf32>
    %318 = tpu.matmul %317, %253, %cst_113 {dimension_numbers = #tpu.dot_dimension_numbers<[1], [0], [0], [1], [0, 0, 1, 1], [], []>} : vector<8x32xbf16>, vector<32x128xbf16>, vector<8x128xf32> -> vector<8x128xf32>
    %319 = arith.addf %316, %318 : vector<8x128xf32>
    %320 = arith.negf %319 : vector<8x128xf32>
    %321 = math.exp %320 : vector<8x128xf32>
    %cst_114 = arith.constant 1.000000e+00 : f32
    %322 = vector.broadcast %cst_114 : f32 to vector<8x128xf32>
    %323 = arith.addf %322, %321 : vector<8x128xf32>
    %324 = arith.divf %322, %323 : vector<8x128xf32>
    %325 = vector.extract_strided_slice %324 {offsets = [0, 0], sizes = [8, 32], strides = [1, 1]} : vector<8x128xf32> to vector<8x32xf32>
    %326 = vector.extract_strided_slice %324 {offsets = [0, 32], sizes = [8, 32], strides = [1, 1]} : vector<8x128xf32> to vector<8x32xf32>
    %327 = vector.extract_strided_slice %324 {offsets = [0, 64], sizes = [8, 32], strides = [1, 1]} : vector<8x128xf32> to vector<8x32xf32>
    %328 = vector.extract_strided_slice %324 {offsets = [0, 96], sizes = [8, 32], strides = [1, 1]} : vector<8x128xf32> to vector<8x32xf32>
    %cst_115 = arith.constant 2.000000e+00 : f32
    %329 = vector.broadcast %cst_115 : f32 to vector<8x32xf32>
    %330 = arith.mulf %329, %328 : vector<8x32xf32>
    %cst_116 = arith.constant 1.000000e+00 : f32
    %331 = vector.broadcast %cst_116 : f32 to vector<8x32xf32>
    %332 = arith.subf %330, %331 : vector<8x32xf32>
    %333 = arith.mulf %326, %306 : vector<8x32xf32>
    %334 = arith.mulf %325, %332 : vector<8x32xf32>
    %335 = arith.addf %333, %334 : vector<8x32xf32>
    %336 = math.tanh %335 : vector<8x32xf32>
    %337 = arith.mulf %327, %336 : vector<8x32xf32>
    %338 = arith.truncf %337 : vector<8x32xf32> to vector<8x32xbf16>
    %339 = arith.index_cast %c2_i32_110 : i32 to index
    %c0_117 = arith.constant 0 : index
    %c0_118 = arith.constant 0 : index
    %340 = vector.load %arg15[%339, %c0_117, %c0_118] : memref<8x8x32xbf16, #tpu.memory_space<vmem>>, vector<1x8x32xbf16>
    %341 = vector.shape_cast %340 : vector<1x8x32xbf16> to vector<8x32xbf16>
    %342 = vector.shape_cast %338 : vector<8x32xbf16> to vector<1x8x32xbf16>
    tpu.vector_store %arg15[%339, %c0_117, %c0_118], %342 {strides = array<i32>} : memref<8x8x32xbf16, #tpu.memory_space<vmem>>, vector<1x8x32xbf16>,
    %c3_i32_119 = arith.constant 3 : i32
    %343 = arith.index_cast %c3_i32_119 : i32 to index
    %c0_120 = arith.constant 0 : index
    %c0_121 = arith.constant 0 : index
    %344 = vector.load %arg14[%343, %c0_120, %c0_121] : memref<8x8x128xf32, #tpu.memory_space<vmem>>, vector<1x8x128xf32>
    %345 = vector.shape_cast %344 : vector<1x8x128xf32> to vector<8x128xf32>
    %346 = arith.truncf %337 : vector<8x32xf32> to vector<8x32xbf16>
    %cst_122 = arith.constant dense<0.000000e+00> : vector<8x128xf32>
    %347 = tpu.matmul %346, %253, %cst_122 {dimension_numbers = #tpu.dot_dimension_numbers<[1], [0], [0], [1], [0, 0, 1, 1], [], []>} : vector<8x32xbf16>, vector<32x128xbf16>, vector<8x128xf32> -> vector<8x128xf32>
    %348 = arith.addf %345, %347 : vector<8x128xf32>
    %349 = arith.negf %348 : vector<8x128xf32>
    %350 = math.exp %349 : vector<8x128xf32>
    %cst_123 = arith.constant 1.000000e+00 : f32
    %351 = vector.broadcast %cst_123 : f32 to vector<8x128xf32>
    %352 = arith.addf %351, %350 : vector<8x128xf32>
    %353 = arith.divf %351, %352 : vector<8x128xf32>
    %354 = vector.extract_strided_slice %353 {offsets = [0, 0], sizes = [8, 32], strides = [1, 1]} : vector<8x128xf32> to vector<8x32xf32>
    %355 = vector.extract_strided_slice %353 {offsets = [0, 32], sizes = [8, 32], strides = [1, 1]} : vector<8x128xf32> to vector<8x32xf32>
    %356 = vector.extract_strided_slice %353 {offsets = [0, 64], sizes = [8, 32], strides = [1, 1]} : vector<8x128xf32> to vector<8x32xf32>
    %357 = vector.extract_strided_slice %353 {offsets = [0, 96], sizes = [8, 32], strides = [1, 1]} : vector<8x128xf32> to vector<8x32xf32>
    %cst_124 = arith.constant 2.000000e+00 : f32
    %358 = vector.broadcast %cst_124 : f32 to vector<8x32xf32>
    %359 = arith.mulf %358, %357 : vector<8x32xf32>
    %cst_125 = arith.constant 1.000000e+00 : f32
    %360 = vector.broadcast %cst_125 : f32 to vector<8x32xf32>
    %361 = arith.subf %359, %360 : vector<8x32xf32>
    %362 = arith.mulf %355, %335 : vector<8x32xf32>
    %363 = arith.mulf %354, %361 : vector<8x32xf32>
    %364 = arith.addf %362, %363 : vector<8x32xf32>
    %365 = math.tanh %364 : vector<8x32xf32>
    %366 = arith.mulf %356, %365 : vector<8x32xf32>
    %367 = arith.truncf %366 : vector<8x32xf32> to vector<8x32xbf16>
    %368 = arith.index_cast %c3_i32_119 : i32 to index
    %c0_126 = arith.constant 0 : index
    %c0_127 = arith.constant 0 : index
    %369 = vector.load %arg15[%368, %c0_126, %c0_127] : memref<8x8x32xbf16, #tpu.memory_space<vmem>>, vector<1x8x32xbf16>
    %370 = vector.shape_cast %369 : vector<1x8x32xbf16> to vector<8x32xbf16>
    %371 = vector.shape_cast %367 : vector<8x32xbf16> to vector<1x8x32xbf16>
    tpu.vector_store %arg15[%368, %c0_126, %c0_127], %371 {strides = array<i32>} : memref<8x8x32xbf16, #tpu.memory_space<vmem>>, vector<1x8x32xbf16>,
    %c4_i32_128 = arith.constant 4 : i32
    %372 = arith.index_cast %c4_i32_128 : i32 to index
    %c0_129 = arith.constant 0 : index
    %c0_130 = arith.constant 0 : index
    %373 = vector.load %arg14[%372, %c0_129, %c0_130] : memref<8x8x128xf32, #tpu.memory_space<vmem>>, vector<1x8x128xf32>
    %374 = vector.shape_cast %373 : vector<1x8x128xf32> to vector<8x128xf32>
    %375 = arith.truncf %366 : vector<8x32xf32> to vector<8x32xbf16>
    %cst_131 = arith.constant dense<0.000000e+00> : vector<8x128xf32>
    %376 = tpu.matmul %375, %253, %cst_131 {dimension_numbers = #tpu.dot_dimension_numbers<[1], [0], [0], [1], [0, 0, 1, 1], [], []>} : vector<8x32xbf16>, vector<32x128xbf16>, vector<8x128xf32> -> vector<8x128xf32>
    %377 = arith.addf %374, %376 : vector<8x128xf32>
    %378 = arith.negf %377 : vector<8x128xf32>
    %379 = math.exp %378 : vector<8x128xf32>
    %cst_132 = arith.constant 1.000000e+00 : f32
    %380 = vector.broadcast %cst_132 : f32 to vector<8x128xf32>
    %381 = arith.addf %380, %379 : vector<8x128xf32>
    %382 = arith.divf %380, %381 : vector<8x128xf32>
    %383 = vector.extract_strided_slice %382 {offsets = [0, 0], sizes = [8, 32], strides = [1, 1]} : vector<8x128xf32> to vector<8x32xf32>
    %384 = vector.extract_strided_slice %382 {offsets = [0, 32], sizes = [8, 32], strides = [1, 1]} : vector<8x128xf32> to vector<8x32xf32>
    %385 = vector.extract_strided_slice %382 {offsets = [0, 64], sizes = [8, 32], strides = [1, 1]} : vector<8x128xf32> to vector<8x32xf32>
    %386 = vector.extract_strided_slice %382 {offsets = [0, 96], sizes = [8, 32], strides = [1, 1]} : vector<8x128xf32> to vector<8x32xf32>
    %cst_133 = arith.constant 2.000000e+00 : f32
    %387 = vector.broadcast %cst_133 : f32 to vector<8x32xf32>
    %388 = arith.mulf %387, %386 : vector<8x32xf32>
    %cst_134 = arith.constant 1.000000e+00 : f32
    %389 = vector.broadcast %cst_134 : f32 to vector<8x32xf32>
    %390 = arith.subf %388, %389 : vector<8x32xf32>
    %391 = arith.mulf %384, %364 : vector<8x32xf32>
    %392 = arith.mulf %383, %390 : vector<8x32xf32>
    %393 = arith.addf %391, %392 : vector<8x32xf32>
    %394 = math.tanh %393 : vector<8x32xf32>
    %395 = arith.mulf %385, %394 : vector<8x32xf32>
    %396 = arith.truncf %395 : vector<8x32xf32> to vector<8x32xbf16>
    %397 = arith.index_cast %c4_i32_128 : i32 to index
    %c0_135 = arith.constant 0 : index
    %c0_136 = arith.constant 0 : index
    %398 = vector.load %arg15[%397, %c0_135, %c0_136] : memref<8x8x32xbf16, #tpu.memory_space<vmem>>, vector<1x8x32xbf16>
    %399 = vector.shape_cast %398 : vector<1x8x32xbf16> to vector<8x32xbf16>
    %400 = vector.shape_cast %396 : vector<8x32xbf16> to vector<1x8x32xbf16>
    tpu.vector_store %arg15[%397, %c0_135, %c0_136], %400 {strides = array<i32>} : memref<8x8x32xbf16, #tpu.memory_space<vmem>>, vector<1x8x32xbf16>,
    %c5_i32_137 = arith.constant 5 : i32
    %401 = arith.index_cast %c5_i32_137 : i32 to index
    %c0_138 = arith.constant 0 : index
    %c0_139 = arith.constant 0 : index
    %402 = vector.load %arg14[%401, %c0_138, %c0_139] : memref<8x8x128xf32, #tpu.memory_space<vmem>>, vector<1x8x128xf32>
    %403 = vector.shape_cast %402 : vector<1x8x128xf32> to vector<8x128xf32>
    %404 = arith.truncf %395 : vector<8x32xf32> to vector<8x32xbf16>
    %cst_140 = arith.constant dense<0.000000e+00> : vector<8x128xf32>
    %405 = tpu.matmul %404, %253, %cst_140 {dimension_numbers = #tpu.dot_dimension_numbers<[1], [0], [0], [1], [0, 0, 1, 1], [], []>} : vector<8x32xbf16>, vector<32x128xbf16>, vector<8x128xf32> -> vector<8x128xf32>
    %406 = arith.addf %403, %405 : vector<8x128xf32>
    %407 = arith.negf %406 : vector<8x128xf32>
    %408 = math.exp %407 : vector<8x128xf32>
    %cst_141 = arith.constant 1.000000e+00 : f32
    %409 = vector.broadcast %cst_141 : f32 to vector<8x128xf32>
    %410 = arith.addf %409, %408 : vector<8x128xf32>
    %411 = arith.divf %409, %410 : vector<8x128xf32>
    %412 = vector.extract_strided_slice %411 {offsets = [0, 0], sizes = [8, 32], strides = [1, 1]} : vector<8x128xf32> to vector<8x32xf32>
    %413 = vector.extract_strided_slice %411 {offsets = [0, 32], sizes = [8, 32], strides = [1, 1]} : vector<8x128xf32> to vector<8x32xf32>
    %414 = vector.extract_strided_slice %411 {offsets = [0, 64], sizes = [8, 32], strides = [1, 1]} : vector<8x128xf32> to vector<8x32xf32>
    %415 = vector.extract_strided_slice %411 {offsets = [0, 96], sizes = [8, 32], strides = [1, 1]} : vector<8x128xf32> to vector<8x32xf32>
    %cst_142 = arith.constant 2.000000e+00 : f32
    %416 = vector.broadcast %cst_142 : f32 to vector<8x32xf32>
    %417 = arith.mulf %416, %415 : vector<8x32xf32>
    %cst_143 = arith.constant 1.000000e+00 : f32
    %418 = vector.broadcast %cst_143 : f32 to vector<8x32xf32>
    %419 = arith.subf %417, %418 : vector<8x32xf32>
    %420 = arith.mulf %413, %393 : vector<8x32xf32>
    %421 = arith.mulf %412, %419 : vector<8x32xf32>
    %422 = arith.addf %420, %421 : vector<8x32xf32>
    %423 = math.tanh %422 : vector<8x32xf32>
    %424 = arith.mulf %414, %423 : vector<8x32xf32>
    %425 = arith.truncf %424 : vector<8x32xf32> to vector<8x32xbf16>
    %426 = arith.index_cast %c5_i32_137 : i32 to index
    %c0_144 = arith.constant 0 : index
    %c0_145 = arith.constant 0 : index
    %427 = vector.load %arg15[%426, %c0_144, %c0_145] : memref<8x8x32xbf16, #tpu.memory_space<vmem>>, vector<1x8x32xbf16>
    %428 = vector.shape_cast %427 : vector<1x8x32xbf16> to vector<8x32xbf16>
    %429 = vector.shape_cast %425 : vector<8x32xbf16> to vector<1x8x32xbf16>
    tpu.vector_store %arg15[%426, %c0_144, %c0_145], %429 {strides = array<i32>} : memref<8x8x32xbf16, #tpu.memory_space<vmem>>, vector<1x8x32xbf16>,
    %c6_i32_146 = arith.constant 6 : i32
    %430 = arith.index_cast %c6_i32_146 : i32 to index
    %c0_147 = arith.constant 0 : index
    %c0_148 = arith.constant 0 : index
    %431 = vector.load %arg14[%430, %c0_147, %c0_148] : memref<8x8x128xf32, #tpu.memory_space<vmem>>, vector<1x8x128xf32>
    %432 = vector.shape_cast %431 : vector<1x8x128xf32> to vector<8x128xf32>
    %433 = arith.truncf %424 : vector<8x32xf32> to vector<8x32xbf16>
    %cst_149 = arith.constant dense<0.000000e+00> : vector<8x128xf32>
    %434 = tpu.matmul %433, %253, %cst_149 {dimension_numbers = #tpu.dot_dimension_numbers<[1], [0], [0], [1], [0, 0, 1, 1], [], []>} : vector<8x32xbf16>, vector<32x128xbf16>, vector<8x128xf32> -> vector<8x128xf32>
    %435 = arith.addf %432, %434 : vector<8x128xf32>
    %436 = arith.negf %435 : vector<8x128xf32>
    %437 = math.exp %436 : vector<8x128xf32>
    %cst_150 = arith.constant 1.000000e+00 : f32
    %438 = vector.broadcast %cst_150 : f32 to vector<8x128xf32>
    %439 = arith.addf %438, %437 : vector<8x128xf32>
    %440 = arith.divf %438, %439 : vector<8x128xf32>
    %441 = vector.extract_strided_slice %440 {offsets = [0, 0], sizes = [8, 32], strides = [1, 1]} : vector<8x128xf32> to vector<8x32xf32>
    %442 = vector.extract_strided_slice %440 {offsets = [0, 32], sizes = [8, 32], strides = [1, 1]} : vector<8x128xf32> to vector<8x32xf32>
    %443 = vector.extract_strided_slice %440 {offsets = [0, 64], sizes = [8, 32], strides = [1, 1]} : vector<8x128xf32> to vector<8x32xf32>
    %444 = vector.extract_strided_slice %440 {offsets = [0, 96], sizes = [8, 32], strides = [1, 1]} : vector<8x128xf32> to vector<8x32xf32>
    %cst_151 = arith.constant 2.000000e+00 : f32
    %445 = vector.broadcast %cst_151 : f32 to vector<8x32xf32>
    %446 = arith.mulf %445, %444 : vector<8x32xf32>
    %cst_152 = arith.constant 1.000000e+00 : f32
    %447 = vector.broadcast %cst_152 : f32 to vector<8x32xf32>
    %448 = arith.subf %446, %447 : vector<8x32xf32>
    %449 = arith.mulf %442, %422 : vector<8x32xf32>
    %450 = arith.mulf %441, %448 : vector<8x32xf32>
    %451 = arith.addf %449, %450 : vector<8x32xf32>
    %452 = math.tanh %451 : vector<8x32xf32>
    %453 = arith.mulf %443, %452 : vector<8x32xf32>
    %454 = arith.truncf %453 : vector<8x32xf32> to vector<8x32xbf16>
    %455 = arith.index_cast %c6_i32_146 : i32 to index
    %c0_153 = arith.constant 0 : index
    %c0_154 = arith.constant 0 : index
    %456 = vector.load %arg15[%455, %c0_153, %c0_154] : memref<8x8x32xbf16, #tpu.memory_space<vmem>>, vector<1x8x32xbf16>
    %457 = vector.shape_cast %456 : vector<1x8x32xbf16> to vector<8x32xbf16>
    %458 = vector.shape_cast %454 : vector<8x32xbf16> to vector<1x8x32xbf16>
    tpu.vector_store %arg15[%455, %c0_153, %c0_154], %458 {strides = array<i32>} : memref<8x8x32xbf16, #tpu.memory_space<vmem>>, vector<1x8x32xbf16>,
    %c7_i32_155 = arith.constant 7 : i32
    %459 = arith.index_cast %c7_i32_155 : i32 to index
    %c0_156 = arith.constant 0 : index
    %c0_157 = arith.constant 0 : index
    %460 = vector.load %arg14[%459, %c0_156, %c0_157] : memref<8x8x128xf32, #tpu.memory_space<vmem>>, vector<1x8x128xf32>
    %461 = vector.shape_cast %460 : vector<1x8x128xf32> to vector<8x128xf32>
    %462 = arith.truncf %453 : vector<8x32xf32> to vector<8x32xbf16>
    %cst_158 = arith.constant dense<0.000000e+00> : vector<8x128xf32>
    %463 = tpu.matmul %462, %253, %cst_158 {dimension_numbers = #tpu.dot_dimension_numbers<[1], [0], [0], [1], [0, 0, 1, 1], [], []>} : vector<8x32xbf16>, vector<32x128xbf16>, vector<8x128xf32> -> vector<8x128xf32>
    %464 = arith.addf %461, %463 : vector<8x128xf32>
    %465 = arith.negf %464 : vector<8x128xf32>
    %466 = math.exp %465 : vector<8x128xf32>
    %cst_159 = arith.constant 1.000000e+00 : f32
    %467 = vector.broadcast %cst_159 : f32 to vector<8x128xf32>
    %468 = arith.addf %467, %466 : vector<8x128xf32>
    %469 = arith.divf %467, %468 : vector<8x128xf32>
    %470 = vector.extract_strided_slice %469 {offsets = [0, 0], sizes = [8, 32], strides = [1, 1]} : vector<8x128xf32> to vector<8x32xf32>
    %471 = vector.extract_strided_slice %469 {offsets = [0, 32], sizes = [8, 32], strides = [1, 1]} : vector<8x128xf32> to vector<8x32xf32>
    %472 = vector.extract_strided_slice %469 {offsets = [0, 64], sizes = [8, 32], strides = [1, 1]} : vector<8x128xf32> to vector<8x32xf32>
    %473 = vector.extract_strided_slice %469 {offsets = [0, 96], sizes = [8, 32], strides = [1, 1]} : vector<8x128xf32> to vector<8x32xf32>
    %cst_160 = arith.constant 2.000000e+00 : f32
    %474 = vector.broadcast %cst_160 : f32 to vector<8x32xf32>
    %475 = arith.mulf %474, %473 : vector<8x32xf32>
    %cst_161 = arith.constant 1.000000e+00 : f32
    %476 = vector.broadcast %cst_161 : f32 to vector<8x32xf32>
    %477 = arith.subf %475, %476 : vector<8x32xf32>
    %478 = arith.mulf %471, %451 : vector<8x32xf32>
    %479 = arith.mulf %470, %477 : vector<8x32xf32>
    %480 = arith.addf %478, %479 : vector<8x32xf32>
    %481 = math.tanh %480 : vector<8x32xf32>
    %482 = arith.mulf %472, %481 : vector<8x32xf32>
    %483 = arith.truncf %482 : vector<8x32xf32> to vector<8x32xbf16>
    %484 = arith.index_cast %c7_i32_155 : i32 to index
    %c0_162 = arith.constant 0 : index
    %c0_163 = arith.constant 0 : index
    %485 = vector.load %arg15[%484, %c0_162, %c0_163] : memref<8x8x32xbf16, #tpu.memory_space<vmem>>, vector<1x8x32xbf16>
    %486 = vector.shape_cast %485 : vector<1x8x32xbf16> to vector<8x32xbf16>
    %487 = vector.shape_cast %483 : vector<8x32xbf16> to vector<1x8x32xbf16>
    tpu.vector_store %arg15[%484, %c0_162, %c0_163], %487 {strides = array<i32>} : memref<8x8x32xbf16, #tpu.memory_space<vmem>>, vector<1x8x32xbf16>,
    %c8_i32_164 = arith.constant 8 : i32
    %c0_165 = arith.constant 0 : index
    %c0_166 = arith.constant 0 : index
    %488 = vector.load %arg8[%c0_165, %c0_166] : memref<32x128xbf16, #tpu.memory_space<vmem>>, vector<32x128xbf16>
    %c0_167 = arith.constant 0 : index
    %c0_168 = arith.constant 0 : index
    %489 = vector.load %arg10[%c0_167, %c0_168] : memref<1x128xf32, #tpu.memory_space<vmem>>, vector<1x128xf32>
    %c0_169 = arith.constant 0 : index
    %c0_170 = arith.constant 0 : index
    %c0_171 = arith.constant 0 : index
    %490 = vector.load %arg15[%c0_169, %c0_170, %c0_171] : memref<8x8x32xbf16, #tpu.memory_space<vmem>>, vector<8x8x32xbf16>
    %491 = vector.shape_cast %490 : vector<8x8x32xbf16> to vector<64x32xbf16>
    %cst_172 = arith.constant dense<0.000000e+00> : vector<64x128xf32>
    %492 = tpu.matmul %491, %488, %cst_172 {dimension_numbers = #tpu.dot_dimension_numbers<[1], [0], [0], [1], [0, 0, 1, 1], [], []>} : vector<64x32xbf16>, vector<32x128xbf16>, vector<64x128xf32> -> vector<64x128xf32>
    %493 = vector.broadcast %489 : vector<1x128xf32> to vector<64x128xf32>
    %494 = arith.addf %492, %493 : vector<64x128xf32>
    %495 = vector.shape_cast %494 : vector<64x128xf32> to vector<8x8x128xf32>
    %c0_173 = arith.constant 0 : index
    %c0_174 = arith.constant 0 : index
    %c0_175 = arith.constant 0 : index
    %496 = vector.load %arg14[%c0_173, %c0_174, %c0_175] : memref<8x8x128xf32, #tpu.memory_space<vmem>>, vector<8x8x128xf32>
    tpu.vector_store %arg14[%c0_173, %c0_174, %c0_175], %495 {strides = array<i32>} : memref<8x8x128xf32, #tpu.memory_space<vmem>>, vector<8x8x128xf32>,
    %c0_176 = arith.constant 0 : index
    %c0_177 = arith.constant 0 : index
    %497 = vector.load %arg9[%c0_176, %c0_177] : memref<32x128xbf16, #tpu.memory_space<vmem>>, vector<32x128xbf16>
    %cst_178 = arith.constant 0.000000e+00 : f32
    %498 = vector.broadcast %cst_178 : f32 to vector<8x32xf32>
    %cst_179 = arith.constant 0.000000e+00 : f32
    %499 = vector.broadcast %cst_179 : f32 to vector<8x32xf32>
    %c0_i32_180 = arith.constant 0 : i32
    %500 = arith.index_cast %c0_i32_180 : i32 to index
    %c0_181 = arith.constant 0 : index
    %c0_182 = arith.constant 0 : index
    %501 = vector.load %arg14[%500, %c0_181, %c0_182] : memref<8x8x128xf32, #tpu.memory_space<vmem>>, vector<1x8x128xf32>
    %502 = vector.shape_cast %501 : vector<1x8x128xf32> to vector<8x128xf32>
    %503 = arith.truncf %498 : vector<8x32xf32> to vector<8x32xbf16>
    %cst_183 = arith.constant dense<0.000000e+00> : vector<8x128xf32>
    %504 = tpu.matmul %503, %497, %cst_183 {dimension_numbers = #tpu.dot_dimension_numbers<[1], [0], [0], [1], [0, 0, 1, 1], [], []>} : vector<8x32xbf16>, vector<32x128xbf16>, vector<8x128xf32> -> vector<8x128xf32>
    %505 = arith.addf %502, %504 : vector<8x128xf32>
    %506 = arith.negf %505 : vector<8x128xf32>
    %507 = math.exp %506 : vector<8x128xf32>
    %cst_184 = arith.constant 1.000000e+00 : f32
    %508 = vector.broadcast %cst_184 : f32 to vector<8x128xf32>
    %509 = arith.addf %508, %507 : vector<8x128xf32>
    %510 = arith.divf %508, %509 : vector<8x128xf32>
    %511 = vector.extract_strided_slice %510 {offsets = [0, 0], sizes = [8, 32], strides = [1, 1]} : vector<8x128xf32> to vector<8x32xf32>
    %512 = vector.extract_strided_slice %510 {offsets = [0, 32], sizes = [8, 32], strides = [1, 1]} : vector<8x128xf32> to vector<8x32xf32>
    %513 = vector.extract_strided_slice %510 {offsets = [0, 64], sizes = [8, 32], strides = [1, 1]} : vector<8x128xf32> to vector<8x32xf32>
    %514 = vector.extract_strided_slice %510 {offsets = [0, 96], sizes = [8, 32], strides = [1, 1]} : vector<8x128xf32> to vector<8x32xf32>
    %cst_185 = arith.constant 2.000000e+00 : f32
    %515 = vector.broadcast %cst_185 : f32 to vector<8x32xf32>
    %516 = arith.mulf %515, %514 : vector<8x32xf32>
    %cst_186 = arith.constant 1.000000e+00 : f32
    %517 = vector.broadcast %cst_186 : f32 to vector<8x32xf32>
    %518 = arith.subf %516, %517 : vector<8x32xf32>
    %519 = arith.mulf %512, %499 : vector<8x32xf32>
    %520 = arith.mulf %511, %518 : vector<8x32xf32>
    %521 = arith.addf %519, %520 : vector<8x32xf32>
    %522 = math.tanh %521 : vector<8x32xf32>
    %523 = arith.mulf %513, %522 : vector<8x32xf32>
    %c1_i32_187 = arith.constant 1 : i32
    %524 = arith.index_cast %c1_i32_187 : i32 to index
    %c0_188 = arith.constant 0 : index
    %c0_189 = arith.constant 0 : index
    %525 = vector.load %arg14[%524, %c0_188, %c0_189] : memref<8x8x128xf32, #tpu.memory_space<vmem>>, vector<1x8x128xf32>
    %526 = vector.shape_cast %525 : vector<1x8x128xf32> to vector<8x128xf32>
    %527 = arith.truncf %523 : vector<8x32xf32> to vector<8x32xbf16>
    %cst_190 = arith.constant dense<0.000000e+00> : vector<8x128xf32>
    %528 = tpu.matmul %527, %497, %cst_190 {dimension_numbers = #tpu.dot_dimension_numbers<[1], [0], [0], [1], [0, 0, 1, 1], [], []>} : vector<8x32xbf16>, vector<32x128xbf16>, vector<8x128xf32> -> vector<8x128xf32>
    %529 = arith.addf %526, %528 : vector<8x128xf32>
    %530 = arith.negf %529 : vector<8x128xf32>
    %531 = math.exp %530 : vector<8x128xf32>
    %cst_191 = arith.constant 1.000000e+00 : f32
    %532 = vector.broadcast %cst_191 : f32 to vector<8x128xf32>
    %533 = arith.addf %532, %531 : vector<8x128xf32>
    %534 = arith.divf %532, %533 : vector<8x128xf32>
    %535 = vector.extract_strided_slice %534 {offsets = [0, 0], sizes = [8, 32], strides = [1, 1]} : vector<8x128xf32> to vector<8x32xf32>
    %536 = vector.extract_strided_slice %534 {offsets = [0, 32], sizes = [8, 32], strides = [1, 1]} : vector<8x128xf32> to vector<8x32xf32>
    %537 = vector.extract_strided_slice %534 {offsets = [0, 64], sizes = [8, 32], strides = [1, 1]} : vector<8x128xf32> to vector<8x32xf32>
    %538 = vector.extract_strided_slice %534 {offsets = [0, 96], sizes = [8, 32], strides = [1, 1]} : vector<8x128xf32> to vector<8x32xf32>
    %cst_192 = arith.constant 2.000000e+00 : f32
    %539 = vector.broadcast %cst_192 : f32 to vector<8x32xf32>
    %540 = arith.mulf %539, %538 : vector<8x32xf32>
    %cst_193 = arith.constant 1.000000e+00 : f32
    %541 = vector.broadcast %cst_193 : f32 to vector<8x32xf32>
    %542 = arith.subf %540, %541 : vector<8x32xf32>
    %543 = arith.mulf %536, %521 : vector<8x32xf32>
    %544 = arith.mulf %535, %542 : vector<8x32xf32>
    %545 = arith.addf %543, %544 : vector<8x32xf32>
    %546 = math.tanh %545 : vector<8x32xf32>
    %547 = arith.mulf %537, %546 : vector<8x32xf32>
    %c2_i32_194 = arith.constant 2 : i32
    %548 = arith.index_cast %c2_i32_194 : i32 to index
    %c0_195 = arith.constant 0 : index
    %c0_196 = arith.constant 0 : index
    %549 = vector.load %arg14[%548, %c0_195, %c0_196] : memref<8x8x128xf32, #tpu.memory_space<vmem>>, vector<1x8x128xf32>
    %550 = vector.shape_cast %549 : vector<1x8x128xf32> to vector<8x128xf32>
    %551 = arith.truncf %547 : vector<8x32xf32> to vector<8x32xbf16>
    %cst_197 = arith.constant dense<0.000000e+00> : vector<8x128xf32>
    %552 = tpu.matmul %551, %497, %cst_197 {dimension_numbers = #tpu.dot_dimension_numbers<[1], [0], [0], [1], [0, 0, 1, 1], [], []>} : vector<8x32xbf16>, vector<32x128xbf16>, vector<8x128xf32> -> vector<8x128xf32>
    %553 = arith.addf %550, %552 : vector<8x128xf32>
    %554 = arith.negf %553 : vector<8x128xf32>
    %555 = math.exp %554 : vector<8x128xf32>
    %cst_198 = arith.constant 1.000000e+00 : f32
    %556 = vector.broadcast %cst_198 : f32 to vector<8x128xf32>
    %557 = arith.addf %556, %555 : vector<8x128xf32>
    %558 = arith.divf %556, %557 : vector<8x128xf32>
    %559 = vector.extract_strided_slice %558 {offsets = [0, 0], sizes = [8, 32], strides = [1, 1]} : vector<8x128xf32> to vector<8x32xf32>
    %560 = vector.extract_strided_slice %558 {offsets = [0, 32], sizes = [8, 32], strides = [1, 1]} : vector<8x128xf32> to vector<8x32xf32>
    %561 = vector.extract_strided_slice %558 {offsets = [0, 64], sizes = [8, 32], strides = [1, 1]} : vector<8x128xf32> to vector<8x32xf32>
    %562 = vector.extract_strided_slice %558 {offsets = [0, 96], sizes = [8, 32], strides = [1, 1]} : vector<8x128xf32> to vector<8x32xf32>
    %cst_199 = arith.constant 2.000000e+00 : f32
    %563 = vector.broadcast %cst_199 : f32 to vector<8x32xf32>
    %564 = arith.mulf %563, %562 : vector<8x32xf32>
    %cst_200 = arith.constant 1.000000e+00 : f32
    %565 = vector.broadcast %cst_200 : f32 to vector<8x32xf32>
    %566 = arith.subf %564, %565 : vector<8x32xf32>
    %567 = arith.mulf %560, %545 : vector<8x32xf32>
    %568 = arith.mulf %559, %566 : vector<8x32xf32>
    %569 = arith.addf %567, %568 : vector<8x32xf32>
    %570 = math.tanh %569 : vector<8x32xf32>
    %571 = arith.mulf %561, %570 : vector<8x32xf32>
    %c3_i32_201 = arith.constant 3 : i32
    %572 = arith.index_cast %c3_i32_201 : i32 to index
    %c0_202 = arith.constant 0 : index
    %c0_203 = arith.constant 0 : index
    %573 = vector.load %arg14[%572, %c0_202, %c0_203] : memref<8x8x128xf32, #tpu.memory_space<vmem>>, vector<1x8x128xf32>
    %574 = vector.shape_cast %573 : vector<1x8x128xf32> to vector<8x128xf32>
    %575 = arith.truncf %571 : vector<8x32xf32> to vector<8x32xbf16>
    %cst_204 = arith.constant dense<0.000000e+00> : vector<8x128xf32>
    %576 = tpu.matmul %575, %497, %cst_204 {dimension_numbers = #tpu.dot_dimension_numbers<[1], [0], [0], [1], [0, 0, 1, 1], [], []>} : vector<8x32xbf16>, vector<32x128xbf16>, vector<8x128xf32> -> vector<8x128xf32>
    %577 = arith.addf %574, %576 : vector<8x128xf32>
    %578 = arith.negf %577 : vector<8x128xf32>
    %579 = math.exp %578 : vector<8x128xf32>
    %cst_205 = arith.constant 1.000000e+00 : f32
    %580 = vector.broadcast %cst_205 : f32 to vector<8x128xf32>
    %581 = arith.addf %580, %579 : vector<8x128xf32>
    %582 = arith.divf %580, %581 : vector<8x128xf32>
    %583 = vector.extract_strided_slice %582 {offsets = [0, 0], sizes = [8, 32], strides = [1, 1]} : vector<8x128xf32> to vector<8x32xf32>
    %584 = vector.extract_strided_slice %582 {offsets = [0, 32], sizes = [8, 32], strides = [1, 1]} : vector<8x128xf32> to vector<8x32xf32>
    %585 = vector.extract_strided_slice %582 {offsets = [0, 64], sizes = [8, 32], strides = [1, 1]} : vector<8x128xf32> to vector<8x32xf32>
    %586 = vector.extract_strided_slice %582 {offsets = [0, 96], sizes = [8, 32], strides = [1, 1]} : vector<8x128xf32> to vector<8x32xf32>
    %cst_206 = arith.constant 2.000000e+00 : f32
    %587 = vector.broadcast %cst_206 : f32 to vector<8x32xf32>
    %588 = arith.mulf %587, %586 : vector<8x32xf32>
    %cst_207 = arith.constant 1.000000e+00 : f32
    %589 = vector.broadcast %cst_207 : f32 to vector<8x32xf32>
    %590 = arith.subf %588, %589 : vector<8x32xf32>
    %591 = arith.mulf %584, %569 : vector<8x32xf32>
    %592 = arith.mulf %583, %590 : vector<8x32xf32>
    %593 = arith.addf %591, %592 : vector<8x32xf32>
    %594 = math.tanh %593 : vector<8x32xf32>
    %595 = arith.mulf %585, %594 : vector<8x32xf32>
    %c4_i32_208 = arith.constant 4 : i32
    %596 = arith.index_cast %c4_i32_208 : i32 to index
    %c0_209 = arith.constant 0 : index
    %c0_210 = arith.constant 0 : index
    %597 = vector.load %arg14[%596, %c0_209, %c0_210] : memref<8x8x128xf32, #tpu.memory_space<vmem>>, vector<1x8x128xf32>
    %598 = vector.shape_cast %597 : vector<1x8x128xf32> to vector<8x128xf32>
    %599 = arith.truncf %595 : vector<8x32xf32> to vector<8x32xbf16>
    %cst_211 = arith.constant dense<0.000000e+00> : vector<8x128xf32>
    %600 = tpu.matmul %599, %497, %cst_211 {dimension_numbers = #tpu.dot_dimension_numbers<[1], [0], [0], [1], [0, 0, 1, 1], [], []>} : vector<8x32xbf16>, vector<32x128xbf16>, vector<8x128xf32> -> vector<8x128xf32>
    %601 = arith.addf %598, %600 : vector<8x128xf32>
    %602 = arith.negf %601 : vector<8x128xf32>
    %603 = math.exp %602 : vector<8x128xf32>
    %cst_212 = arith.constant 1.000000e+00 : f32
    %604 = vector.broadcast %cst_212 : f32 to vector<8x128xf32>
    %605 = arith.addf %604, %603 : vector<8x128xf32>
    %606 = arith.divf %604, %605 : vector<8x128xf32>
    %607 = vector.extract_strided_slice %606 {offsets = [0, 0], sizes = [8, 32], strides = [1, 1]} : vector<8x128xf32> to vector<8x32xf32>
    %608 = vector.extract_strided_slice %606 {offsets = [0, 32], sizes = [8, 32], strides = [1, 1]} : vector<8x128xf32> to vector<8x32xf32>
    %609 = vector.extract_strided_slice %606 {offsets = [0, 64], sizes = [8, 32], strides = [1, 1]} : vector<8x128xf32> to vector<8x32xf32>
    %610 = vector.extract_strided_slice %606 {offsets = [0, 96], sizes = [8, 32], strides = [1, 1]} : vector<8x128xf32> to vector<8x32xf32>
    %cst_213 = arith.constant 2.000000e+00 : f32
    %611 = vector.broadcast %cst_213 : f32 to vector<8x32xf32>
    %612 = arith.mulf %611, %610 : vector<8x32xf32>
    %cst_214 = arith.constant 1.000000e+00 : f32
    %613 = vector.broadcast %cst_214 : f32 to vector<8x32xf32>
    %614 = arith.subf %612, %613 : vector<8x32xf32>
    %615 = arith.mulf %608, %593 : vector<8x32xf32>
    %616 = arith.mulf %607, %614 : vector<8x32xf32>
    %617 = arith.addf %615, %616 : vector<8x32xf32>
    %618 = math.tanh %617 : vector<8x32xf32>
    %619 = arith.mulf %609, %618 : vector<8x32xf32>
    %c5_i32_215 = arith.constant 5 : i32
    %620 = arith.index_cast %c5_i32_215 : i32 to index
    %c0_216 = arith.constant 0 : index
    %c0_217 = arith.constant 0 : index
    %621 = vector.load %arg14[%620, %c0_216, %c0_217] : memref<8x8x128xf32, #tpu.memory_space<vmem>>, vector<1x8x128xf32>
    %622 = vector.shape_cast %621 : vector<1x8x128xf32> to vector<8x128xf32>
    %623 = arith.truncf %619 : vector<8x32xf32> to vector<8x32xbf16>
    %cst_218 = arith.constant dense<0.000000e+00> : vector<8x128xf32>
    %624 = tpu.matmul %623, %497, %cst_218 {dimension_numbers = #tpu.dot_dimension_numbers<[1], [0], [0], [1], [0, 0, 1, 1], [], []>} : vector<8x32xbf16>, vector<32x128xbf16>, vector<8x128xf32> -> vector<8x128xf32>
    %625 = arith.addf %622, %624 : vector<8x128xf32>
    %626 = arith.negf %625 : vector<8x128xf32>
    %627 = math.exp %626 : vector<8x128xf32>
    %cst_219 = arith.constant 1.000000e+00 : f32
    %628 = vector.broadcast %cst_219 : f32 to vector<8x128xf32>
    %629 = arith.addf %628, %627 : vector<8x128xf32>
    %630 = arith.divf %628, %629 : vector<8x128xf32>
    %631 = vector.extract_strided_slice %630 {offsets = [0, 0], sizes = [8, 32], strides = [1, 1]} : vector<8x128xf32> to vector<8x32xf32>
    %632 = vector.extract_strided_slice %630 {offsets = [0, 32], sizes = [8, 32], strides = [1, 1]} : vector<8x128xf32> to vector<8x32xf32>
    %633 = vector.extract_strided_slice %630 {offsets = [0, 64], sizes = [8, 32], strides = [1, 1]} : vector<8x128xf32> to vector<8x32xf32>
    %634 = vector.extract_strided_slice %630 {offsets = [0, 96], sizes = [8, 32], strides = [1, 1]} : vector<8x128xf32> to vector<8x32xf32>
    %cst_220 = arith.constant 2.000000e+00 : f32
    %635 = vector.broadcast %cst_220 : f32 to vector<8x32xf32>
    %636 = arith.mulf %635, %634 : vector<8x32xf32>
    %cst_221 = arith.constant 1.000000e+00 : f32
    %637 = vector.broadcast %cst_221 : f32 to vector<8x32xf32>
    %638 = arith.subf %636, %637 : vector<8x32xf32>
    %639 = arith.mulf %632, %617 : vector<8x32xf32>
    %640 = arith.mulf %631, %638 : vector<8x32xf32>
    %641 = arith.addf %639, %640 : vector<8x32xf32>
    %642 = math.tanh %641 : vector<8x32xf32>
    %643 = arith.mulf %633, %642 : vector<8x32xf32>
    %c6_i32_222 = arith.constant 6 : i32
    %644 = arith.index_cast %c6_i32_222 : i32 to index
    %c0_223 = arith.constant 0 : index
    %c0_224 = arith.constant 0 : index
    %645 = vector.load %arg14[%644, %c0_223, %c0_224] : memref<8x8x128xf32, #tpu.memory_space<vmem>>, vector<1x8x128xf32>
    %646 = vector.shape_cast %645 : vector<1x8x128xf32> to vector<8x128xf32>
    %647 = arith.truncf %643 : vector<8x32xf32> to vector<8x32xbf16>
    %cst_225 = arith.constant dense<0.000000e+00> : vector<8x128xf32>
    %648 = tpu.matmul %647, %497, %cst_225 {dimension_numbers = #tpu.dot_dimension_numbers<[1], [0], [0], [1], [0, 0, 1, 1], [], []>} : vector<8x32xbf16>, vector<32x128xbf16>, vector<8x128xf32> -> vector<8x128xf32>
    %649 = arith.addf %646, %648 : vector<8x128xf32>
    %650 = arith.negf %649 : vector<8x128xf32>
    %651 = math.exp %650 : vector<8x128xf32>
    %cst_226 = arith.constant 1.000000e+00 : f32
    %652 = vector.broadcast %cst_226 : f32 to vector<8x128xf32>
    %653 = arith.addf %652, %651 : vector<8x128xf32>
    %654 = arith.divf %652, %653 : vector<8x128xf32>
    %655 = vector.extract_strided_slice %654 {offsets = [0, 0], sizes = [8, 32], strides = [1, 1]} : vector<8x128xf32> to vector<8x32xf32>
    %656 = vector.extract_strided_slice %654 {offsets = [0, 32], sizes = [8, 32], strides = [1, 1]} : vector<8x128xf32> to vector<8x32xf32>
    %657 = vector.extract_strided_slice %654 {offsets = [0, 64], sizes = [8, 32], strides = [1, 1]} : vector<8x128xf32> to vector<8x32xf32>
    %658 = vector.extract_strided_slice %654 {offsets = [0, 96], sizes = [8, 32], strides = [1, 1]} : vector<8x128xf32> to vector<8x32xf32>
    %cst_227 = arith.constant 2.000000e+00 : f32
    %659 = vector.broadcast %cst_227 : f32 to vector<8x32xf32>
    %660 = arith.mulf %659, %658 : vector<8x32xf32>
    %cst_228 = arith.constant 1.000000e+00 : f32
    %661 = vector.broadcast %cst_228 : f32 to vector<8x32xf32>
    %662 = arith.subf %660, %661 : vector<8x32xf32>
    %663 = arith.mulf %656, %641 : vector<8x32xf32>
    %664 = arith.mulf %655, %662 : vector<8x32xf32>
    %665 = arith.addf %663, %664 : vector<8x32xf32>
    %666 = math.tanh %665 : vector<8x32xf32>
    %667 = arith.mulf %657, %666 : vector<8x32xf32>
    %c7_i32_229 = arith.constant 7 : i32
    %668 = arith.index_cast %c7_i32_229 : i32 to index
    %c0_230 = arith.constant 0 : index
    %c0_231 = arith.constant 0 : index
    %669 = vector.load %arg14[%668, %c0_230, %c0_231] : memref<8x8x128xf32, #tpu.memory_space<vmem>>, vector<1x8x128xf32>
    %670 = vector.shape_cast %669 : vector<1x8x128xf32> to vector<8x128xf32>
    %671 = arith.truncf %667 : vector<8x32xf32> to vector<8x32xbf16>
    %cst_232 = arith.constant dense<0.000000e+00> : vector<8x128xf32>
    %672 = tpu.matmul %671, %497, %cst_232 {dimension_numbers = #tpu.dot_dimension_numbers<[1], [0], [0], [1], [0, 0, 1, 1], [], []>} : vector<8x32xbf16>, vector<32x128xbf16>, vector<8x128xf32> -> vector<8x128xf32>
    %673 = arith.addf %670, %672 : vector<8x128xf32>
    %674 = arith.negf %673 : vector<8x128xf32>
    %675 = math.exp %674 : vector<8x128xf32>
    %cst_233 = arith.constant 1.000000e+00 : f32
    %676 = vector.broadcast %cst_233 : f32 to vector<8x128xf32>
    %677 = arith.addf %676, %675 : vector<8x128xf32>
    %678 = arith.divf %676, %677 : vector<8x128xf32>
    %679 = vector.extract_strided_slice %678 {offsets = [0, 0], sizes = [8, 32], strides = [1, 1]} : vector<8x128xf32> to vector<8x32xf32>
    %680 = vector.extract_strided_slice %678 {offsets = [0, 32], sizes = [8, 32], strides = [1, 1]} : vector<8x128xf32> to vector<8x32xf32>
    %681 = vector.extract_strided_slice %678 {offsets = [0, 64], sizes = [8, 32], strides = [1, 1]} : vector<8x128xf32> to vector<8x32xf32>
    %682 = vector.extract_strided_slice %678 {offsets = [0, 96], sizes = [8, 32], strides = [1, 1]} : vector<8x128xf32> to vector<8x32xf32>
    %cst_234 = arith.constant 2.000000e+00 : f32
    %683 = vector.broadcast %cst_234 : f32 to vector<8x32xf32>
    %684 = arith.mulf %683, %682 : vector<8x32xf32>
    %cst_235 = arith.constant 1.000000e+00 : f32
    %685 = vector.broadcast %cst_235 : f32 to vector<8x32xf32>
    %686 = arith.subf %684, %685 : vector<8x32xf32>
    %687 = arith.mulf %680, %665 : vector<8x32xf32>
    %688 = arith.mulf %679, %686 : vector<8x32xf32>
    %689 = arith.addf %687, %688 : vector<8x32xf32>
    %690 = math.tanh %689 : vector<8x32xf32>
    %691 = arith.mulf %681, %690 : vector<8x32xf32>
    %c8_i32_236 = arith.constant 8 : i32
    %692 = arith.truncf %691 : vector<8x32xf32> to vector<8x32xbf16>
    %c0_237 = arith.constant 0 : index
    %c0_238 = arith.constant 0 : index
    %693 = vector.load %arg11[%c0_237, %c0_238] : memref<32x16xbf16, #tpu.memory_space<vmem>>, vector<32x16xbf16>
    %cst_239 = arith.constant dense<0.000000e+00> : vector<8x16xf32>
    %694 = tpu.matmul %692, %693, %cst_239 {dimension_numbers = #tpu.dot_dimension_numbers<[1], [0], [0], [1], [0, 0, 1, 1], [], []>} : vector<8x32xbf16>, vector<32x16xbf16>, vector<8x16xf32> -> vector<8x16xf32>
    %c0_240 = arith.constant 0 : index
    %c0_241 = arith.constant 0 : index
    %695 = vector.load %arg12[%c0_240, %c0_241] : memref<1x16xf32, #tpu.memory_space<vmem>>, vector<1x16xf32>
    %696 = vector.broadcast %695 : vector<1x16xf32> to vector<8x16xf32>
    %697 = arith.addf %694, %696 : vector<8x16xf32>
    %c0_242 = arith.constant 0 : index
    %c0_243 = arith.constant 0 : index
    %698 = vector.load %arg13[%c0_242, %c0_243] : memref<8x16xf32, #tpu.memory_space<vmem>>, vector<8x16xf32>
    tpu.vector_store %arg13[%c0_242, %c0_243], %697 {strides = array<i32>} : memref<8x16xf32, #tpu.memory_space<vmem>>, vector<8x16xf32>,
    return
  }
  func.func @transform_0(%arg0: i32) -> (i32, i32, i32) {
    %c0_i32 = arith.constant 0 : i32
    %c0_i32_0 = arith.constant 0 : i32
    %c0_i32_1 = arith.constant 0 : i32
    return %c0_i32, %arg0, %c0_i32_0 : i32, i32, i32
  }
  func.func @transform_1(%arg0: i32) -> (i32, i32) {
    %c0_i32 = arith.constant 0 : i32
    %c0_i32_0 = arith.constant 0 : i32
    %c0_i32_1 = arith.constant 0 : i32
    return %c0_i32, %c0_i32_0 : i32, i32
  }
  func.func @transform_2(%arg0: i32) -> (i32, i32) {
    %c0_i32 = arith.constant 0 : i32
    %c0_i32_0 = arith.constant 0 : i32
    %c0_i32_1 = arith.constant 0 : i32
    return %c0_i32, %c0_i32_0 : i32, i32
  }
  func.func @transform_3(%arg0: i32) -> (i32, i32) {
    %c0_i32 = arith.constant 0 : i32
    %c0_i32_0 = arith.constant 0 : i32
    %c0_i32_1 = arith.constant 0 : i32
    return %c0_i32, %c0_i32_0 : i32, i32
  }
  func.func @transform_4(%arg0: i32) -> (i32, i32) {
    %c0_i32 = arith.constant 0 : i32
    %c0_i32_0 = arith.constant 0 : i32
    %c0_i32_1 = arith.constant 0 : i32
    return %c0_i32, %c0_i32_0 : i32, i32
  }
  func.func @transform_5(%arg0: i32) -> (i32, i32) {
    %c0_i32 = arith.constant 0 : i32
    %c0_i32_0 = arith.constant 0 : i32
    %c0_i32_1 = arith.constant 0 : i32
    return %c0_i32, %c0_i32_0 : i32, i32
  }
  func.func @transform_6(%arg0: i32) -> (i32, i32) {
    %c0_i32 = arith.constant 0 : i32
    %c0_i32_0 = arith.constant 0 : i32
    %c0_i32_1 = arith.constant 0 : i32
    return %c0_i32, %c0_i32_0 : i32, i32
  }
  func.func @transform_7(%arg0: i32) -> (i32, i32) {
    %c0_i32 = arith.constant 0 : i32
    %c0_i32_0 = arith.constant 0 : i32
    %c0_i32_1 = arith.constant 0 : i32
    return %c0_i32, %c0_i32_0 : i32, i32
  }
  func.func @transform_8(%arg0: i32) -> (i32, i32) {
    %c0_i32 = arith.constant 0 : i32
    %c0_i32_0 = arith.constant 0 : i32
    %c0_i32_1 = arith.constant 0 : i32
    return %c0_i32, %c0_i32_0 : i32, i32
  }
  func.func @transform_9(%arg0: i32) -> (i32, i32) {
    %c0_i32 = arith.constant 0 : i32
    %c0_i32_0 = arith.constant 0 : i32
    %c0_i32_1 = arith.constant 0 : i32
    return %c0_i32, %c0_i32_0 : i32, i32
  }
  func.func @transform_10(%arg0: i32) -> (i32, i32) {
    %c0_i32 = arith.constant 0 : i32
    %c0_i32_0 = arith.constant 0 : i32
    %c0_i32_1 = arith.constant 0 : i32
    return %c0_i32, %c0_i32_0 : i32, i32
  }
  func.func @transform_11(%arg0: i32) -> (i32, i32) {
    %c0_i32 = arith.constant 0 : i32
    %c0_i32_0 = arith.constant 0 : i32
    %c0_i32_1 = arith.constant 0 : i32
    return %c0_i32, %c0_i32_0 : i32, i32
  }
  func.func @transform_12(%arg0: i32) -> (i32, i32) {
    %c0_i32 = arith.constant 0 : i32
    %c0_i32_0 = arith.constant 0 : i32
    return %arg0, %c0_i32 : i32, i32
  }
}

</mosaic_0001>

<llo_original>
// kernel: tpu_custom_call.1
$region0: #{tpu_custom_call.1}
  #allocation0 [shape = 'u32[]', space=smem, size = 0x4, offset = 0x4, fixed_abs, tag = 'smem constant byte address 0x4 - core index']
  #allocation1 [shape = 'u32[144,128]{1,0:T(1,128)}', space=vmem, size = 0x12000, scoped, tag = 'internal scratch']
  #allocation2 [shape = 'f32[8,8,128]{2,1,0:T(8,128)}', space=vmem, size = 0x8000, scoped, tag = 'scratch operand']
  #allocation3 [shape = 'bf16[8,8,32]{2,1,0:T(8,128)(2,1)}', space=vmem, size = 0x4000, scoped, tag = 'scratch operand']
  %s0 = inlined_call_operand.hbm [shape: bf16[8,8,16], index: 0, kind: input, shape index: {}]
  %s1 = inlined_call_operand.hbm [shape: bf16[16,128], index: 1, kind: input, shape index: {}]
  %s2 = inlined_call_operand.vmem [shape: bf16[32,128], index: 2, kind: input, shape index: {}]
  %s3 = inlined_call_operand.hbm [shape: f32[1,128], index: 3, kind: input, shape index: {}]
  %s4 = inlined_call_operand.hbm [shape: bf16[32,128], index: 4, kind: input, shape index: {}]
  %s5 = inlined_call_operand.vmem [shape: bf16[32,128], index: 5, kind: input, shape index: {}]
  %s6 = inlined_call_operand.hbm [shape: f32[1,128], index: 6, kind: input, shape index: {}]
  %s7 = inlined_call_operand.hbm [shape: bf16[32,128], index: 7, kind: input, shape index: {}]
  %s8 = inlined_call_operand.hbm [shape: bf16[32,128], index: 8, kind: input, shape index: {}]
  %s9 = inlined_call_operand.hbm [shape: f32[1,128], index: 9, kind: input, shape index: {}]
  %s10 = inlined_call_operand.vmem [shape: bf16[32,16], index: 10, kind: input, shape index: {}]
  %s11 = inlined_call_operand.vmem [shape: f32[1,16], index: 11, kind: input, shape index: {}]
  %s12 = inlined_call_operand.hbm [shape: f32[8,16], index: 12, kind: output, shape index: {}]
  %s13 = sld [smem:[#allocation0]]
  $region90: #{tpu_custom_call.1} parent=0
    _
  %s15 = ssub.s32 1, %s13
  %s16 = scalar_select 0, %s15, %s13
  $region1: #{tpu_custom_call.1} parent=0
    #allocation4 [shape = 'u8[16384]{0}', space=vmem, size = 0x4000, scoped, tag = 'input window, operand 0, single buffered']
    #allocation5 [shape = 's32[1]{0}', space=sflag, size = 0x4, scoped, tag = 'scoped memory for tpu_custom_call.1']
    #allocation6 [shape = 's32[1]{0}', space=sflag, size = 0x4, scoped, tag = 'scoped memory for tpu_custom_call.1']
    #allocation7 [shape = 'u8[4096]{0}', space=vmem, size = 0x1000, scoped, tag = 'input window, operand 1, single buffered']
    #allocation8 [shape = 's32[1]{0}', space=sflag, size = 0x4, scoped, tag = 'scoped memory for tpu_custom_call.1']
    #allocation9 [shape = 'u8[512]{0}', space=vmem, size = 0x400, scoped, tag = 'input window, operand 3, single buffered']
    #allocation10 [shape = 'u8[8192]{0}', space=vmem, size = 0x2000, scoped, tag = 'input window, operand 4, single buffered']
    #allocation11 [shape = 's32[1]{0}', space=sflag, size = 0x4, scoped, tag = 'scoped memory for tpu_custom_call.1']
    #allocation12 [shape = 'u8[512]{0}', space=vmem, size = 0x400, scoped, tag = 'input window, operand 6, single buffered']
    #allocation13 [shape = 'u8[8192]{0}', space=vmem, size = 0x2000, scoped, tag = 'input window, operand 7, single buffered']
    #allocation14 [shape = 's32[1]{0}', space=sflag, size = 0x4, scoped, tag = 'scoped memory for tpu_custom_call.1']
    #allocation15 [shape = 'u8[8192]{0}', space=vmem, size = 0x2000, scoped, tag = 'input window, operand 8, single buffered']
    #allocation16 [shape = 'u8[512]{0}', space=vmem, size = 0x400, scoped, tag = 'input window, operand 9, single buffered']
    #allocation17 [shape = 's32[1]{0}', space=sflag, size = 0x4, scoped, tag = 'scoped memory for tpu_custom_call.1']
    #allocation18 [shape = 'u8[4096]{0}', space=vmem, size = 0x1000, scoped, tag = 'output window, operand 0, single buffered']
    %17 = vsyncpa [#allocation5], 0
    %18 = vsyncpa [#allocation8], 0
    %19 = vsyncpa [#allocation11], 0
    %20 = vsyncpa [#allocation14], 0
    %21 = vsyncpa [#allocation17], 0
    %22 = vsyncpa [#allocation6], 0
    // Predicated region
    $region2: #{tpu_custom_call.1} parent=1 // pred_check
      _
    $region3: #{tpu_custom_call.1} parent=1 // pred_check_branch
      %24 = sbr.rel (0) target = $region5
    $region4: #{tpu_custom_call.1} parent=1 // pred_region
      %s26 = ssub.s32 512, 512
      %27 = vsyncadd [#allocation5], %s26
      %s28 = sshll.u32 [#allocation4], 4
      %s29 = int_to_ptr.vmem [resolvable:$true] %s28
      %34 = dma.hbm_to_vmem [thread:$0]  %s0, 512, %s29, [#allocation5], 64, 64, 4
    $region5: #{tpu_custom_call.1} parent=1 // pred_fallthru
      _
    // Predicated region
    $region6: #{tpu_custom_call.1} parent=1 // pred_check
      _
    $region7: #{tpu_custom_call.1} parent=1 // pred_check_branch
      %36 = sbr.rel (0) target = $region9
    $region8: #{tpu_custom_call.1} parent=1 // pred_region
      %s38 = ssub.s32 128, 128
      %39 = vsyncadd [#allocation8], %s38
      %s40 = sshll.u32 [#allocation7], 4
      %s41 = int_to_ptr.vmem [resolvable:$true] %s40
      %46 = dma.hbm_to_vmem [thread:$0]  %s1, 128, %s41, [#allocation8], 64, 64, 4
    $region9: #{tpu_custom_call.1} parent=1 // pred_fallthru
      _
    // Predicated region
    $region10: #{tpu_custom_call.1} parent=1 // pred_check
      _
    $region11: #{tpu_custom_call.1} parent=1 // pred_check_branch
      %48 = sbr.rel (0) target = $region13
    $region12: #{tpu_custom_call.1} parent=1 // pred_region
      _
    $region13: #{tpu_custom_call.1} parent=1 // pred_fallthru
      _
    // Predicated region
    $region14: #{tpu_custom_call.1} parent=1 // pred_check
      _
    $region15: #{tpu_custom_call.1} parent=1 // pred_check_branch
      %50 = sbr.rel (0) target = $region17
    $region16: #{tpu_custom_call.1} parent=1 // pred_region
      %s52 = ssub.s32 16, 16
      %53 = vsyncadd [#allocation8], %s52
      %s55 = sshll.u32 [#allocation9], 4
      %s56 = int_to_ptr.vmem [resolvable:$true] %s55
      %58 = dma.hbm_to_vmem [thread:$0]  %s3, 16, %s56, [#allocation8]
    $region17: #{tpu_custom_call.1} parent=1 // pred_fallthru
      _
    // Predicated region
    $region18: #{tpu_custom_call.1} parent=1 // pred_check
      _
    $region19: #{tpu_custom_call.1} parent=1 // pred_check_branch
      %60 = sbr.rel (0) target = $region21
    $region20: #{tpu_custom_call.1} parent=1 // pred_region
      %s62 = ssub.s32 256, 256
      %63 = vsyncadd [#allocation11], %s62
      %s64 = sshll.u32 [#allocation10], 4
      %s65 = int_to_ptr.vmem [resolvable:$true] %s64
      %70 = dma.hbm_to_vmem [thread:$0]  %s4, 256, %s65, [#allocation11], 64, 64, 4
    $region21: #{tpu_custom_call.1} parent=1 // pred_fallthru
      _
    // Predicated region
    $region22: #{tpu_custom_call.1} parent=1 // pred_check
      _
    $region23: #{tpu_custom_call.1} parent=1 // pred_check_branch
      %72 = sbr.rel (0) target = $region25
    $region24: #{tpu_custom_call.1} parent=1 // pred_region
      _
    $region25: #{tpu_custom_call.1} parent=1 // pred_fallthru
      _
    // Predicated region
    $region26: #{tpu_custom_call.1} parent=1 // pred_check
      _
    $region27: #{tpu_custom_call.1} parent=1 // pred_check_branch
      %74 = sbr.rel (0) target = $region29
    $region28: #{tpu_custom_call.1} parent=1 // pred_region
      %s76 = ssub.s32 16, 16
      %77 = vsyncadd [#allocation11], %s76
      %s79 = sshll.u32 [#allocation12], 4
      %s80 = int_to_ptr.vmem [resolvable:$true] %s79
      %82 = dma.hbm_to_vmem [thread:$0]  %s6, 16, %s80, [#allocation11]
    $region29: #{tpu_custom_call.1} parent=1 // pred_fallthru
      _
    // Predicated region
    $region30: #{tpu_custom_call.1} parent=1 // pred_check
      _
    $region31: #{tpu_custom_call.1} parent=1 // pred_check_branch
      %84 = sbr.rel (0) target = $region33
    $region32: #{tpu_custom_call.1} parent=1 // pred_region
      %s86 = ssub.s32 256, 256
      %87 = vsyncadd [#allocation14], %s86
      %s88 = sshll.u32 [#allocation13], 4
      %s89 = int_to_ptr.vmem [resolvable:$true] %s88
      %94 = dma.hbm_to_vmem [thread:$0]  %s7, 256, %s89, [#allocation14], 64, 64, 4
    $region33: #{tpu_custom_call.1} parent=1 // pred_fallthru
      _
    // Predicated region
    $region34: #{tpu_custom_call.1} parent=1 // pred_check
      _
    $region35: #{tpu_custom_call.1} parent=1 // pred_check_branch
      %96 = sbr.rel (0) target = $region37
    $region36: #{tpu_custom_call.1} parent=1 // pred_region
      %s98 = ssub.s32 256, 256
      %99 = vsyncadd [#allocation14], %s98
      %s100 = sshll.u32 [#allocation15], 4
      %s101 = int_to_ptr.vmem [resolvable:$true] %s100
      %106 = dma.hbm_to_vmem [thread:$0]  %s8, 256, %s101, [#allocation14], 64, 64, 4
    $region37: #{tpu_custom_call.1} parent=1 // pred_fallthru
      _
    // Predicated region
    $region38: #{tpu_custom_call.1} parent=1 // pred_check
      _
    $region39: #{tpu_custom_call.1} parent=1 // pred_check_branch
      %108 = sbr.rel (0) target = $region41
    $region40: #{tpu_custom_call.1} parent=1 // pred_region
      %s110 = ssub.s32 16, 16
      %111 = vsyncadd [#allocation17], %s110
      %s113 = sshll.u32 [#allocation16], 4
      %s114 = int_to_ptr.vmem [resolvable:$true] %s113
      %116 = dma.hbm_to_vmem [thread:$0]  %s9, 16, %s114, [#allocation17]
    $region41: #{tpu_custom_call.1} parent=1 // pred_fallthru
      _
    // Predicated region
    $region42: #{tpu_custom_call.1} parent=1 // pred_check
      _
    $region43: #{tpu_custom_call.1} parent=1 // pred_check_branch
      %118 = sbr.rel (0) target = $region45
    $region44: #{tpu_custom_call.1} parent=1 // pred_region
      _
    $region45: #{tpu_custom_call.1} parent=1 // pred_fallthru
      _
    // Predicated region
    $region46: #{tpu_custom_call.1} parent=1 // pred_check
      _
    $region47: #{tpu_custom_call.1} parent=1 // pred_check_branch
      %120 = sbr.rel (0) target = $region49
    $region48: #{tpu_custom_call.1} parent=1 // pred_region
      _
    $region49: #{tpu_custom_call.1} parent=1 // pred_fallthru
      _
    // Predicated region
    $region50: #{tpu_custom_call.1} parent=1 // pred_check
      _
    $region51: #{tpu_custom_call.1} parent=1 // pred_check_branch
      %122 = sbr.rel (0) target = $region53
    $region52: #{tpu_custom_call.1} parent=1 // pred_region
      %123 = dma.done [#allocation5], 512
    $region53: #{tpu_custom_call.1} parent=1 // pred_fallthru
      _
    // Predicated region
    $region54: #{tpu_custom_call.1} parent=1 // pred_check
      _
    $region55: #{tpu_custom_call.1} parent=1 // pred_check_branch
      %125 = sbr.rel (0) target = $region57
    $region56: #{tpu_custom_call.1} parent=1 // pred_region
      %126 = dma.done [#allocation8], 128
    $region57: #{tpu_custom_call.1} parent=1 // pred_fallthru
      _
    // Predicated region
    $region58: #{tpu_custom_call.1} parent=1 // pred_check
      _
    $region59: #{tpu_custom_call.1} parent=1 // pred_check_branch
      %128 = sbr.rel (0) target = $region61
    $region60: #{tpu_custom_call.1} parent=1 // pred_region
      %129 = dma.done [#allocation8], 16
    $region61: #{tpu_custom_call.1} parent=1 // pred_fallthru
      _
    // Predicated region
    $region62: #{tpu_custom_call.1} parent=1 // pred_check
      _
    $region63: #{tpu_custom_call.1} parent=1 // pred_check_branch
      %131 = sbr.rel (0) target = $region65
    $region64: #{tpu_custom_call.1} parent=1 // pred_region
      %132 = dma.done [#allocation11], 256
    $region65: #{tpu_custom_call.1} parent=1 // pred_fallthru
      _
    // Predicated region
    $region66: #{tpu_custom_call.1} parent=1 // pred_check
      _
    $region67: #{tpu_custom_call.1} parent=1 // pred_check_branch
      %134 = sbr.rel (0) target = $region69
    $region68: #{tpu_custom_call.1} parent=1 // pred_region
      %135 = dma.done [#allocation11], 16
    $region69: #{tpu_custom_call.1} parent=1 // pred_fallthru
      _
    // Predicated region
    $region70: #{tpu_custom_call.1} parent=1 // pred_check
      _
    $region71: #{tpu_custom_call.1} parent=1 // pred_check_branch
      %137 = sbr.rel (0) target = $region73
    $region72: #{tpu_custom_call.1} parent=1 // pred_region
      %138 = dma.done [#allocation14], 256
    $region73: #{tpu_custom_call.1} parent=1 // pred_fallthru
      _
    // Predicated region
    $region74: #{tpu_custom_call.1} parent=1 // pred_check
      _
    $region75: #{tpu_custom_call.1} parent=1 // pred_check_branch
      %140 = sbr.rel (0) target = $region77
    $region76: #{tpu_custom_call.1} parent=1 // pred_region
      %141 = dma.done [#allocation14], 256
    $region77: #{tpu_custom_call.1} parent=1 // pred_fallthru
      _
    // Predicated region
    $region78: #{tpu_custom_call.1} parent=1 // pred_check
      _
    $region79: #{tpu_custom_call.1} parent=1 // pred_check_branch
      %143 = sbr.rel (0) target = $region81
    $region80: #{tpu_custom_call.1} parent=1 // pred_region
      %144 = dma.done [#allocation17], 16
    $region81: #{tpu_custom_call.1} parent=1 // pred_fallthru
      _
    %v146 = vld [vmem:[#allocation7] sm:$0xf]
    %v147 = vld [vmem:[#allocation7 + $0x4] sm:$0xf]
    %v148 = vld [vmem:[#allocation9] sm:$0x1]
    %v149 = vld [vmem:[#allocation4] sm:$0xf]
    %v150 = vld [vmem:[#allocation4 + $0x4] sm:$0xf]
    %v151 = vld [vmem:[#allocation4 + $0x8] sm:$0xf]
    %v152 = vld [vmem:[#allocation4 + $0xc] sm:$0xf]
    %v153 = vld [vmem:[#allocation4 + $0x10] sm:$0xf]
    %v154 = vld [vmem:[#allocation4 + $0x14] sm:$0xf]
    %v155 = vld [vmem:[#allocation4 + $0x18] sm:$0xf]
    %v156 = vld [vmem:[#allocation4 + $0x1c] sm:$0xf]
    %v158 = vlaneseq
    %v159 = vshrl.u32 %v158, 7
    %v160 = vsub.s32 0, %v159
    %v161 = vrot.slane %v148, %v160
    %v171 = vunpack.c.l.b16 %v149
    %v172 = vunpack.c.l.b16 %v150
    %v173 = vunpack.c.l.b16 %v151
    %v174 = vunpack.c.l.b16 %v152
    %v175 = vunpack.c.l.b16 %v153
    %v176 = vunpack.c.l.b16 %v154
    %v177 = vunpack.c.l.b16 %v155
    %v178 = vunpack.c.l.b16 %v156
    %v179 = vpack.c.b16 %v172, %v171
    %v180 = vpack.c.b16 %v174, %v173
    %v181 = vpack.c.b16 %v176, %v175
    %v182 = vpack.c.b16 %v178, %v177
    %v185 = vunpack.c.l.b16 %v146
    %v186 = vunpack.c.l.b16 %v147
    %v187 = vpack.c.b16 %v186, %v185
    %vm189 = vcmask 130048
    %v191 = vsel %vm189, %v179, 0
    %v194 = vsel %vm189, %v180, 0
    %v197 = vsel %vm189, %v181, 0
    %v200 = vsel %vm189, %v182, 0
    %202 = vmatprep.subr.bf16.mxu0 0
    %203 = vmatpush1.bf16.msra.mxu0 0
    %204 = vmatprep.subr.bf16.mxu0 0
    %205 = vmatpush1.bf16.msra.mxu0 0
    %206 = vmatprep.subr.bf16.mxu0 0
    %207 = vmatpush1.bf16.msra.mxu0 0
    %208 = vmatprep.subr.bf16.mxu0 0
    %209 = vmatpush1.bf16.msra.mxu0 0
    %210 = vmatprep.subr.bf16.mxu0 0
    %211 = vmatpush1.bf16.msra.mxu0 0
    %212 = vmatprep.subr.bf16.mxu0 0
    %213 = vmatpush1.bf16.msra.mxu0 0
    %214 = vmatprep.subr.bf16.mxu0 0
    %215 = vmatpush1.bf16.msra.mxu0 0
    %216 = vmatprep.subr.bf16.mxu0 0
    %217 = vmatpush1.bf16.msra.mxu0 %v187
    %218 = vmatprep.subr.bf16.mxu0 0
    %219 = vmatpush2.bf16.msra.mxu0 0
    %220 = vmatprep.subr.bf16.mxu0 0
    %221 = vmatpush2.bf16.msra.mxu0 0
    %222 = vmatprep.subr.bf16.mxu0 0
    %223 = vmatpush2.bf16.msra.mxu0 0
    %224 = vmatprep.subr.bf16.mxu0 0
    %225 = vmatpush2.bf16.msra.mxu0 0
    %226 = vmatprep.subr.bf16.mxu0 0
    %227 = vmatpush2.bf16.msra.mxu0 0
    %228 = vmatprep.subr.bf16.mxu0 0
    %229 = vmatpush2.bf16.msra.mxu0 0
    %230 = vmatprep.subr.bf16.mxu0 0
    %231 = vmatpush2.bf16.msra.mxu0 0
    %232 = vmatprep.subr.bf16.mxu0 0
    %233 = vmatpush2.bf16.msra.mxu0 0
    %234 = vmatprep.mubr.bf16.mxu0 0
    %235 = vmatmul.mubr.bf16.gmra.mxu0 %v191
    %v236 = vpop.f32.mrf.mxu0
    %v237 = vadd.f32 %v161, %v236
    %v238 = vpop.f32.mrf.mxu0
    %v239 = vpop.f32.mrf.mxu0
    %v240 = vadd.f32 %v161, %v239
    %v241 = vpop.f32.mrf.mxu0
    %242 = vmatprep.mubr.bf16.mxu0 0
    %243 = vmatmul.mubr.bf16.gmra.mxu0 %v194
    %v244 = vpop.f32.mrf.mxu0
    %v245 = vadd.f32 %v161, %v244
    %v246 = vpop.f32.mrf.mxu0
    %v247 = vpop.f32.mrf.mxu0
    %v248 = vadd.f32 %v161, %v247
    %v249 = vpop.f32.mrf.mxu0
    %250 = vmatprep.mubr.bf16.mxu0 0
    %251 = vmatmul.mubr.bf16.gmra.mxu0 %v197
    %v252 = vpop.f32.mrf.mxu0
    %v253 = vadd.f32 %v161, %v252
    %v254 = vpop.f32.mrf.mxu0
    %v255 = vpop.f32.mrf.mxu0
    %v256 = vadd.f32 %v161, %v255
    %v257 = vpop.f32.mrf.mxu0
    %258 = vmatprep.mubr.bf16.mxu0 0
    %259 = vmatmul.mubr.bf16.gmra.mxu0 %v200
    %v260 = vpop.f32.mrf.mxu0
    %v261 = vadd.f32 %v161, %v260
    %v262 = vpop.f32.mrf.mxu0
    %v263 = vpop.f32.mrf.mxu0
    %v264 = vadd.f32 %v161, %v263
    %v265 = vpop.f32.mrf.mxu0
    %266 = vdwg.mxu0
    %267 = vst [vmem:[#allocation2] sm:$0xff] %v237
    %268 = vst [vmem:[#allocation2 + $0x8] sm:$0xff] %v240
    %269 = vst [vmem:[#allocation2 + $0x10] sm:$0xff] %v245
    %270 = vst [vmem:[#allocation2 + $0x18] sm:$0xff] %v248
    %271 = vst [vmem:[#allocation2 + $0x20] sm:$0xff] %v253
    %272 = vst [vmem:[#allocation2 + $0x28] sm:$0xff] %v256
    %273 = vst [vmem:[#allocation2 + $0x30] sm:$0xff] %v261
    %274 = vst [vmem:[#allocation2 + $0x38] sm:$0xff] %v264
    %v275 = vld [vmem:[%s2] sm:$0xf]
    %v276 = vld [vmem:[%s2 + $0x4] sm:$0xf]
    %v277 = vld [vmem:[%s2 + $0x8] sm:$0xf]
    %v278 = vld [vmem:[%s2 + $0xc] sm:$0xf]
    %v279 = vld [vmem:[#allocation2] sm:$0xff]
    %v284 = vunpack.c.l.b16 %v275
    %v285 = vunpack.c.l.b16 %v276
    %v286 = vunpack.c.l.b16 %v277
    %v287 = vunpack.c.l.b16 %v278
    %v288 = vpack.c.b16 %v285, %v284
    %v289 = vpack.c.b16 %v287, %v286
    %vm292 = vcmask 261120
    %v294 = vsel %vm292, 0, 0
    %296 = vmatprep.subr.bf16.mxu0 0
    %297 = vmatpush1.bf16.msra.mxu0 0
    %298 = vmatprep.subr.bf16.mxu0 0
    %299 = vmatpush1.bf16.msra.mxu0 0
    %300 = vmatprep.subr.bf16.mxu0 0
    %301 = vmatpush1.bf16.msra.mxu0 0
    %302 = vmatprep.subr.bf16.mxu0 0
    %303 = vmatpush1.bf16.msra.mxu0 0
    %304 = vmatprep.subr.bf16.mxu0 0
    %305 = vmatpush1.bf16.msra.mxu0 0
    %306 = vmatprep.subr.bf16.mxu0 0
    %307 = vmatpush1.bf16.msra.mxu0 0
    %308 = vmatprep.subr.bf16.mxu0 0
    %309 = vmatpush1.bf16.msra.mxu0 %v289
    %310 = vmatprep.subr.bf16.mxu0 0
    %311 = vmatpush1.bf16.msra.mxu0 %v288
    %312 = vmatprep.subr.bf16.mxu0 0
    %313 = vmatpush2.bf16.msra.mxu0 0
    %314 = vmatprep.subr.bf16.mxu0 0
    %315 = vmatpush2.bf16.msra.mxu0 0
    %316 = vmatprep.subr.bf16.mxu0 0
    %317 = vmatpush2.bf16.msra.mxu0 0
    %318 = vmatprep.subr.bf16.mxu0 0
    %319 = vmatpush2.bf16.msra.mxu0 0
    %320 = vmatprep.subr.bf16.mxu0 0
    %321 = vmatpush2.bf16.msra.mxu0 0
    %322 = vmatprep.subr.bf16.mxu0 0
    %323 = vmatpush2.bf16.msra.mxu0 0
    %324 = vmatprep.subr.bf16.mxu0 0
    %325 = vmatpush2.bf16.msra.mxu0 0
    %326 = vmatprep.subr.bf16.mxu0 0
    %327 = vmatpush2.bf16.msra.mxu0 0
    %328 = vmatprep.mubr.bf16.mxu0 0
    %329 = vmatmul.mubr.bf16.gmra.mxu0 %v294
    %v330 = vpop.f32.mrf.mxu0
    %v331 = vadd.f32 0.0, %v330
    %v332 = vpop.f32.mrf.mxu0
    %v333 = vpop.f32.mrf.mxu0
    %v334 = vpop.f32.mrf.mxu0
    %335 = vdwg.mxu0
    %v336 = vadd.f32 %v279, %v331
    %v337 = vxor.u32 %v336, 2147483648
    %v338 = vmul.f32 %v337, 1.442695
    %v339 = vpow.pop %v338
    %v340 = vadd.f32 %v339, 1.0
    %v341 = vrcp.pop %v340
    %v342 = vmul.f32 1.0, %v341
    %v343 = vmul.f32 %v342, 2.0
    %v344 = vsub.f32 %v343, 1.0
    %v345 = vmul.f32 %v342, 0.0
    %347 = vrot.lane.b32.xlu0 %v344, 32
    %v348 = vpop.permute.xlu0 %347
    %v350 = vmul.f32 %v342, %v348
    %352 = vrot.lane.b32.xlu0 %v350, 32
    %v353 = vpop.permute.xlu0 %352
    %v355 = vadd.f32 %v345, %v353
    %v356 = vtanh.pop %v355
    %358 = vrot.lane.b32.xlu0 %v356, 32
    %v359 = vpop.permute.xlu0 %358
    %v361 = vmul.f32 %v342, %v359
    %v362 = vpack.c.bf16 %v361, %v361
    %v364 = vunpack.c.l.b16 %v362
    %v365 = vpack.c.b16 %v364, %v364
    %366 = vrot.lane.b32.xlu0 %v365, 64
    %v367 = vpop.permute.xlu0 %366
    %vm369 = vcmask 257024
    %370 = vst.msk [vmem:[#allocation3] sm:$0xf] %vm369, %v367
    %s371 = scalar_lea.vmem [#allocation2], 8
    %v372 = vld [vmem:[%s371] sm:$0xff]
    %373 = vrot.lane.b32.xlu0 %v362, 64
    %v374 = vpop.permute.xlu0 %373
    %v376 = vsel %vm292, %v374, 0
    %378 = vmatprep.subr.bf16.mxu0 0
    %379 = vmatpush1.bf16.msra.mxu0 0
    %380 = vmatprep.subr.bf16.mxu0 0
    %381 = vmatpush1.bf16.msra.mxu0 0
    %382 = vmatprep.subr.bf16.mxu0 0
    %383 = vmatpush1.bf16.msra.mxu0 0
    %384 = vmatprep.subr.bf16.mxu0 0
    %385 = vmatpush1.bf16.msra.mxu0 0
    %386 = vmatprep.subr.bf16.mxu0 0
    %387 = vmatpush1.bf16.msra.mxu0 0
    %388 = vmatprep.subr.bf16.mxu0 0
    %389 = vmatpush1.bf16.msra.mxu0 0
    %390 = vmatprep.subr.bf16.mxu0 0
    %391 = vmatpush1.bf16.msra.mxu0 %v289
    %392 = vmatprep.subr.bf16.mxu0 0
    %393 = vmatpush1.bf16.msra.mxu0 %v288
    %394 = vmatprep.subr.bf16.mxu0 0
    %395 = vmatpush2.bf16.msra.mxu0 0
    %396 = vmatprep.subr.bf16.mxu0 0
    %397 = vmatpush2.bf16.msra.mxu0 0
    %398 = vmatprep.subr.bf16.mxu0 0
    %399 = vmatpush2.bf16.msra.mxu0 0
    %400 = vmatprep.subr.bf16.mxu0 0
    %401 = vmatpush2.bf16.msra.mxu0 0
    %402 = vmatprep.subr.bf16.mxu0 0
    %403 = vmatpush2.bf16.msra.mxu0 0
    %404 = vmatprep.subr.bf16.mxu0 0
    %405 = vmatpush2.bf16.msra.mxu0 0
    %406 = vmatprep.subr.bf16.mxu0 0
    %407 = vmatpush2.bf16.msra.mxu0 0
    %408 = vmatprep.subr.bf16.mxu0 0
    %409 = vmatpush2.bf16.msra.mxu0 0
    %410 = vmatprep.mubr.bf16.mxu0 0
    %411 = vmatmul.mubr.bf16.gmra.mxu0 %v376
    %v412 = vpop.f32.mrf.mxu0
    %v413 = vadd.f32 0.0, %v412
    %v414 = vpop.f32.mrf.mxu0
    %v415 = vpop.f32.mrf.mxu0
    %v416 = vpop.f32.mrf.mxu0
    %417 = vdwg.mxu0
    %v418 = vadd.f32 %v372, %v413
    %v419 = vxor.u32 %v418, 2147483648
    %v420 = vmul.f32 %v419, 1.442695
    %v421 = vpow.pop %v420
    %v422 = vadd.f32 %v421, 1.0
    %v423 = vrcp.pop %v422
    %v424 = vmul.f32 1.0, %v423
    %v425 = vmul.f32 %v424, 2.0
    %v426 = vsub.f32 %v425, 1.0
    %v427 = vmul.f32 %v424, %v355
    %429 = vrot.lane.b32.xlu0 %v426, 32
    %v430 = vpop.permute.xlu0 %429
    %v432 = vmul.f32 %v424, %v430
    %434 = vrot.lane.b32.xlu0 %v432, 32
    %v435 = vpop.permute.xlu0 %434
    %v437 = vadd.f32 %v427, %v435
    %v438 = vtanh.pop %v437
    %440 = vrot.lane.b32.xlu0 %v438, 32
    %v441 = vpop.permute.xlu0 %440
    %v443 = vmul.f32 %v424, %v441
    %v444 = vpack.c.bf16 %v443, %v443
    %v446 = vunpack.c.l.b16 %v444
    %v447 = vpack.c.b16 %v446, %v446
    %448 = vrot.lane.b32.xlu0 %v447, 64
    %v449 = vpop.permute.xlu0 %448
    %s451 = scalar_lea.vmem [#allocation3], 4
    %452 = vst.msk [vmem:[%s451] sm:$0xf] %vm369, %v449
    %s453 = scalar_lea.vmem [#allocation2], 16
    %v454 = vld [vmem:[%s453] sm:$0xff]
    %455 = vrot.lane.b32.xlu0 %v444, 64
    %v456 = vpop.permute.xlu0 %455
    %v458 = vsel %vm292, %v456, 0
    %460 = vmatprep.subr.bf16.mxu0 0
    %461 = vmatpush1.bf16.msra.mxu0 0
    %462 = vmatprep.subr.bf16.mxu0 0
    %463 = vmatpush1.bf16.msra.mxu0 0
    %464 = vmatprep.subr.bf16.mxu0 0
    %465 = vmatpush1.bf16.msra.mxu0 0
    %466 = vmatprep.subr.bf16.mxu0 0
    %467 = vmatpush1.bf16.msra.mxu0 0
    %468 = vmatprep.subr.bf16.mxu0 0
    %469 = vmatpush1.bf16.msra.mxu0 0
    %470 = vmatprep.subr.bf16.mxu0 0
    %471 = vmatpush1.bf16.msra.mxu0 0
    %472 = vmatprep.subr.bf16.mxu0 0
    %473 = vmatpush1.bf16.msra.mxu0 %v289
    %474 = vmatprep.subr.bf16.mxu0 0
    %475 = vmatpush1.bf16.msra.mxu0 %v288
    %476 = vmatprep.subr.bf16.mxu0 0
    %477 = vmatpush2.bf16.msra.mxu0 0
    %478 = vmatprep.subr.bf16.mxu0 0
    %479 = vmatpush2.bf16.msra.mxu0 0
    %480 = vmatprep.subr.bf16.mxu0 0
    %481 = vmatpush2.bf16.msra.mxu0 0
    %482 = vmatprep.subr.bf16.mxu0 0
    %483 = vmatpush2.bf16.msra.mxu0 0
    %484 = vmatprep.subr.bf16.mxu0 0
    %485 = vmatpush2.bf16.msra.mxu0 0
    %486 = vmatprep.subr.bf16.mxu0 0
    %487 = vmatpush2.bf16.msra.mxu0 0
    %488 = vmatprep.subr.bf16.mxu0 0
    %489 = vmatpush2.bf16.msra.mxu0 0
    %490 = vmatprep.subr.bf16.mxu0 0
    %491 = vmatpush2.bf16.msra.mxu0 0
    %492 = vmatprep.mubr.bf16.mxu0 0
    %493 = vmatmul.mubr.bf16.gmra.mxu0 %v458
    %v494 = vpop.f32.mrf.mxu0
    %v495 = vadd.f32 0.0, %v494
    %v496 = vpop.f32.mrf.mxu0
    %v497 = vpop.f32.mrf.mxu0
    %v498 = vpop.f32.mrf.mxu0
    %499 = vdwg.mxu0
    %v500 = vadd.f32 %v454, %v495
    %v501 = vxor.u32 %v500, 2147483648
    %v502 = vmul.f32 %v501, 1.442695
    %v503 = vpow.pop %v502
    %v504 = vadd.f32 %v503, 1.0
    %v505 = vrcp.pop %v504
    %v506 = vmul.f32 1.0, %v505
    %v507 = vmul.f32 %v506, 2.0
    %v508 = vsub.f32 %v507, 1.0
    %v509 = vmul.f32 %v506, %v437
    %511 = vrot.lane.b32.xlu0 %v508, 32
    %v512 = vpop.permute.xlu0 %511
    %v514 = vmul.f32 %v506, %v512
    %516 = vrot.lane.b32.xlu0 %v514, 32
    %v517 = vpop.permute.xlu0 %516
    %v519 = vadd.f32 %v509, %v517
    %v520 = vtanh.pop %v519
    %522 = vrot.lane.b32.xlu0 %v520, 32
    %v523 = vpop.permute.xlu0 %522
    %v525 = vmul.f32 %v506, %v523
    %v526 = vpack.c.bf16 %v525, %v525
    %v528 = vunpack.c.l.b16 %v526
    %v529 = vpack.c.b16 %v528, %v528
    %530 = vrot.lane.b32.xlu0 %v529, 64
    %v531 = vpop.permute.xlu0 %530
    %s533 = scalar_lea.vmem [#allocation3], 8
    %534 = vst.msk [vmem:[%s533] sm:$0xf] %vm369, %v531
    %s535 = scalar_lea.vmem [#allocation2], 24
    %v536 = vld [vmem:[%s535] sm:$0xff]
    %537 = vrot.lane.b32.xlu0 %v526, 64
    %v538 = vpop.permute.xlu0 %537
    %v540 = vsel %vm292, %v538, 0
    %542 = vmatprep.subr.bf16.mxu0 0
    %543 = vmatpush1.bf16.msra.mxu0 0
    %544 = vmatprep.subr.bf16.mxu0 0
    %545 = vmatpush1.bf16.msra.mxu0 0
    %546 = vmatprep.subr.bf16.mxu0 0
    %547 = vmatpush1.bf16.msra.mxu0 0
    %548 = vmatprep.subr.bf16.mxu0 0
    %549 = vmatpush1.bf16.msra.mxu0 0
    %550 = vmatprep.subr.bf16.mxu0 0
    %551 = vmatpush1.bf16.msra.mxu0 0
    %552 = vmatprep.subr.bf16.mxu0 0
    %553 = vmatpush1.bf16.msra.mxu0 0
    %554 = vmatprep.subr.bf16.mxu0 0
    %555 = vmatpush1.bf16.msra.mxu0 %v289
    %556 = vmatprep.subr.bf16.mxu0 0
    %557 = vmatpush1.bf16.msra.mxu0 %v288
    %558 = vmatprep.subr.bf16.mxu0 0
    %559 = vmatpush2.bf16.msra.mxu0 0
    %560 = vmatprep.subr.bf16.mxu0 0
    %561 = vmatpush2.bf16.msra.mxu0 0
    %562 = vmatprep.subr.bf16.mxu0 0
    %563 = vmatpush2.bf16.msra.mxu0 0
    %564 = vmatprep.subr.bf16.mxu0 0
    %565 = vmatpush2.bf16.msra.mxu0 0
    %566 = vmatprep.subr.bf16.mxu0 0
    %567 = vmatpush2.bf16.msra.mxu0 0
    %568 = vmatprep.subr.bf16.mxu0 0
    %569 = vmatpush2.bf16.msra.mxu0 0
    %570 = vmatprep.subr.bf16.mxu0 0
    %571 = vmatpush2.bf16.msra.mxu0 0
    %572 = vmatprep.subr.bf16.mxu0 0
    %573 = vmatpush2.bf16.msra.mxu0 0
    %574 = vmatprep.mubr.bf16.mxu0 0
    %575 = vmatmul.mubr.bf16.gmra.mxu0 %v540
    %v576 = vpop.f32.mrf.mxu0
    %v577 = vadd.f32 0.0, %v576
    %v578 = vpop.f32.mrf.mxu0
    %v579 = vpop.f32.mrf.mxu0
    %v580 = vpop.f32.mrf.mxu0
    %581 = vdwg.mxu0
    %v582 = vadd.f32 %v536, %v577
    %v583 = vxor.u32 %v582, 2147483648
    %v584 = vmul.f32 %v583, 1.442695
    %v585 = vpow.pop %v584
    %v586 = vadd.f32 %v585, 1.0
    %v587 = vrcp.pop %v586
    %v588 = vmul.f32 1.0, %v587
    %v589 = vmul.f32 %v588, 2.0
    %v590 = vsub.f32 %v589, 1.0
    %v591 = vmul.f32 %v588, %v519
    %593 = vrot.lane.b32.xlu0 %v590, 32
    %v594 = vpop.permute.xlu0 %593
    %v596 = vmul.f32 %v588, %v594
    %598 = vrot.lane.b32.xlu0 %v596, 32
    %v599 = vpop.permute.xlu0 %598
    %v601 = vadd.f32 %v591, %v599
    %v602 = vtanh.pop %v601
    %604 = vrot.lane.b32.xlu0 %v602, 32
    %v605 = vpop.permute.xlu0 %604
    %v607 = vmul.f32 %v588, %v605
    %v608 = vpack.c.bf16 %v607, %v607
    %v610 = vunpack.c.l.b16 %v608
    %v611 = vpack.c.b16 %v610, %v610
    %612 = vrot.lane.b32.xlu0 %v611, 64
    %v613 = vpop.permute.xlu0 %612
    %s615 = scalar_lea.vmem [#allocation3], 12
    %616 = vst.msk [vmem:[%s615] sm:$0xf] %vm369, %v613
    %s617 = scalar_lea.vmem [#allocation2], 32
    %v618 = vld [vmem:[%s617] sm:$0xff]
    %619 = vrot.lane.b32.xlu0 %v608, 64
    %v620 = vpop.permute.xlu0 %619
    %v622 = vsel %vm292, %v620, 0
    %624 = vmatprep.subr.bf16.mxu0 0
    %625 = vmatpush1.bf16.msra.mxu0 0
    %626 = vmatprep.subr.bf16.mxu0 0
    %627 = vmatpush1.bf16.msra.mxu0 0
    %628 = vmatprep.subr.bf16.mxu0 0
    %629 = vmatpush1.bf16.msra.mxu0 0
    %630 = vmatprep.subr.bf16.mxu0 0
    %631 = vmatpush1.bf16.msra.mxu0 0
    %632 = vmatprep.subr.bf16.mxu0 0
    %633 = vmatpush1.bf16.msra.mxu0 0
    %634 = vmatprep.subr.bf16.mxu0 0
    %635 = vmatpush1.bf16.msra.mxu0 0
    %636 = vmatprep.subr.bf16.mxu0 0
    %637 = vmatpush1.bf16.msra.mxu0 %v289
    %638 = vmatprep.subr.bf16.mxu0 0
    %639 = vmatpush1.bf16.msra.mxu0 %v288
    %640 = vmatprep.subr.bf16.mxu0 0
    %641 = vmatpush2.bf16.msra.mxu0 0
    %642 = vmatprep.subr.bf16.mxu0 0
    %643 = vmatpush2.bf16.msra.mxu0 0
    %644 = vmatprep.subr.bf16.mxu0 0
    %645 = vmatpush2.bf16.msra.mxu0 0
    %646 = vmatprep.subr.bf16.mxu0 0
    %647 = vmatpush2.bf16.msra.mxu0 0
    %648 = vmatprep.subr.bf16.mxu0 0
    %649 = vmatpush2.bf16.msra.mxu0 0
    %650 = vmatprep.subr.bf16.mxu0 0
    %651 = vmatpush2.bf16.msra.mxu0 0
    %652 = vmatprep.subr.bf16.mxu0 0
    %653 = vmatpush2.bf16.msra.mxu0 0
    %654 = vmatprep.subr.bf16.mxu0 0
    %655 = vmatpush2.bf16.msra.mxu0 0
    %656 = vmatprep.mubr.bf16.mxu0 0
    %657 = vmatmul.mubr.bf16.gmra.mxu0 %v622
    %v658 = vpop.f32.mrf.mxu0
    %v659 = vadd.f32 0.0, %v658
    %v660 = vpop.f32.mrf.mxu0
    %v661 = vpop.f32.mrf.mxu0
    %v662 = vpop.f32.mrf.mxu0
    %663 = vdwg.mxu0
    %v664 = vadd.f32 %v618, %v659
    %v665 = vxor.u32 %v664, 2147483648
    %v666 = vmul.f32 %v665, 1.442695
    %v667 = vpow.pop %v666
    %v668 = vadd.f32 %v667, 1.0
    %v669 = vrcp.pop %v668
    %v670 = vmul.f32 1.0, %v669
    %v671 = vmul.f32 %v670, 2.0
    %v672 = vsub.f32 %v671, 1.0
    %v673 = vmul.f32 %v670, %v601
    %675 = vrot.lane.b32.xlu0 %v672, 32
    %v676 = vpop.permute.xlu0 %675
    %v678 = vmul.f32 %v670, %v676
    %680 = vrot.lane.b32.xlu0 %v678, 32
    %v681 = vpop.permute.xlu0 %680
    %v683 = vadd.f32 %v673, %v681
    %v684 = vtanh.pop %v683
    %686 = vrot.lane.b32.xlu0 %v684, 32
    %v687 = vpop.permute.xlu0 %686
    %v689 = vmul.f32 %v670, %v687
    %v690 = vpack.c.bf16 %v689, %v689
    %v692 = vunpack.c.l.b16 %v690
    %v693 = vpack.c.b16 %v692, %v692
    %694 = vrot.lane.b32.xlu0 %v693, 64
    %v695 = vpop.permute.xlu0 %694
    %s697 = scalar_lea.vmem [#allocation3], 16
    %698 = vst.msk [vmem:[%s697] sm:$0xf] %vm369, %v695
    %s699 = scalar_lea.vmem [#allocation2], 40
    %v700 = vld [vmem:[%s699] sm:$0xff]
    %701 = vrot.lane.b32.xlu0 %v690, 64
    %v702 = vpop.permute.xlu0 %701
    %v704 = vsel %vm292, %v702, 0
    %706 = vmatprep.subr.bf16.mxu0 0
    %707 = vmatpush1.bf16.msra.mxu0 0
    %708 = vmatprep.subr.bf16.mxu0 0
    %709 = vmatpush1.bf16.msra.mxu0 0
    %710 = vmatprep.subr.bf16.mxu0 0
    %711 = vmatpush1.bf16.msra.mxu0 0
    %712 = vmatprep.subr.bf16.mxu0 0
    %713 = vmatpush1.bf16.msra.mxu0 0
    %714 = vmatprep.subr.bf16.mxu0 0
    %715 = vmatpush1.bf16.msra.mxu0 0
    %716 = vmatprep.subr.bf16.mxu0 0
    %717 = vmatpush1.bf16.msra.mxu0 0
    %718 = vmatprep.subr.bf16.mxu0 0
    %719 = vmatpush1.bf16.msra.mxu0 %v289
    %720 = vmatprep.subr.bf16.mxu0 0
    %721 = vmatpush1.bf16.msra.mxu0 %v288
    %722 = vmatprep.subr.bf16.mxu0 0
    %723 = vmatpush2.bf16.msra.mxu0 0
    %724 = vmatprep.subr.bf16.mxu0 0
    %725 = vmatpush2.bf16.msra.mxu0 0
    %726 = vmatprep.subr.bf16.mxu0 0
    %727 = vmatpush2.bf16.msra.mxu0 0
    %728 = vmatprep.subr.bf16.mxu0 0
    %729 = vmatpush2.bf16.msra.mxu0 0
    %730 = vmatprep.subr.bf16.mxu0 0
    %731 = vmatpush2.bf16.msra.mxu0 0
    %732 = vmatprep.subr.bf16.mxu0 0
    %733 = vmatpush2.bf16.msra.mxu0 0
    %734 = vmatprep.subr.bf16.mxu0 0
    %735 = vmatpush2.bf16.msra.mxu0 0
    %736 = vmatprep.subr.bf16.mxu0 0
    %737 = vmatpush2.bf16.msra.mxu0 0
    %738 = vmatprep.mubr.bf16.mxu0 0
    %739 = vmatmul.mubr.bf16.gmra.mxu0 %v704
    %v740 = vpop.f32.mrf.mxu0
    %v741 = vadd.f32 0.0, %v740
    %v742 = vpop.f32.mrf.mxu0
    %v743 = vpop.f32.mrf.mxu0
    %v744 = vpop.f32.mrf.mxu0
    %745 = vdwg.mxu0
    %v746 = vadd.f32 %v700, %v741
    %v747 = vxor.u32 %v746, 2147483648
    %v748 = vmul.f32 %v747, 1.442695
    %v749 = vpow.pop %v748
    %v750 = vadd.f32 %v749, 1.0
    %v751 = vrcp.pop %v750
    %v752 = vmul.f32 1.0, %v751
    %v753 = vmul.f32 %v752, 2.0
    %v754 = vsub.f32 %v753, 1.0
    %v755 = vmul.f32 %v752, %v683
    %757 = vrot.lane.b32.xlu0 %v754, 32
    %v758 = vpop.permute.xlu0 %757
    %v760 = vmul.f32 %v752, %v758
    %762 = vrot.lane.b32.xlu0 %v760, 32
    %v763 = vpop.permute.xlu0 %762
    %v765 = vadd.f32 %v755, %v763
    %v766 = vtanh.pop %v765
    %768 = vrot.lane.b32.xlu0 %v766, 32
    %v769 = vpop.permute.xlu0 %768
    %v771 = vmul.f32 %v752, %v769
    %v772 = vpack.c.bf16 %v771, %v771
    %v774 = vunpack.c.l.b16 %v772
    %v775 = vpack.c.b16 %v774, %v774
    %776 = vrot.lane.b32.xlu0 %v775, 64
    %v777 = vpop.permute.xlu0 %776
    %s779 = scalar_lea.vmem [#allocation3], 20
    %780 = vst.msk [vmem:[%s779] sm:$0xf] %vm369, %v777
    %s781 = scalar_lea.vmem [#allocation2], 48
    %v782 = vld [vmem:[%s781] sm:$0xff]
    %783 = vrot.lane.b32.xlu0 %v772, 64
    %v784 = vpop.permute.xlu0 %783
    %v786 = vsel %vm292, %v784, 0
    %788 = vmatprep.subr.bf16.mxu0 0
    %789 = vmatpush1.bf16.msra.mxu0 0
    %790 = vmatprep.subr.bf16.mxu0 0
    %791 = vmatpush1.bf16.msra.mxu0 0
    %792 = vmatprep.subr.bf16.mxu0 0
    %793 = vmatpush1.bf16.msra.mxu0 0
    %794 = vmatprep.subr.bf16.mxu0 0
    %795 = vmatpush1.bf16.msra.mxu0 0
    %796 = vmatprep.subr.bf16.mxu0 0
    %797 = vmatpush1.bf16.msra.mxu0 0
    %798 = vmatprep.subr.bf16.mxu0 0
    %799 = vmatpush1.bf16.msra.mxu0 0
    %800 = vmatprep.subr.bf16.mxu0 0
    %801 = vmatpush1.bf16.msra.mxu0 %v289
    %802 = vmatprep.subr.bf16.mxu0 0
    %803 = vmatpush1.bf16.msra.mxu0 %v288
    %804 = vmatprep.subr.bf16.mxu0 0
    %805 = vmatpush2.bf16.msra.mxu0 0
    %806 = vmatprep.subr.bf16.mxu0 0
    %807 = vmatpush2.bf16.msra.mxu0 0
    %808 = vmatprep.subr.bf16.mxu0 0
    %809 = vmatpush2.bf16.msra.mxu0 0
    %810 = vmatprep.subr.bf16.mxu0 0
    %811 = vmatpush2.bf16.msra.mxu0 0
    %812 = vmatprep.subr.bf16.mxu0 0
    %813 = vmatpush2.bf16.msra.mxu0 0
    %814 = vmatprep.subr.bf16.mxu0 0
    %815 = vmatpush2.bf16.msra.mxu0 0
    %816 = vmatprep.subr.bf16.mxu0 0
    %817 = vmatpush2.bf16.msra.mxu0 0
    %818 = vmatprep.subr.bf16.mxu0 0
    %819 = vmatpush2.bf16.msra.mxu0 0
    %820 = vmatprep.mubr.bf16.mxu0 0
    %821 = vmatmul.mubr.bf16.gmra.mxu0 %v786
    %v822 = vpop.f32.mrf.mxu0
    %v823 = vadd.f32 0.0, %v822
    %v824 = vpop.f32.mrf.mxu0
    %v825 = vpop.f32.mrf.mxu0
    %v826 = vpop.f32.mrf.mxu0
    %827 = vdwg.mxu0
    %v828 = vadd.f32 %v782, %v823
    %v829 = vxor.u32 %v828, 2147483648
    %v830 = vmul.f32 %v829, 1.442695
    %v831 = vpow.pop %v830
    %v832 = vadd.f32 %v831, 1.0
    %v833 = vrcp.pop %v832
    %v834 = vmul.f32 1.0, %v833
    %v835 = vmul.f32 %v834, 2.0
    %v836 = vsub.f32 %v835, 1.0
    %v837 = vmul.f32 %v834, %v765
    %839 = vrot.lane.b32.xlu0 %v836, 32
    %v840 = vpop.permute.xlu0 %839
    %v842 = vmul.f32 %v834, %v840
    %844 = vrot.lane.b32.xlu0 %v842, 32
    %v845 = vpop.permute.xlu0 %844
    %v847 = vadd.f32 %v837, %v845
    %v848 = vtanh.pop %v847
    %850 = vrot.lane.b32.xlu0 %v848, 32
    %v851 = vpop.permute.xlu0 %850
    %v853 = vmul.f32 %v834, %v851
    %v854 = vpack.c.bf16 %v853, %v853
    %v856 = vunpack.c.l.b16 %v854
    %v857 = vpack.c.b16 %v856, %v856
    %858 = vrot.lane.b32.xlu0 %v857, 64
    %v859 = vpop.permute.xlu0 %858
    %s861 = scalar_lea.vmem [#allocation3], 24
    %862 = vst.msk [vmem:[%s861] sm:$0xf] %vm369, %v859
    %s863 = scalar_lea.vmem [#allocation2], 56
    %v864 = vld [vmem:[%s863] sm:$0xff]
    %865 = vrot.lane.b32.xlu0 %v854, 64
    %v866 = vpop.permute.xlu0 %865
    %v868 = vsel %vm292, %v866, 0
    %870 = vmatprep.subr.bf16.mxu0 0
    %871 = vmatpush1.bf16.msra.mxu0 0
    %872 = vmatprep.subr.bf16.mxu0 0
    %873 = vmatpush1.bf16.msra.mxu0 0
    %874 = vmatprep.subr.bf16.mxu0 0
    %875 = vmatpush1.bf16.msra.mxu0 0
    %876 = vmatprep.subr.bf16.mxu0 0
    %877 = vmatpush1.bf16.msra.mxu0 0
    %878 = vmatprep.subr.bf16.mxu0 0
    %879 = vmatpush1.bf16.msra.mxu0 0
    %880 = vmatprep.subr.bf16.mxu0 0
    %881 = vmatpush1.bf16.msra.mxu0 0
    %882 = vmatprep.subr.bf16.mxu0 0
    %883 = vmatpush1.bf16.msra.mxu0 %v289
    %884 = vmatprep.subr.bf16.mxu0 0
    %885 = vmatpush1.bf16.msra.mxu0 %v288
    %886 = vmatprep.subr.bf16.mxu0 0
    %887 = vmatpush2.bf16.msra.mxu0 0
    %888 = vmatprep.subr.bf16.mxu0 0
    %889 = vmatpush2.bf16.msra.mxu0 0
    %890 = vmatprep.subr.bf16.mxu0 0
    %891 = vmatpush2.bf16.msra.mxu0 0
    %892 = vmatprep.subr.bf16.mxu0 0
    %893 = vmatpush2.bf16.msra.mxu0 0
    %894 = vmatprep.subr.bf16.mxu0 0
    %895 = vmatpush2.bf16.msra.mxu0 0
    %896 = vmatprep.subr.bf16.mxu0 0
    %897 = vmatpush2.bf16.msra.mxu0 0
    %898 = vmatprep.subr.bf16.mxu0 0
    %899 = vmatpush2.bf16.msra.mxu0 0
    %900 = vmatprep.subr.bf16.mxu0 0
    %901 = vmatpush2.bf16.msra.mxu0 0
    %902 = vmatprep.mubr.bf16.mxu0 0
    %903 = vmatmul.mubr.bf16.gmra.mxu0 %v868
    %v904 = vpop.f32.mrf.mxu0
    %v905 = vadd.f32 0.0, %v904
    %v906 = vpop.f32.mrf.mxu0
    %v907 = vpop.f32.mrf.mxu0
    %v908 = vpop.f32.mrf.mxu0
    %909 = vdwg.mxu0
    %v910 = vadd.f32 %v864, %v905
    %v911 = vxor.u32 %v910, 2147483648
    %v912 = vmul.f32 %v911, 1.442695
    %v913 = vpow.pop %v912
    %v914 = vadd.f32 %v913, 1.0
    %v915 = vrcp.pop %v914
    %v916 = vmul.f32 1.0, %v915
    %v917 = vmul.f32 %v916, 2.0
    %v918 = vsub.f32 %v917, 1.0
    %v919 = vmul.f32 %v916, %v847
    %921 = vrot.lane.b32.xlu0 %v918, 32
    %v922 = vpop.permute.xlu0 %921
    %v924 = vmul.f32 %v916, %v922
    %926 = vrot.lane.b32.xlu0 %v924, 32
    %v927 = vpop.permute.xlu0 %926
    %v929 = vadd.f32 %v919, %v927
    %v930 = vtanh.pop %v929
    %932 = vrot.lane.b32.xlu0 %v930, 32
    %v933 = vpop.permute.xlu0 %932
    %v935 = vmul.f32 %v916, %v933
    %v936 = vpack.c.bf16 %v935, %v935
    %v938 = vunpack.c.l.b16 %v936
    %v939 = vpack.c.b16 %v938, %v938
    %940 = vrot.lane.b32.xlu0 %v939, 64
    %v941 = vpop.permute.xlu0 %940
    %s943 = scalar_lea.vmem [#allocation3], 28
    %944 = vst.msk [vmem:[%s943] sm:$0xf] %vm369, %v941
    %v945 = vld [vmem:[#allocation10] sm:$0xf]
    %v946 = vld [vmem:[#allocation10 + $0x4] sm:$0xf]
    %v947 = vld [vmem:[#allocation10 + $0x8] sm:$0xf]
    %v948 = vld [vmem:[#allocation10 + $0xc] sm:$0xf]
    %v949 = vld [vmem:[#allocation12] sm:$0x1]
    %v950 = vld [vmem:[#allocation3] sm:$0xf]
    %v951 = vld [vmem:[#allocation3 + $0x4] sm:$0xf]
    %v952 = vld [vmem:[#allocation3 + $0x8] sm:$0xf]
    %v953 = vld [vmem:[#allocation3 + $0xc] sm:$0xf]
    %v954 = vld [vmem:[#allocation3 + $0x10] sm:$0xf]
    %v955 = vld [vmem:[#allocation3 + $0x14] sm:$0xf]
    %v956 = vld [vmem:[#allocation3 + $0x18] sm:$0xf]
    %v957 = vld [vmem:[#allocation3 + $0x1c] sm:$0xf]
    %v959 = vlaneseq
    %v960 = vshrl.u32 %v959, 7
    %v961 = vsub.s32 0, %v960
    %v962 = vrot.slane %v949, %v961
    %v972 = vunpack.c.l.b16 %v950
    %v973 = vunpack.c.l.b16 %v951
    %v974 = vunpack.c.l.b16 %v952
    %v975 = vunpack.c.l.b16 %v953
    %v976 = vunpack.c.l.b16 %v954
    %v977 = vunpack.c.l.b16 %v955
    %v978 = vunpack.c.l.b16 %v956
    %v979 = vunpack.c.l.b16 %v957
    %v980 = vpack.c.b16 %v973, %v972
    %v981 = vpack.c.b16 %v975, %v974
    %v982 = vpack.c.b16 %v977, %v976
    %v983 = vpack.c.b16 %v979, %v978
    %v988 = vunpack.c.l.b16 %v945
    %v989 = vunpack.c.l.b16 %v946
    %v990 = vunpack.c.l.b16 %v947
    %v991 = vunpack.c.l.b16 %v948
    %v992 = vpack.c.b16 %v989, %v988
    %v993 = vpack.c.b16 %v991, %v990
    %v997 = vsel %vm292, %v980, 0
    %v1000 = vsel %vm292, %v981, 0
    %v1003 = vsel %vm292, %v982, 0
    %v1006 = vsel %vm292, %v983, 0
    %1008 = vmatprep.subr.bf16.mxu0 0
    %1009 = vmatpush1.bf16.msra.mxu0 0
    %1010 = vmatprep.subr.bf16.mxu0 0
    %1011 = vmatpush1.bf16.msra.mxu0 0
    %1012 = vmatprep.subr.bf16.mxu0 0
    %1013 = vmatpush1.bf16.msra.mxu0 0
    %1014 = vmatprep.subr.bf16.mxu0 0
    %1015 = vmatpush1.bf16.msra.mxu0 0
    %1016 = vmatprep.subr.bf16.mxu0 0
    %1017 = vmatpush1.bf16.msra.mxu0 0
    %1018 = vmatprep.subr.bf16.mxu0 0
    %1019 = vmatpush1.bf16.msra.mxu0 0
    %1020 = vmatprep.subr.bf16.mxu0 0
    %1021 = vmatpush1.bf16.msra.mxu0 %v993
    %1022 = vmatprep.subr.bf16.mxu0 0
    %1023 = vmatpush1.bf16.msra.mxu0 %v992
    %1024 = vmatprep.subr.bf16.mxu0 0
    %1025 = vmatpush2.bf16.msra.mxu0 0
    %1026 = vmatprep.subr.bf16.mxu0 0
    %1027 = vmatpush2.bf16.msra.mxu0 0
    %1028 = vmatprep.subr.bf16.mxu0 0
    %1029 = vmatpush2.bf16.msra.mxu0 0
    %1030 = vmatprep.subr.bf16.mxu0 0
    %1031 = vmatpush2.bf16.msra.mxu0 0
    %1032 = vmatprep.subr.bf16.mxu0 0
    %1033 = vmatpush2.bf16.msra.mxu0 0
    %1034 = vmatprep.subr.bf16.mxu0 0
    %1035 = vmatpush2.bf16.msra.mxu0 0
    %1036 = vmatprep.subr.bf16.mxu0 0
    %1037 = vmatpush2.bf16.msra.mxu0 0
    %1038 = vmatprep.subr.bf16.mxu0 0
    %1039 = vmatpush2.bf16.msra.mxu0 0
    %1040 = vmatprep.mubr.bf16.mxu0 0
    %1041 = vmatmul.mubr.bf16.gmra.mxu0 %v997
    %v1042 = vpop.f32.mrf.mxu0
    %v1043 = vadd.f32 %v962, %v1042
    %v1044 = vpop.f32.mrf.mxu0
    %v1045 = vpop.f32.mrf.mxu0
    %v1046 = vadd.f32 %v962, %v1045
    %v1047 = vpop.f32.mrf.mxu0
    %1048 = vmatprep.mubr.bf16.mxu0 0
    %1049 = vmatmul.mubr.bf16.gmra.mxu0 %v1000
    %v1050 = vpop.f32.mrf.mxu0
    %v1051 = vadd.f32 %v962, %v1050
    %v1052 = vpop.f32.mrf.mxu0
    %v1053 = vpop.f32.mrf.mxu0
    %v1054 = vadd.f32 %v962, %v1053
    %v1055 = vpop.f32.mrf.mxu0
    %1056 = vmatprep.mubr.bf16.mxu0 0
    %1057 = vmatmul.mubr.bf16.gmra.mxu0 %v1003
    %v1058 = vpop.f32.mrf.mxu0
    %v1059 = vadd.f32 %v962, %v1058
    %v1060 = vpop.f32.mrf.mxu0
    %v1061 = vpop.f32.mrf.mxu0
    %v1062 = vadd.f32 %v962, %v1061
    %v1063 = vpop.f32.mrf.mxu0
    %1064 = vmatprep.mubr.bf16.mxu0 0
    %1065 = vmatmul.mubr.bf16.gmra.mxu0 %v1006
    %v1066 = vpop.f32.mrf.mxu0
    %v1067 = vadd.f32 %v962, %v1066
    %v1068 = vpop.f32.mrf.mxu0
    %v1069 = vpop.f32.mrf.mxu0
    %v1070 = vadd.f32 %v962, %v1069
    %v1071 = vpop.f32.mrf.mxu0
    %1072 = vdwg.mxu0
    %1073 = vst [vmem:[#allocation2] sm:$0xff] %v1043
    %1074 = vst [vmem:[#allocation2 + $0x8] sm:$0xff] %v1046
    %1075 = vst [vmem:[#allocation2 + $0x10] sm:$0xff] %v1051
    %1076 = vst [vmem:[#allocation2 + $0x18] sm:$0xff] %v1054
    %1077 = vst [vmem:[#allocation2 + $0x20] sm:$0xff] %v1059
    %1078 = vst [vmem:[#allocation2 + $0x28] sm:$0xff] %v1062
    %1079 = vst [vmem:[#allocation2 + $0x30] sm:$0xff] %v1067
    %1080 = vst [vmem:[#allocation2 + $0x38] sm:$0xff] %v1070
    %v1081 = vld [vmem:[%s5] sm:$0xf]
    %v1082 = vld [vmem:[%s5 + $0x4] sm:$0xf]
    %v1083 = vld [vmem:[%s5 + $0x8] sm:$0xf]
    %v1084 = vld [vmem:[%s5 + $0xc] sm:$0xf]
    %v1085 = vld [vmem:[#allocation2] sm:$0xff]
    %v1090 = vunpack.c.l.b16 %v1081
    %v1091 = vunpack.c.l.b16 %v1082
    %v1092 = vunpack.c.l.b16 %v1083
    %v1093 = vunpack.c.l.b16 %v1084
    %v1094 = vpack.c.b16 %v1091, %v1090
    %v1095 = vpack.c.b16 %v1093, %v1092
    %1098 = vmatprep.subr.bf16.mxu0 0
    %1099 = vmatpush1.bf16.msra.mxu0 0
    %1100 = vmatprep.subr.bf16.mxu0 0
    %1101 = vmatpush1.bf16.msra.mxu0 0
    %1102 = vmatprep.subr.bf16.mxu0 0
    %1103 = vmatpush1.bf16.msra.mxu0 0
    %1104 = vmatprep.subr.bf16.mxu0 0
    %1105 = vmatpush1.bf16.msra.mxu0 0
    %1106 = vmatprep.subr.bf16.mxu0 0
    %1107 = vmatpush1.bf16.msra.mxu0 0
    %1108 = vmatprep.subr.bf16.mxu0 0
    %1109 = vmatpush1.bf16.msra.mxu0 0
    %1110 = vmatprep.subr.bf16.mxu0 0
    %1111 = vmatpush1.bf16.msra.mxu0 %v1095
    %1112 = vmatprep.subr.bf16.mxu0 0
    %1113 = vmatpush1.bf16.msra.mxu0 %v1094
    %1114 = vmatprep.subr.bf16.mxu0 0
    %1115 = vmatpush2.bf16.msra.mxu0 0
    %1116 = vmatprep.subr.bf16.mxu0 0
    %1117 = vmatpush2.bf16.msra.mxu0 0
    %1118 = vmatprep.subr.bf16.mxu0 0
    %1119 = vmatpush2.bf16.msra.mxu0 0
    %1120 = vmatprep.subr.bf16.mxu0 0
    %1121 = vmatpush2.bf16.msra.mxu0 0
    %1122 = vmatprep.subr.bf16.mxu0 0
    %1123 = vmatpush2.bf16.msra.mxu0 0
    %1124 = vmatprep.subr.bf16.mxu0 0
    %1125 = vmatpush2.bf16.msra.mxu0 0
    %1126 = vmatprep.subr.bf16.mxu0 0
    %1127 = vmatpush2.bf16.msra.mxu0 0
    %1128 = vmatprep.subr.bf16.mxu0 0
    %1129 = vmatpush2.bf16.msra.mxu0 0
    %1130 = vmatprep.mubr.bf16.mxu0 0
    %1131 = vmatmul.mubr.bf16.gmra.mxu0 %v294
    %v1132 = vpop.f32.mrf.mxu0
    %v1133 = vadd.f32 0.0, %v1132
    %v1134 = vpop.f32.mrf.mxu0
    %v1135 = vpop.f32.mrf.mxu0
    %v1136 = vpop.f32.mrf.mxu0
    %1137 = vdwg.mxu0
    %v1138 = vadd.f32 %v1085, %v1133
    %v1139 = vxor.u32 %v1138, 2147483648
    %v1140 = vmul.f32 %v1139, 1.442695
    %v1141 = vpow.pop %v1140
    %v1142 = vadd.f32 %v1141, 1.0
    %v1143 = vrcp.pop %v1142
    %v1144 = vmul.f32 1.0, %v1143
    %v1145 = vmul.f32 %v1144, 2.0
    %v1146 = vsub.f32 %v1145, 1.0
    %v1147 = vmul.f32 %v1144, 0.0
    %1149 = vrot.lane.b32.xlu0 %v1146, 32
    %v1150 = vpop.permute.xlu0 %1149
    %v1152 = vmul.f32 %v1144, %v1150
    %1154 = vrot.lane.b32.xlu0 %v1152, 32
    %v1155 = vpop.permute.xlu0 %1154
    %v1157 = vadd.f32 %v1147, %v1155
    %v1158 = vtanh.pop %v1157
    %1160 = vrot.lane.b32.xlu0 %v1158, 32
    %v1161 = vpop.permute.xlu0 %1160
    %v1163 = vmul.f32 %v1144, %v1161
    %v1164 = vpack.c.bf16 %v1163, %v1163
    %v1166 = vunpack.c.l.b16 %v1164
    %v1167 = vpack.c.b16 %v1166, %v1166
    %1168 = vrot.lane.b32.xlu0 %v1167, 64
    %v1169 = vpop.permute.xlu0 %1168
    %1171 = vst.msk [vmem:[#allocation3] sm:$0xf] %vm369, %v1169
    %v1172 = vld [vmem:[%s371] sm:$0xff]
    %1173 = vrot.lane.b32.xlu0 %v1164, 64
    %v1174 = vpop.permute.xlu0 %1173
    %v1176 = vsel %vm292, %v1174, 0
    %1178 = vmatprep.subr.bf16.mxu0 0
    %1179 = vmatpush1.bf16.msra.mxu0 0
    %1180 = vmatprep.subr.bf16.mxu0 0
    %1181 = vmatpush1.bf16.msra.mxu0 0
    %1182 = vmatprep.subr.bf16.mxu0 0
    %1183 = vmatpush1.bf16.msra.mxu0 0
    %1184 = vmatprep.subr.bf16.mxu0 0
    %1185 = vmatpush1.bf16.msra.mxu0 0
    %1186 = vmatprep.subr.bf16.mxu0 0
    %1187 = vmatpush1.bf16.msra.mxu0 0
    %1188 = vmatprep.subr.bf16.mxu0 0
    %1189 = vmatpush1.bf16.msra.mxu0 0
    %1190 = vmatprep.subr.bf16.mxu0 0
    %1191 = vmatpush1.bf16.msra.mxu0 %v1095
    %1192 = vmatprep.subr.bf16.mxu0 0
    %1193 = vmatpush1.bf16.msra.mxu0 %v1094
    %1194 = vmatprep.subr.bf16.mxu0 0
    %1195 = vmatpush2.bf16.msra.mxu0 0
    %1196 = vmatprep.subr.bf16.mxu0 0
    %1197 = vmatpush2.bf16.msra.mxu0 0
    %1198 = vmatprep.subr.bf16.mxu0 0
    %1199 = vmatpush2.bf16.msra.mxu0 0
    %1200 = vmatprep.subr.bf16.mxu0 0
    %1201 = vmatpush2.bf16.msra.mxu0 0
    %1202 = vmatprep.subr.bf16.mxu0 0
    %1203 = vmatpush2.bf16.msra.mxu0 0
    %1204 = vmatprep.subr.bf16.mxu0 0
    %1205 = vmatpush2.bf16.msra.mxu0 0
    %1206 = vmatprep.subr.bf16.mxu0 0
    %1207 = vmatpush2.bf16.msra.mxu0 0
    %1208 = vmatprep.subr.bf16.mxu0 0
    %1209 = vmatpush2.bf16.msra.mxu0 0
    %1210 = vmatprep.mubr.bf16.mxu0 0
    %1211 = vmatmul.mubr.bf16.gmra.mxu0 %v1176
    %v1212 = vpop.f32.mrf.mxu0
    %v1213 = vadd.f32 0.0, %v1212
    %v1214 = vpop.f32.mrf.mxu0
    %v1215 = vpop.f32.mrf.mxu0
    %v1216 = vpop.f32.mrf.mxu0
    %1217 = vdwg.mxu0
    %v1218 = vadd.f32 %v1172, %v1213
    %v1219 = vxor.u32 %v1218, 2147483648
    %v1220 = vmul.f32 %v1219, 1.442695
    %v1221 = vpow.pop %v1220
    %v1222 = vadd.f32 %v1221, 1.0
    %v1223 = vrcp.pop %v1222
    %v1224 = vmul.f32 1.0, %v1223
    %v1225 = vmul.f32 %v1224, 2.0
    %v1226 = vsub.f32 %v1225, 1.0
    %v1227 = vmul.f32 %v1224, %v1157
    %1229 = vrot.lane.b32.xlu0 %v1226, 32
    %v1230 = vpop.permute.xlu0 %1229
    %v1232 = vmul.f32 %v1224, %v1230
    %1234 = vrot.lane.b32.xlu0 %v1232, 32
    %v1235 = vpop.permute.xlu0 %1234
    %v1237 = vadd.f32 %v1227, %v1235
    %v1238 = vtanh.pop %v1237
    %1240 = vrot.lane.b32.xlu0 %v1238, 32
    %v1241 = vpop.permute.xlu0 %1240
    %v1243 = vmul.f32 %v1224, %v1241
    %v1244 = vpack.c.bf16 %v1243, %v1243
    %v1246 = vunpack.c.l.b16 %v1244
    %v1247 = vpack.c.b16 %v1246, %v1246
    %1248 = vrot.lane.b32.xlu0 %v1247, 64
    %v1249 = vpop.permute.xlu0 %1248
    %1251 = vst.msk [vmem:[%s451] sm:$0xf] %vm369, %v1249
    %v1252 = vld [vmem:[%s453] sm:$0xff]
    %1253 = vrot.lane.b32.xlu0 %v1244, 64
    %v1254 = vpop.permute.xlu0 %1253
    %v1256 = vsel %vm292, %v1254, 0
    %1258 = vmatprep.subr.bf16.mxu0 0
    %1259 = vmatpush1.bf16.msra.mxu0 0
    %1260 = vmatprep.subr.bf16.mxu0 0
    %1261 = vmatpush1.bf16.msra.mxu0 0
    %1262 = vmatprep.subr.bf16.mxu0 0
    %1263 = vmatpush1.bf16.msra.mxu0 0
    %1264 = vmatprep.subr.bf16.mxu0 0
    %1265 = vmatpush1.bf16.msra.mxu0 0
    %1266 = vmatprep.subr.bf16.mxu0 0
    %1267 = vmatpush1.bf16.msra.mxu0 0
    %1268 = vmatprep.subr.bf16.mxu0 0
    %1269 = vmatpush1.bf16.msra.mxu0 0
    %1270 = vmatprep.subr.bf16.mxu0 0
    %1271 = vmatpush1.bf16.msra.mxu0 %v1095
    %1272 = vmatprep.subr.bf16.mxu0 0
    %1273 = vmatpush1.bf16.msra.mxu0 %v1094
    %1274 = vmatprep.subr.bf16.mxu0 0
    %1275 = vmatpush2.bf16.msra.mxu0 0
    %1276 = vmatprep.subr.bf16.mxu0 0
    %1277 = vmatpush2.bf16.msra.mxu0 0
    %1278 = vmatprep.subr.bf16.mxu0 0
    %1279 = vmatpush2.bf16.msra.mxu0 0
    %1280 = vmatprep.subr.bf16.mxu0 0
    %1281 = vmatpush2.bf16.msra.mxu0 0
    %1282 = vmatprep.subr.bf16.mxu0 0
    %1283 = vmatpush2.bf16.msra.mxu0 0
    %1284 = vmatprep.subr.bf16.mxu0 0
    %1285 = vmatpush2.bf16.msra.mxu0 0
    %1286 = vmatprep.subr.bf16.mxu0 0
    %1287 = vmatpush2.bf16.msra.mxu0 0
    %1288 = vmatprep.subr.bf16.mxu0 0
    %1289 = vmatpush2.bf16.msra.mxu0 0
    %1290 = vmatprep.mubr.bf16.mxu0 0
    %1291 = vmatmul.mubr.bf16.gmra.mxu0 %v1256
    %v1292 = vpop.f32.mrf.mxu0
    %v1293 = vadd.f32 0.0, %v1292
    %v1294 = vpop.f32.mrf.mxu0
    %v1295 = vpop.f32.mrf.mxu0
    %v1296 = vpop.f32.mrf.mxu0
    %1297 = vdwg.mxu0
    %v1298 = vadd.f32 %v1252, %v1293
    %v1299 = vxor.u32 %v1298, 2147483648
    %v1300 = vmul.f32 %v1299, 1.442695
    %v1301 = vpow.pop %v1300
    %v1302 = vadd.f32 %v1301, 1.0
    %v1303 = vrcp.pop %v1302
    %v1304 = vmul.f32 1.0, %v1303
    %v1305 = vmul.f32 %v1304, 2.0
    %v1306 = vsub.f32 %v1305, 1.0
    %v1307 = vmul.f32 %v1304, %v1237
    %1309 = vrot.lane.b32.xlu0 %v1306, 32
    %v1310 = vpop.permute.xlu0 %1309
    %v1312 = vmul.f32 %v1304, %v1310
    %1314 = vrot.lane.b32.xlu0 %v1312, 32
    %v1315 = vpop.permute.xlu0 %1314
    %v1317 = vadd.f32 %v1307, %v1315
    %v1318 = vtanh.pop %v1317
    %1320 = vrot.lane.b32.xlu0 %v1318, 32
    %v1321 = vpop.permute.xlu0 %1320
    %v1323 = vmul.f32 %v1304, %v1321
    %v1324 = vpack.c.bf16 %v1323, %v1323
    %v1326 = vunpack.c.l.b16 %v1324
    %v1327 = vpack.c.b16 %v1326, %v1326
    %1328 = vrot.lane.b32.xlu0 %v1327, 64
    %v1329 = vpop.permute.xlu0 %1328
    %1331 = vst.msk [vmem:[%s533] sm:$0xf] %vm369, %v1329
    %v1332 = vld [vmem:[%s535] sm:$0xff]
    %1333 = vrot.lane.b32.xlu0 %v1324, 64
    %v1334 = vpop.permute.xlu0 %1333
    %v1336 = vsel %vm292, %v1334, 0
    %1338 = vmatprep.subr.bf16.mxu0 0
    %1339 = vmatpush1.bf16.msra.mxu0 0
    %1340 = vmatprep.subr.bf16.mxu0 0
    %1341 = vmatpush1.bf16.msra.mxu0 0
    %1342 = vmatprep.subr.bf16.mxu0 0
    %1343 = vmatpush1.bf16.msra.mxu0 0
    %1344 = vmatprep.subr.bf16.mxu0 0
    %1345 = vmatpush1.bf16.msra.mxu0 0
    %1346 = vmatprep.subr.bf16.mxu0 0
    %1347 = vmatpush1.bf16.msra.mxu0 0
    %1348 = vmatprep.subr.bf16.mxu0 0
    %1349 = vmatpush1.bf16.msra.mxu0 0
    %1350 = vmatprep.subr.bf16.mxu0 0
    %1351 = vmatpush1.bf16.msra.mxu0 %v1095
    %1352 = vmatprep.subr.bf16.mxu0 0
    %1353 = vmatpush1.bf16.msra.mxu0 %v1094
    %1354 = vmatprep.subr.bf16.mxu0 0
    %1355 = vmatpush2.bf16.msra.mxu0 0
    %1356 = vmatprep.subr.bf16.mxu0 0
    %1357 = vmatpush2.bf16.msra.mxu0 0
    %1358 = vmatprep.subr.bf16.mxu0 0
    %1359 = vmatpush2.bf16.msra.mxu0 0
    %1360 = vmatprep.subr.bf16.mxu0 0
    %1361 = vmatpush2.bf16.msra.mxu0 0
    %1362 = vmatprep.subr.bf16.mxu0 0
    %1363 = vmatpush2.bf16.msra.mxu0 0
    %1364 = vmatprep.subr.bf16.mxu0 0
    %1365 = vmatpush2.bf16.msra.mxu0 0
    %1366 = vmatprep.subr.bf16.mxu0 0
    %1367 = vmatpush2.bf16.msra.mxu0 0
    %1368 = vmatprep.subr.bf16.mxu0 0
    %1369 = vmatpush2.bf16.msra.mxu0 0
    %1370 = vmatprep.mubr.bf16.mxu0 0
    %1371 = vmatmul.mubr.bf16.gmra.mxu0 %v1336
    %v1372 = vpop.f32.mrf.mxu0
    %v1373 = vadd.f32 0.0, %v1372
    %v1374 = vpop.f32.mrf.mxu0
    %v1375 = vpop.f32.mrf.mxu0
    %v1376 = vpop.f32.mrf.mxu0
    %1377 = vdwg.mxu0
    %v1378 = vadd.f32 %v1332, %v1373
    %v1379 = vxor.u32 %v1378, 2147483648
    %v1380 = vmul.f32 %v1379, 1.442695
    %v1381 = vpow.pop %v1380
    %v1382 = vadd.f32 %v1381, 1.0
    %v1383 = vrcp.pop %v1382
    %v1384 = vmul.f32 1.0, %v1383
    %v1385 = vmul.f32 %v1384, 2.0
    %v1386 = vsub.f32 %v1385, 1.0
    %v1387 = vmul.f32 %v1384, %v1317
    %1389 = vrot.lane.b32.xlu0 %v1386, 32
    %v1390 = vpop.permute.xlu0 %1389
    %v1392 = vmul.f32 %v1384, %v1390
    %1394 = vrot.lane.b32.xlu0 %v1392, 32
    %v1395 = vpop.permute.xlu0 %1394
    %v1397 = vadd.f32 %v1387, %v1395
    %v1398 = vtanh.pop %v1397
    %1400 = vrot.lane.b32.xlu0 %v1398, 32
    %v1401 = vpop.permute.xlu0 %1400
    %v1403 = vmul.f32 %v1384, %v1401
    %v1404 = vpack.c.bf16 %v1403, %v1403
    %v1406 = vunpack.c.l.b16 %v1404
    %v1407 = vpack.c.b16 %v1406, %v1406
    %1408 = vrot.lane.b32.xlu0 %v1407, 64
    %v1409 = vpop.permute.xlu0 %1408
    %1411 = vst.msk [vmem:[%s615] sm:$0xf] %vm369, %v1409
    %v1412 = vld [vmem:[%s617] sm:$0xff]
    %1413 = vrot.lane.b32.xlu0 %v1404, 64
    %v1414 = vpop.permute.xlu0 %1413
    %v1416 = vsel %vm292, %v1414, 0
    %1418 = vmatprep.subr.bf16.mxu0 0
    %1419 = vmatpush1.bf16.msra.mxu0 0
    %1420 = vmatprep.subr.bf16.mxu0 0
    %1421 = vmatpush1.bf16.msra.mxu0 0
    %1422 = vmatprep.subr.bf16.mxu0 0
    %1423 = vmatpush1.bf16.msra.mxu0 0
    %1424 = vmatprep.subr.bf16.mxu0 0
    %1425 = vmatpush1.bf16.msra.mxu0 0
    %1426 = vmatprep.subr.bf16.mxu0 0
    %1427 = vmatpush1.bf16.msra.mxu0 0
    %1428 = vmatprep.subr.bf16.mxu0 0
    %1429 = vmatpush1.bf16.msra.mxu0 0
    %1430 = vmatprep.subr.bf16.mxu0 0
    %1431 = vmatpush1.bf16.msra.mxu0 %v1095
    %1432 = vmatprep.subr.bf16.mxu0 0
    %1433 = vmatpush1.bf16.msra.mxu0 %v1094
    %1434 = vmatprep.subr.bf16.mxu0 0
    %1435 = vmatpush2.bf16.msra.mxu0 0
    %1436 = vmatprep.subr.bf16.mxu0 0
    %1437 = vmatpush2.bf16.msra.mxu0 0
    %1438 = vmatprep.subr.bf16.mxu0 0
    %1439 = vmatpush2.bf16.msra.mxu0 0
    %1440 = vmatprep.subr.bf16.mxu0 0
    %1441 = vmatpush2.bf16.msra.mxu0 0
    %1442 = vmatprep.subr.bf16.mxu0 0
    %1443 = vmatpush2.bf16.msra.mxu0 0
    %1444 = vmatprep.subr.bf16.mxu0 0
    %1445 = vmatpush2.bf16.msra.mxu0 0
    %1446 = vmatprep.subr.bf16.mxu0 0
    %1447 = vmatpush2.bf16.msra.mxu0 0
    %1448 = vmatprep.subr.bf16.mxu0 0
    %1449 = vmatpush2.bf16.msra.mxu0 0
    %1450 = vmatprep.mubr.bf16.mxu0 0
    %1451 = vmatmul.mubr.bf16.gmra.mxu0 %v1416
    %v1452 = vpop.f32.mrf.mxu0
    %v1453 = vadd.f32 0.0, %v1452
    %v1454 = vpop.f32.mrf.mxu0
    %v1455 = vpop.f32.mrf.mxu0
    %v1456 = vpop.f32.mrf.mxu0
    %1457 = vdwg.mxu0
    %v1458 = vadd.f32 %v1412, %v1453
    %v1459 = vxor.u32 %v1458, 2147483648
    %v1460 = vmul.f32 %v1459, 1.442695
    %v1461 = vpow.pop %v1460
    %v1462 = vadd.f32 %v1461, 1.0
    %v1463 = vrcp.pop %v1462
    %v1464 = vmul.f32 1.0, %v1463
    %v1465 = vmul.f32 %v1464, 2.0
    %v1466 = vsub.f32 %v1465, 1.0
    %v1467 = vmul.f32 %v1464, %v1397
    %1469 = vrot.lane.b32.xlu0 %v1466, 32
    %v1470 = vpop.permute.xlu0 %1469
    %v1472 = vmul.f32 %v1464, %v1470
    %1474 = vrot.lane.b32.xlu0 %v1472, 32
    %v1475 = vpop.permute.xlu0 %1474
    %v1477 = vadd.f32 %v1467, %v1475
    %v1478 = vtanh.pop %v1477
    %1480 = vrot.lane.b32.xlu0 %v1478, 32
    %v1481 = vpop.permute.xlu0 %1480
    %v1483 = vmul.f32 %v1464, %v1481
    %v1484 = vpack.c.bf16 %v1483, %v1483
    %v1486 = vunpack.c.l.b16 %v1484
    %v1487 = vpack.c.b16 %v1486, %v1486
    %1488 = vrot.lane.b32.xlu0 %v1487, 64
    %v1489 = vpop.permute.xlu0 %1488
    %1491 = vst.msk [vmem:[%s697] sm:$0xf] %vm369, %v1489
    %v1492 = vld [vmem:[%s699] sm:$0xff]
    %1493 = vrot.lane.b32.xlu0 %v1484, 64
    %v1494 = vpop.permute.xlu0 %1493
    %v1496 = vsel %vm292, %v1494, 0
    %1498 = vmatprep.subr.bf16.mxu0 0
    %1499 = vmatpush1.bf16.msra.mxu0 0
    %1500 = vmatprep.subr.bf16.mxu0 0
    %1501 = vmatpush1.bf16.msra.mxu0 0
    %1502 = vmatprep.subr.bf16.mxu0 0
    %1503 = vmatpush1.bf16.msra.mxu0 0
    %1504 = vmatprep.subr.bf16.mxu0 0
    %1505 = vmatpush1.bf16.msra.mxu0 0
    %1506 = vmatprep.subr.bf16.mxu0 0
    %1507 = vmatpush1.bf16.msra.mxu0 0
    %1508 = vmatprep.subr.bf16.mxu0 0
    %1509 = vmatpush1.bf16.msra.mxu0 0
    %1510 = vmatprep.subr.bf16.mxu0 0
    %1511 = vmatpush1.bf16.msra.mxu0 %v1095
    %1512 = vmatprep.subr.bf16.mxu0 0
    %1513 = vmatpush1.bf16.msra.mxu0 %v1094
    %1514 = vmatprep.subr.bf16.mxu0 0
    %1515 = vmatpush2.bf16.msra.mxu0 0
    %1516 = vmatprep.subr.bf16.mxu0 0
    %1517 = vmatpush2.bf16.msra.mxu0 0
    %1518 = vmatprep.subr.bf16.mxu0 0
    %1519 = vmatpush2.bf16.msra.mxu0 0
    %1520 = vmatprep.subr.bf16.mxu0 0
    %1521 = vmatpush2.bf16.msra.mxu0 0
    %1522 = vmatprep.subr.bf16.mxu0 0
    %1523 = vmatpush2.bf16.msra.mxu0 0
    %1524 = vmatprep.subr.bf16.mxu0 0
    %1525 = vmatpush2.bf16.msra.mxu0 0
    %1526 = vmatprep.subr.bf16.mxu0 0
    %1527 = vmatpush2.bf16.msra.mxu0 0
    %1528 = vmatprep.subr.bf16.mxu0 0
    %1529 = vmatpush2.bf16.msra.mxu0 0
    %1530 = vmatprep.mubr.bf16.mxu0 0
    %1531 = vmatmul.mubr.bf16.gmra.mxu0 %v1496
    %v1532 = vpop.f32.mrf.mxu0
    %v1533 = vadd.f32 0.0, %v1532
    %v1534 = vpop.f32.mrf.mxu0
    %v1535 = vpop.f32.mrf.mxu0
    %v1536 = vpop.f32.mrf.mxu0
    %1537 = vdwg.mxu0
    %v1538 = vadd.f32 %v1492, %v1533
    %v1539 = vxor.u32 %v1538, 2147483648
    %v1540 = vmul.f32 %v1539, 1.442695
    %v1541 = vpow.pop %v1540
    %v1542 = vadd.f32 %v1541, 1.0
    %v1543 = vrcp.pop %v1542
    %v1544 = vmul.f32 1.0, %v1543
    %v1545 = vmul.f32 %v1544, 2.0
    %v1546 = vsub.f32 %v1545, 1.0
    %v1547 = vmul.f32 %v1544, %v1477
    %1549 = vrot.lane.b32.xlu0 %v1546, 32
    %v1550 = vpop.permute.xlu0 %1549
    %v1552 = vmul.f32 %v1544, %v1550
    %1554 = vrot.lane.b32.xlu0 %v1552, 32
    %v1555 = vpop.permute.xlu0 %1554
    %v1557 = vadd.f32 %v1547, %v1555
    %v1558 = vtanh.pop %v1557
    %1560 = vrot.lane.b32.xlu0 %v1558, 32
    %v1561 = vpop.permute.xlu0 %1560
    %v1563 = vmul.f32 %v1544, %v1561
    %v1564 = vpack.c.bf16 %v1563, %v1563
    %v1566 = vunpack.c.l.b16 %v1564
    %v1567 = vpack.c.b16 %v1566, %v1566
    %1568 = vrot.lane.b32.xlu0 %v1567, 64
    %v1569 = vpop.permute.xlu0 %1568
    %1571 = vst.msk [vmem:[%s779] sm:$0xf] %vm369, %v1569
    %v1572 = vld [vmem:[%s781] sm:$0xff]
    %1573 = vrot.lane.b32.xlu0 %v1564, 64
    %v1574 = vpop.permute.xlu0 %1573
    %v1576 = vsel %vm292, %v1574, 0
    %1578 = vmatprep.subr.bf16.mxu0 0
    %1579 = vmatpush1.bf16.msra.mxu0 0
    %1580 = vmatprep.subr.bf16.mxu0 0
    %1581 = vmatpush1.bf16.msra.mxu0 0
    %1582 = vmatprep.subr.bf16.mxu0 0
    %1583 = vmatpush1.bf16.msra.mxu0 0
    %1584 = vmatprep.subr.bf16.mxu0 0
    %1585 = vmatpush1.bf16.msra.mxu0 0
    %1586 = vmatprep.subr.bf16.mxu0 0
    %1587 = vmatpush1.bf16.msra.mxu0 0
    %1588 = vmatprep.subr.bf16.mxu0 0
    %1589 = vmatpush1.bf16.msra.mxu0 0
    %1590 = vmatprep.subr.bf16.mxu0 0
    %1591 = vmatpush1.bf16.msra.mxu0 %v1095
    %1592 = vmatprep.subr.bf16.mxu0 0
    %1593 = vmatpush1.bf16.msra.mxu0 %v1094
    %1594 = vmatprep.subr.bf16.mxu0 0
    %1595 = vmatpush2.bf16.msra.mxu0 0
    %1596 = vmatprep.subr.bf16.mxu0 0
    %1597 = vmatpush2.bf16.msra.mxu0 0
    %1598 = vmatprep.subr.bf16.mxu0 0
    %1599 = vmatpush2.bf16.msra.mxu0 0
    %1600 = vmatprep.subr.bf16.mxu0 0
    %1601 = vmatpush2.bf16.msra.mxu0 0
    %1602 = vmatprep.subr.bf16.mxu0 0
    %1603 = vmatpush2.bf16.msra.mxu0 0
    %1604 = vmatprep.subr.bf16.mxu0 0
    %1605 = vmatpush2.bf16.msra.mxu0 0
    %1606 = vmatprep.subr.bf16.mxu0 0
    %1607 = vmatpush2.bf16.msra.mxu0 0
    %1608 = vmatprep.subr.bf16.mxu0 0
    %1609 = vmatpush2.bf16.msra.mxu0 0
    %1610 = vmatprep.mubr.bf16.mxu0 0
    %1611 = vmatmul.mubr.bf16.gmra.mxu0 %v1576
    %v1612 = vpop.f32.mrf.mxu0
    %v1613 = vadd.f32 0.0, %v1612
    %v1614 = vpop.f32.mrf.mxu0
    %v1615 = vpop.f32.mrf.mxu0
    %v1616 = vpop.f32.mrf.mxu0
    %1617 = vdwg.mxu0
    %v1618 = vadd.f32 %v1572, %v1613
    %v1619 = vxor.u32 %v1618, 2147483648
    %v1620 = vmul.f32 %v1619, 1.442695
    %v1621 = vpow.pop %v1620
    %v1622 = vadd.f32 %v1621, 1.0
    %v1623 = vrcp.pop %v1622
    %v1624 = vmul.f32 1.0, %v1623
    %v1625 = vmul.f32 %v1624, 2.0
    %v1626 = vsub.f32 %v1625, 1.0
    %v1627 = vmul.f32 %v1624, %v1557
    %1629 = vrot.lane.b32.xlu0 %v1626, 32
    %v1630 = vpop.permute.xlu0 %1629
    %v1632 = vmul.f32 %v1624, %v1630
    %1634 = vrot.lane.b32.xlu0 %v1632, 32
    %v1635 = vpop.permute.xlu0 %1634
    %v1637 = vadd.f32 %v1627, %v1635
    %v1638 = vtanh.pop %v1637
    %1640 = vrot.lane.b32.xlu0 %v1638, 32
    %v1641 = vpop.permute.xlu0 %1640
    %v1643 = vmul.f32 %v1624, %v1641
    %v1644 = vpack.c.bf16 %v1643, %v1643
    %v1646 = vunpack.c.l.b16 %v1644
    %v1647 = vpack.c.b16 %v1646, %v1646
    %1648 = vrot.lane.b32.xlu0 %v1647, 64
    %v1649 = vpop.permute.xlu0 %1648
    %1651 = vst.msk [vmem:[%s861] sm:$0xf] %vm369, %v1649
    %v1652 = vld [vmem:[%s863] sm:$0xff]
    %1653 = vrot.lane.b32.xlu0 %v1644, 64
    %v1654 = vpop.permute.xlu0 %1653
    %v1656 = vsel %vm292, %v1654, 0
    %1658 = vmatprep.subr.bf16.mxu0 0
    %1659 = vmatpush1.bf16.msra.mxu0 0
    %1660 = vmatprep.subr.bf16.mxu0 0
    %1661 = vmatpush1.bf16.msra.mxu0 0
    %1662 = vmatprep.subr.bf16.mxu0 0
    %1663 = vmatpush1.bf16.msra.mxu0 0
    %1664 = vmatprep.subr.bf16.mxu0 0
    %1665 = vmatpush1.bf16.msra.mxu0 0
    %1666 = vmatprep.subr.bf16.mxu0 0
    %1667 = vmatpush1.bf16.msra.mxu0 0
    %1668 = vmatprep.subr.bf16.mxu0 0
    %1669 = vmatpush1.bf16.msra.mxu0 0
    %1670 = vmatprep.subr.bf16.mxu0 0
    %1671 = vmatpush1.bf16.msra.mxu0 %v1095
    %1672 = vmatprep.subr.bf16.mxu0 0
    %1673 = vmatpush1.bf16.msra.mxu0 %v1094
    %1674 = vmatprep.subr.bf16.mxu0 0
    %1675 = vmatpush2.bf16.msra.mxu0 0
    %1676 = vmatprep.subr.bf16.mxu0 0
    %1677 = vmatpush2.bf16.msra.mxu0 0
    %1678 = vmatprep.subr.bf16.mxu0 0
    %1679 = vmatpush2.bf16.msra.mxu0 0
    %1680 = vmatprep.subr.bf16.mxu0 0
    %1681 = vmatpush2.bf16.msra.mxu0 0
    %1682 = vmatprep.subr.bf16.mxu0 0
    %1683 = vmatpush2.bf16.msra.mxu0 0
    %1684 = vmatprep.subr.bf16.mxu0 0
    %1685 = vmatpush2.bf16.msra.mxu0 0
    %1686 = vmatprep.subr.bf16.mxu0 0
    %1687 = vmatpush2.bf16.msra.mxu0 0
    %1688 = vmatprep.subr.bf16.mxu0 0
    %1689 = vmatpush2.bf16.msra.mxu0 0
    %1690 = vmatprep.mubr.bf16.mxu0 0
    %1691 = vmatmul.mubr.bf16.gmra.mxu0 %v1656
    %v1692 = vpop.f32.mrf.mxu0
    %v1693 = vadd.f32 0.0, %v1692
    %v1694 = vpop.f32.mrf.mxu0
    %v1695 = vpop.f32.mrf.mxu0
    %v1696 = vpop.f32.mrf.mxu0
    %1697 = vdwg.mxu0
    %v1698 = vadd.f32 %v1652, %v1693
    %v1699 = vxor.u32 %v1698, 2147483648
    %v1700 = vmul.f32 %v1699, 1.442695
    %v1701 = vpow.pop %v1700
    %v1702 = vadd.f32 %v1701, 1.0
    %v1703 = vrcp.pop %v1702
    %v1704 = vmul.f32 1.0, %v1703
    %v1705 = vmul.f32 %v1704, 2.0
    %v1706 = vsub.f32 %v1705, 1.0
    %v1707 = vmul.f32 %v1704, %v1637
    %1709 = vrot.lane.b32.xlu0 %v1706, 32
    %v1710 = vpop.permute.xlu0 %1709
    %v1712 = vmul.f32 %v1704, %v1710
    %1714 = vrot.lane.b32.xlu0 %v1712, 32
    %v1715 = vpop.permute.xlu0 %1714
    %v1717 = vadd.f32 %v1707, %v1715
    %v1718 = vtanh.pop %v1717
    %1720 = vrot.lane.b32.xlu0 %v1718, 32
    %v1721 = vpop.permute.xlu0 %1720
    %v1723 = vmul.f32 %v1704, %v1721
    %v1724 = vpack.c.bf16 %v1723, %v1723
    %v1726 = vunpack.c.l.b16 %v1724
    %v1727 = vpack.c.b16 %v1726, %v1726
    %1728 = vrot.lane.b32.xlu0 %v1727, 64
    %v1729 = vpop.permute.xlu0 %1728
    %1731 = vst.msk [vmem:[%s943] sm:$0xf] %vm369, %v1729
    %v1732 = vld [vmem:[#allocation13] sm:$0xf]
    %v1733 = vld [vmem:[#allocation13 + $0x4] sm:$0xf]
    %v1734 = vld [vmem:[#allocation13 + $0x8] sm:$0xf]
    %v1735 = vld [vmem:[#allocation13 + $0xc] sm:$0xf]
    %v1736 = vld [vmem:[#allocation16] sm:$0x1]
    %v1737 = vld [vmem:[#allocation3] sm:$0xf]
    %v1738 = vld [vmem:[#allocation3 + $0x4] sm:$0xf]
    %v1739 = vld [vmem:[#allocation3 + $0x8] sm:$0xf]
    %v1740 = vld [vmem:[#allocation3 + $0xc] sm:$0xf]
    %v1741 = vld [vmem:[#allocation3 + $0x10] sm:$0xf]
    %v1742 = vld [vmem:[#allocation3 + $0x14] sm:$0xf]
    %v1743 = vld [vmem:[#allocation3 + $0x18] sm:$0xf]
    %v1744 = vld [vmem:[#allocation3 + $0x1c] sm:$0xf]
    %v1746 = vlaneseq
    %v1747 = vshrl.u32 %v1746, 7
    %v1748 = vsub.s32 0, %v1747
    %v1749 = vrot.slane %v1736, %v1748
    %v1759 = vunpack.c.l.b16 %v1737
    %v1760 = vunpack.c.l.b16 %v1738
    %v1761 = vunpack.c.l.b16 %v1739
    %v1762 = vunpack.c.l.b16 %v1740
    %v1763 = vunpack.c.l.b16 %v1741
    %v1764 = vunpack.c.l.b16 %v1742
    %v1765 = vunpack.c.l.b16 %v1743
    %v1766 = vunpack.c.l.b16 %v1744
    %v1767 = vpack.c.b16 %v1760, %v1759
    %v1768 = vpack.c.b16 %v1762, %v1761
    %v1769 = vpack.c.b16 %v1764, %v1763
    %v1770 = vpack.c.b16 %v1766, %v1765
    %v1775 = vunpack.c.l.b16 %v1732
    %v1776 = vunpack.c.l.b16 %v1733
    %v1777 = vunpack.c.l.b16 %v1734
    %v1778 = vunpack.c.l.b16 %v1735
    %v1779 = vpack.c.b16 %v1776, %v1775
    %v1780 = vpack.c.b16 %v1778, %v1777
    %v1784 = vsel %vm292, %v1767, 0
    %v1787 = vsel %vm292, %v1768, 0
    %v1790 = vsel %vm292, %v1769, 0
    %v1793 = vsel %vm292, %v1770, 0
    %1795 = vmatprep.subr.bf16.mxu0 0
    %1796 = vmatpush1.bf16.msra.mxu0 0
    %1797 = vmatprep.subr.bf16.mxu0 0
    %1798 = vmatpush1.bf16.msra.mxu0 0
    %1799 = vmatprep.subr.bf16.mxu0 0
    %1800 = vmatpush1.bf16.msra.mxu0 0
    %1801 = vmatprep.subr.bf16.mxu0 0
    %1802 = vmatpush1.bf16.msra.mxu0 0
    %1803 = vmatprep.subr.bf16.mxu0 0
    %1804 = vmatpush1.bf16.msra.mxu0 0
    %1805 = vmatprep.subr.bf16.mxu0 0
    %1806 = vmatpush1.bf16.msra.mxu0 0
    %1807 = vmatprep.subr.bf16.mxu0 0
    %1808 = vmatpush1.bf16.msra.mxu0 %v1780
    %1809 = vmatprep.subr.bf16.mxu0 0
    %1810 = vmatpush1.bf16.msra.mxu0 %v1779
    %1811 = vmatprep.subr.bf16.mxu0 0
    %1812 = vmatpush2.bf16.msra.mxu0 0
    %1813 = vmatprep.subr.bf16.mxu0 0
    %1814 = vmatpush2.bf16.msra.mxu0 0
    %1815 = vmatprep.subr.bf16.mxu0 0
    %1816 = vmatpush2.bf16.msra.mxu0 0
    %1817 = vmatprep.subr.bf16.mxu0 0
    %1818 = vmatpush2.bf16.msra.mxu0 0
    %1819 = vmatprep.subr.bf16.mxu0 0
    %1820 = vmatpush2.bf16.msra.mxu0 0
    %1821 = vmatprep.subr.bf16.mxu0 0
    %1822 = vmatpush2.bf16.msra.mxu0 0
    %1823 = vmatprep.subr.bf16.mxu0 0
    %1824 = vmatpush2.bf16.msra.mxu0 0
    %1825 = vmatprep.subr.bf16.mxu0 0
    %1826 = vmatpush2.bf16.msra.mxu0 0
    %1827 = vmatprep.mubr.bf16.mxu0 0
    %1828 = vmatmul.mubr.bf16.gmra.mxu0 %v1784
    %v1829 = vpop.f32.mrf.mxu0
    %v1830 = vadd.f32 %v1749, %v1829
    %v1831 = vpop.f32.mrf.mxu0
    %v1832 = vpop.f32.mrf.mxu0
    %v1833 = vadd.f32 %v1749, %v1832
    %v1834 = vpop.f32.mrf.mxu0
    %1835 = vmatprep.mubr.bf16.mxu0 0
    %1836 = vmatmul.mubr.bf16.gmra.mxu0 %v1787
    %v1837 = vpop.f32.mrf.mxu0
    %v1838 = vadd.f32 %v1749, %v1837
    %v1839 = vpop.f32.mrf.mxu0
    %v1840 = vpop.f32.mrf.mxu0
    %v1841 = vadd.f32 %v1749, %v1840
    %v1842 = vpop.f32.mrf.mxu0
    %1843 = vmatprep.mubr.bf16.mxu0 0
    %1844 = vmatmul.mubr.bf16.gmra.mxu0 %v1790
    %v1845 = vpop.f32.mrf.mxu0
    %v1846 = vadd.f32 %v1749, %v1845
    %v1847 = vpop.f32.mrf.mxu0
    %v1848 = vpop.f32.mrf.mxu0
    %v1849 = vadd.f32 %v1749, %v1848
    %v1850 = vpop.f32.mrf.mxu0
    %1851 = vmatprep.mubr.bf16.mxu0 0
    %1852 = vmatmul.mubr.bf16.gmra.mxu0 %v1793
    %v1853 = vpop.f32.mrf.mxu0
    %v1854 = vadd.f32 %v1749, %v1853
    %v1855 = vpop.f32.mrf.mxu0
    %v1856 = vpop.f32.mrf.mxu0
    %v1857 = vadd.f32 %v1749, %v1856
    %v1858 = vpop.f32.mrf.mxu0
    %1859 = vdwg.mxu0
    %1860 = vst [vmem:[#allocation2] sm:$0xff] %v1830
    %1861 = vst [vmem:[#allocation2 + $0x8] sm:$0xff] %v1833
    %1862 = vst [vmem:[#allocation2 + $0x10] sm:$0xff] %v1838
    %1863 = vst [vmem:[#allocation2 + $0x18] sm:$0xff] %v1841
    %1864 = vst [vmem:[#allocation2 + $0x20] sm:$0xff] %v1846
    %1865 = vst [vmem:[#allocation2 + $0x28] sm:$0xff] %v1849
    %1866 = vst [vmem:[#allocation2 + $0x30] sm:$0xff] %v1854
    %1867 = vst [vmem:[#allocation2 + $0x38] sm:$0xff] %v1857
    %v1868 = vld [vmem:[#allocation15] sm:$0xf]
    %v1869 = vld [vmem:[#allocation15 + $0x4] sm:$0xf]
    %v1870 = vld [vmem:[#allocation15 + $0x8] sm:$0xf]
    %v1871 = vld [vmem:[#allocation15 + $0xc] sm:$0xf]
    %v1872 = vld [vmem:[#allocation2] sm:$0xff]
    %v1877 = vunpack.c.l.b16 %v1868
    %v1878 = vunpack.c.l.b16 %v1869
    %v1879 = vunpack.c.l.b16 %v1870
    %v1880 = vunpack.c.l.b16 %v1871
    %v1881 = vpack.c.b16 %v1878, %v1877
    %v1882 = vpack.c.b16 %v1880, %v1879
    %1885 = vmatprep.subr.bf16.mxu0 0
    %1886 = vmatpush1.bf16.msra.mxu0 0
    %1887 = vmatprep.subr.bf16.mxu0 0
    %1888 = vmatpush1.bf16.msra.mxu0 0
    %1889 = vmatprep.subr.bf16.mxu0 0
    %1890 = vmatpush1.bf16.msra.mxu0 0
    %1891 = vmatprep.subr.bf16.mxu0 0
    %1892 = vmatpush1.bf16.msra.mxu0 0
    %1893 = vmatprep.subr.bf16.mxu0 0
    %1894 = vmatpush1.bf16.msra.mxu0 0
    %1895 = vmatprep.subr.bf16.mxu0 0
    %1896 = vmatpush1.bf16.msra.mxu0 0
    %1897 = vmatprep.subr.bf16.mxu0 0
    %1898 = vmatpush1.bf16.msra.mxu0 %v1882
    %1899 = vmatprep.subr.bf16.mxu0 0
    %1900 = vmatpush1.bf16.msra.mxu0 %v1881
    %1901 = vmatprep.subr.bf16.mxu0 0
    %1902 = vmatpush2.bf16.msra.mxu0 0
    %1903 = vmatprep.subr.bf16.mxu0 0
    %1904 = vmatpush2.bf16.msra.mxu0 0
    %1905 = vmatprep.subr.bf16.mxu0 0
    %1906 = vmatpush2.bf16.msra.mxu0 0
    %1907 = vmatprep.subr.bf16.mxu0 0
    %1908 = vmatpush2.bf16.msra.mxu0 0
    %1909 = vmatprep.subr.bf16.mxu0 0
    %1910 = vmatpush2.bf16.msra.mxu0 0
    %1911 = vmatprep.subr.bf16.mxu0 0
    %1912 = vmatpush2.bf16.msra.mxu0 0
    %1913 = vmatprep.subr.bf16.mxu0 0
    %1914 = vmatpush2.bf16.msra.mxu0 0
    %1915 = vmatprep.subr.bf16.mxu0 0
    %1916 = vmatpush2.bf16.msra.mxu0 0
    %1917 = vmatprep.mubr.bf16.mxu0 0
    %1918 = vmatmul.mubr.bf16.gmra.mxu0 %v294
    %v1919 = vpop.f32.mrf.mxu0
    %v1920 = vadd.f32 0.0, %v1919
    %v1921 = vpop.f32.mrf.mxu0
    %v1922 = vpop.f32.mrf.mxu0
    %v1923 = vpop.f32.mrf.mxu0
    %1924 = vdwg.mxu0
    %v1925 = vadd.f32 %v1872, %v1920
    %v1926 = vxor.u32 %v1925, 2147483648
    %v1927 = vmul.f32 %v1926, 1.442695
    %v1928 = vpow.pop %v1927
    %v1929 = vadd.f32 %v1928, 1.0
    %v1930 = vrcp.pop %v1929
    %v1931 = vmul.f32 1.0, %v1930
    %v1932 = vmul.f32 %v1931, 2.0
    %v1933 = vsub.f32 %v1932, 1.0
    %v1934 = vmul.f32 %v1931, 0.0
    %1936 = vrot.lane.b32.xlu0 %v1933, 32
    %v1937 = vpop.permute.xlu0 %1936
    %v1939 = vmul.f32 %v1931, %v1937
    %1941 = vrot.lane.b32.xlu0 %v1939, 32
    %v1942 = vpop.permute.xlu0 %1941
    %v1944 = vadd.f32 %v1934, %v1942
    %v1945 = vtanh.pop %v1944
    %1947 = vrot.lane.b32.xlu0 %v1945, 32
    %v1948 = vpop.permute.xlu0 %1947
    %v1950 = vmul.f32 %v1931, %v1948
    %v1951 = vld [vmem:[%s371] sm:$0xff]
    %v1952 = vpack.c.bf16 %v1950, %v1950
    %1954 = vrot.lane.b32.xlu0 %v1952, 64
    %v1955 = vpop.permute.xlu0 %1954
    %v1957 = vsel %vm292, %v1955, 0
    %1959 = vmatprep.subr.bf16.mxu0 0
    %1960 = vmatpush1.bf16.msra.mxu0 0
    %1961 = vmatprep.subr.bf16.mxu0 0
    %1962 = vmatpush1.bf16.msra.mxu0 0
    %1963 = vmatprep.subr.bf16.mxu0 0
    %1964 = vmatpush1.bf16.msra.mxu0 0
    %1965 = vmatprep.subr.bf16.mxu0 0
    %1966 = vmatpush1.bf16.msra.mxu0 0
    %1967 = vmatprep.subr.bf16.mxu0 0
    %1968 = vmatpush1.bf16.msra.mxu0 0
    %1969 = vmatprep.subr.bf16.mxu0 0
    %1970 = vmatpush1.bf16.msra.mxu0 0
    %1971 = vmatprep.subr.bf16.mxu0 0
    %1972 = vmatpush1.bf16.msra.mxu0 %v1882
    %1973 = vmatprep.subr.bf16.mxu0 0
    %1974 = vmatpush1.bf16.msra.mxu0 %v1881
    %1975 = vmatprep.subr.bf16.mxu0 0
    %1976 = vmatpush2.bf16.msra.mxu0 0
    %1977 = vmatprep.subr.bf16.mxu0 0
    %1978 = vmatpush2.bf16.msra.mxu0 0
    %1979 = vmatprep.subr.bf16.mxu0 0
    %1980 = vmatpush2.bf16.msra.mxu0 0
    %1981 = vmatprep.subr.bf16.mxu0 0
    %1982 = vmatpush2.bf16.msra.mxu0 0
    %1983 = vmatprep.subr.bf16.mxu0 0
    %1984 = vmatpush2.bf16.msra.mxu0 0
    %1985 = vmatprep.subr.bf16.mxu0 0
    %1986 = vmatpush2.bf16.msra.mxu0 0
    %1987 = vmatprep.subr.bf16.mxu0 0
    %1988 = vmatpush2.bf16.msra.mxu0 0
    %1989 = vmatprep.subr.bf16.mxu0 0
    %1990 = vmatpush2.bf16.msra.mxu0 0
    %1991 = vmatprep.mubr.bf16.mxu0 0
    %1992 = vmatmul.mubr.bf16.gmra.mxu0 %v1957
    %v1993 = vpop.f32.mrf.mxu0
    %v1994 = vadd.f32 0.0, %v1993
    %v1995 = vpop.f32.mrf.mxu0
    %v1996 = vpop.f32.mrf.mxu0
    %v1997 = vpop.f32.mrf.mxu0
    %1998 = vdwg.mxu0
    %v1999 = vadd.f32 %v1951, %v1994
    %v2000 = vxor.u32 %v1999, 2147483648
    %v2001 = vmul.f32 %v2000, 1.442695
    %v2002 = vpow.pop %v2001
    %v2003 = vadd.f32 %v2002, 1.0
    %v2004 = vrcp.pop %v2003
    %v2005 = vmul.f32 1.0, %v2004
    %v2006 = vmul.f32 %v2005, 2.0
    %v2007 = vsub.f32 %v2006, 1.0
    %v2008 = vmul.f32 %v2005, %v1944
    %2010 = vrot.lane.b32.xlu0 %v2007, 32
    %v2011 = vpop.permute.xlu0 %2010
    %v2013 = vmul.f32 %v2005, %v2011
    %2015 = vrot.lane.b32.xlu0 %v2013, 32
    %v2016 = vpop.permute.xlu0 %2015
    %v2018 = vadd.f32 %v2008, %v2016
    %v2019 = vtanh.pop %v2018
    %2021 = vrot.lane.b32.xlu0 %v2019, 32
    %v2022 = vpop.permute.xlu0 %2021
    %v2024 = vmul.f32 %v2005, %v2022
    %v2025 = vld [vmem:[%s453] sm:$0xff]
    %v2026 = vpack.c.bf16 %v2024, %v2024
    %2028 = vrot.lane.b32.xlu0 %v2026, 64
    %v2029 = vpop.permute.xlu0 %2028
    %v2031 = vsel %vm292, %v2029, 0
    %2033 = vmatprep.subr.bf16.mxu0 0
    %2034 = vmatpush1.bf16.msra.mxu0 0
    %2035 = vmatprep.subr.bf16.mxu0 0
    %2036 = vmatpush1.bf16.msra.mxu0 0
    %2037 = vmatprep.subr.bf16.mxu0 0
    %2038 = vmatpush1.bf16.msra.mxu0 0
    %2039 = vmatprep.subr.bf16.mxu0 0
    %2040 = vmatpush1.bf16.msra.mxu0 0
    %2041 = vmatprep.subr.bf16.mxu0 0
    %2042 = vmatpush1.bf16.msra.mxu0 0
    %2043 = vmatprep.subr.bf16.mxu0 0
    %2044 = vmatpush1.bf16.msra.mxu0 0
    %2045 = vmatprep.subr.bf16.mxu0 0
    %2046 = vmatpush1.bf16.msra.mxu0 %v1882
    %2047 = vmatprep.subr.bf16.mxu0 0
    %2048 = vmatpush1.bf16.msra.mxu0 %v1881
    %2049 = vmatprep.subr.bf16.mxu0 0
    %2050 = vmatpush2.bf16.msra.mxu0 0
    %2051 = vmatprep.subr.bf16.mxu0 0
    %2052 = vmatpush2.bf16.msra.mxu0 0
    %2053 = vmatprep.subr.bf16.mxu0 0
    %2054 = vmatpush2.bf16.msra.mxu0 0
    %2055 = vmatprep.subr.bf16.mxu0 0
    %2056 = vmatpush2.bf16.msra.mxu0 0
    %2057 = vmatprep.subr.bf16.mxu0 0
    %2058 = vmatpush2.bf16.msra.mxu0 0
    %2059 = vmatprep.subr.bf16.mxu0 0
    %2060 = vmatpush2.bf16.msra.mxu0 0
    %2061 = vmatprep.subr.bf16.mxu0 0
    %2062 = vmatpush2.bf16.msra.mxu0 0
    %2063 = vmatprep.subr.bf16.mxu0 0
    %2064 = vmatpush2.bf16.msra.mxu0 0
    %2065 = vmatprep.mubr.bf16.mxu0 0
    %2066 = vmatmul.mubr.bf16.gmra.mxu0 %v2031
    %v2067 = vpop.f32.mrf.mxu0
    %v2068 = vadd.f32 0.0, %v2067
    %v2069 = vpop.f32.mrf.mxu0
    %v2070 = vpop.f32.mrf.mxu0
    %v2071 = vpop.f32.mrf.mxu0
    %2072 = vdwg.mxu0
    %v2073 = vadd.f32 %v2025, %v2068
    %v2074 = vxor.u32 %v2073, 2147483648
    %v2075 = vmul.f32 %v2074, 1.442695
    %v2076 = vpow.pop %v2075
    %v2077 = vadd.f32 %v2076, 1.0
    %v2078 = vrcp.pop %v2077
    %v2079 = vmul.f32 1.0, %v2078
    %v2080 = vmul.f32 %v2079, 2.0
    %v2081 = vsub.f32 %v2080, 1.0
    %v2082 = vmul.f32 %v2079, %v2018
    %2084 = vrot.lane.b32.xlu0 %v2081, 32
    %v2085 = vpop.permute.xlu0 %2084
    %v2087 = vmul.f32 %v2079, %v2085
    %2089 = vrot.lane.b32.xlu0 %v2087, 32
    %v2090 = vpop.permute.xlu0 %2089
    %v2092 = vadd.f32 %v2082, %v2090
    %v2093 = vtanh.pop %v2092
    %2095 = vrot.lane.b32.xlu0 %v2093, 32
    %v2096 = vpop.permute.xlu0 %2095
    %v2098 = vmul.f32 %v2079, %v2096
    %v2099 = vld [vmem:[%s535] sm:$0xff]
    %v2100 = vpack.c.bf16 %v2098, %v2098
    %2102 = vrot.lane.b32.xlu0 %v2100, 64
    %v2103 = vpop.permute.xlu0 %2102
    %v2105 = vsel %vm292, %v2103, 0
    %2107 = vmatprep.subr.bf16.mxu0 0
    %2108 = vmatpush1.bf16.msra.mxu0 0
    %2109 = vmatprep.subr.bf16.mxu0 0
    %2110 = vmatpush1.bf16.msra.mxu0 0
    %2111 = vmatprep.subr.bf16.mxu0 0
    %2112 = vmatpush1.bf16.msra.mxu0 0
    %2113 = vmatprep.subr.bf16.mxu0 0
    %2114 = vmatpush1.bf16.msra.mxu0 0
    %2115 = vmatprep.subr.bf16.mxu0 0
    %2116 = vmatpush1.bf16.msra.mxu0 0
    %2117 = vmatprep.subr.bf16.mxu0 0
    %2118 = vmatpush1.bf16.msra.mxu0 0
    %2119 = vmatprep.subr.bf16.mxu0 0
    %2120 = vmatpush1.bf16.msra.mxu0 %v1882
    %2121 = vmatprep.subr.bf16.mxu0 0
    %2122 = vmatpush1.bf16.msra.mxu0 %v1881
    %2123 = vmatprep.subr.bf16.mxu0 0
    %2124 = vmatpush2.bf16.msra.mxu0 0
    %2125 = vmatprep.subr.bf16.mxu0 0
    %2126 = vmatpush2.bf16.msra.mxu0 0
    %2127 = vmatprep.subr.bf16.mxu0 0
    %2128 = vmatpush2.bf16.msra.mxu0 0
    %2129 = vmatprep.subr.bf16.mxu0 0
    %2130 = vmatpush2.bf16.msra.mxu0 0
    %2131 = vmatprep.subr.bf16.mxu0 0
    %2132 = vmatpush2.bf16.msra.mxu0 0
    %2133 = vmatprep.subr.bf16.mxu0 0
    %2134 = vmatpush2.bf16.msra.mxu0 0
    %2135 = vmatprep.subr.bf16.mxu0 0
    %2136 = vmatpush2.bf16.msra.mxu0 0
    %2137 = vmatprep.subr.bf16.mxu0 0
    %2138 = vmatpush2.bf16.msra.mxu0 0
    %2139 = vmatprep.mubr.bf16.mxu0 0
    %2140 = vmatmul.mubr.bf16.gmra.mxu0 %v2105
    %v2141 = vpop.f32.mrf.mxu0
    %v2142 = vadd.f32 0.0, %v2141
    %v2143 = vpop.f32.mrf.mxu0
    %v2144 = vpop.f32.mrf.mxu0
    %v2145 = vpop.f32.mrf.mxu0
    %2146 = vdwg.mxu0
    %v2147 = vadd.f32 %v2099, %v2142
    %v2148 = vxor.u32 %v2147, 2147483648
    %v2149 = vmul.f32 %v2148, 1.442695
    %v2150 = vpow.pop %v2149
    %v2151 = vadd.f32 %v2150, 1.0
    %v2152 = vrcp.pop %v2151
    %v2153 = vmul.f32 1.0, %v2152
    %v2154 = vmul.f32 %v2153, 2.0
    %v2155 = vsub.f32 %v2154, 1.0
    %v2156 = vmul.f32 %v2153, %v2092
    %2158 = vrot.lane.b32.xlu0 %v2155, 32
    %v2159 = vpop.permute.xlu0 %2158
    %v2161 = vmul.f32 %v2153, %v2159
    %2163 = vrot.lane.b32.xlu0 %v2161, 32
    %v2164 = vpop.permute.xlu0 %2163
    %v2166 = vadd.f32 %v2156, %v2164
    %v2167 = vtanh.pop %v2166
    %2169 = vrot.lane.b32.xlu0 %v2167, 32
    %v2170 = vpop.permute.xlu0 %2169
    %v2172 = vmul.f32 %v2153, %v2170
    %v2173 = vld [vmem:[%s617] sm:$0xff]
    %v2174 = vpack.c.bf16 %v2172, %v2172
    %2176 = vrot.lane.b32.xlu0 %v2174, 64
    %v2177 = vpop.permute.xlu0 %2176
    %v2179 = vsel %vm292, %v2177, 0
    %2181 = vmatprep.subr.bf16.mxu0 0
    %2182 = vmatpush1.bf16.msra.mxu0 0
    %2183 = vmatprep.subr.bf16.mxu0 0
    %2184 = vmatpush1.bf16.msra.mxu0 0
    %2185 = vmatprep.subr.bf16.mxu0 0
    %2186 = vmatpush1.bf16.msra.mxu0 0
    %2187 = vmatprep.subr.bf16.mxu0 0
    %2188 = vmatpush1.bf16.msra.mxu0 0
    %2189 = vmatprep.subr.bf16.mxu0 0
    %2190 = vmatpush1.bf16.msra.mxu0 0
    %2191 = vmatprep.subr.bf16.mxu0 0
    %2192 = vmatpush1.bf16.msra.mxu0 0
    %2193 = vmatprep.subr.bf16.mxu0 0
    %2194 = vmatpush1.bf16.msra.mxu0 %v1882
    %2195 = vmatprep.subr.bf16.mxu0 0
    %2196 = vmatpush1.bf16.msra.mxu0 %v1881
    %2197 = vmatprep.subr.bf16.mxu0 0
    %2198 = vmatpush2.bf16.msra.mxu0 0
    %2199 = vmatprep.subr.bf16.mxu0 0
    %2200 = vmatpush2.bf16.msra.mxu0 0
    %2201 = vmatprep.subr.bf16.mxu0 0
    %2202 = vmatpush2.bf16.msra.mxu0 0
    %2203 = vmatprep.subr.bf16.mxu0 0
    %2204 = vmatpush2.bf16.msra.mxu0 0
    %2205 = vmatprep.subr.bf16.mxu0 0
    %2206 = vmatpush2.bf16.msra.mxu0 0
    %2207 = vmatprep.subr.bf16.mxu0 0
    %2208 = vmatpush2.bf16.msra.mxu0 0
    %2209 = vmatprep.subr.bf16.mxu0 0
    %2210 = vmatpush2.bf16.msra.mxu0 0
    %2211 = vmatprep.subr.bf16.mxu0 0
    %2212 = vmatpush2.bf16.msra.mxu0 0
    %2213 = vmatprep.mubr.bf16.mxu0 0
    %2214 = vmatmul.mubr.bf16.gmra.mxu0 %v2179
    %v2215 = vpop.f32.mrf.mxu0
    %v2216 = vadd.f32 0.0, %v2215
    %v2217 = vpop.f32.mrf.mxu0
    %v2218 = vpop.f32.mrf.mxu0
    %v2219 = vpop.f32.mrf.mxu0
    %2220 = vdwg.mxu0
    %v2221 = vadd.f32 %v2173, %v2216
    %v2222 = vxor.u32 %v2221, 2147483648
    %v2223 = vmul.f32 %v2222, 1.442695
    %v2224 = vpow.pop %v2223
    %v2225 = vadd.f32 %v2224, 1.0
    %v2226 = vrcp.pop %v2225
    %v2227 = vmul.f32 1.0, %v2226
    %v2228 = vmul.f32 %v2227, 2.0
    %v2229 = vsub.f32 %v2228, 1.0
    %v2230 = vmul.f32 %v2227, %v2166
    %2232 = vrot.lane.b32.xlu0 %v2229, 32
    %v2233 = vpop.permute.xlu0 %2232
    %v2235 = vmul.f32 %v2227, %v2233
    %2237 = vrot.lane.b32.xlu0 %v2235, 32
    %v2238 = vpop.permute.xlu0 %2237
    %v2240 = vadd.f32 %v2230, %v2238
    %v2241 = vtanh.pop %v2240
    %2243 = vrot.lane.b32.xlu0 %v2241, 32
    %v2244 = vpop.permute.xlu0 %2243
    %v2246 = vmul.f32 %v2227, %v2244
    %v2247 = vld [vmem:[%s699] sm:$0xff]
    %v2248 = vpack.c.bf16 %v2246, %v2246
    %2250 = vrot.lane.b32.xlu0 %v2248, 64
    %v2251 = vpop.permute.xlu0 %2250
    %v2253 = vsel %vm292, %v2251, 0
    %2255 = vmatprep.subr.bf16.mxu0 0
    %2256 = vmatpush1.bf16.msra.mxu0 0
    %2257 = vmatprep.subr.bf16.mxu0 0
    %2258 = vmatpush1.bf16.msra.mxu0 0
    %2259 = vmatprep.subr.bf16.mxu0 0
    %2260 = vmatpush1.bf16.msra.mxu0 0
    %2261 = vmatprep.subr.bf16.mxu0 0
    %2262 = vmatpush1.bf16.msra.mxu0 0
    %2263 = vmatprep.subr.bf16.mxu0 0
    %2264 = vmatpush1.bf16.msra.mxu0 0
    %2265 = vmatprep.subr.bf16.mxu0 0
    %2266 = vmatpush1.bf16.msra.mxu0 0
    %2267 = vmatprep.subr.bf16.mxu0 0
    %2268 = vmatpush1.bf16.msra.mxu0 %v1882
    %2269 = vmatprep.subr.bf16.mxu0 0
    %2270 = vmatpush1.bf16.msra.mxu0 %v1881
    %2271 = vmatprep.subr.bf16.mxu0 0
    %2272 = vmatpush2.bf16.msra.mxu0 0
    %2273 = vmatprep.subr.bf16.mxu0 0
    %2274 = vmatpush2.bf16.msra.mxu0 0
    %2275 = vmatprep.subr.bf16.mxu0 0
    %2276 = vmatpush2.bf16.msra.mxu0 0
    %2277 = vmatprep.subr.bf16.mxu0 0
    %2278 = vmatpush2.bf16.msra.mxu0 0
    %2279 = vmatprep.subr.bf16.mxu0 0
    %2280 = vmatpush2.bf16.msra.mxu0 0
    %2281 = vmatprep.subr.bf16.mxu0 0
    %2282 = vmatpush2.bf16.msra.mxu0 0
    %2283 = vmatprep.subr.bf16.mxu0 0
    %2284 = vmatpush2.bf16.msra.mxu0 0
    %2285 = vmatprep.subr.bf16.mxu0 0
    %2286 = vmatpush2.bf16.msra.mxu0 0
    %2287 = vmatprep.mubr.bf16.mxu0 0
    %2288 = vmatmul.mubr.bf16.gmra.mxu0 %v2253
    %v2289 = vpop.f32.mrf.mxu0
    %v2290 = vadd.f32 0.0, %v2289
    %v2291 = vpop.f32.mrf.mxu0
    %v2292 = vpop.f32.mrf.mxu0
    %v2293 = vpop.f32.mrf.mxu0
    %2294 = vdwg.mxu0
    %v2295 = vadd.f32 %v2247, %v2290
    %v2296 = vxor.u32 %v2295, 2147483648
    %v2297 = vmul.f32 %v2296, 1.442695
    %v2298 = vpow.pop %v2297
    %v2299 = vadd.f32 %v2298, 1.0
    %v2300 = vrcp.pop %v2299
    %v2301 = vmul.f32 1.0, %v2300
    %v2302 = vmul.f32 %v2301, 2.0
    %v2303 = vsub.f32 %v2302, 1.0
    %v2304 = vmul.f32 %v2301, %v2240
    %2306 = vrot.lane.b32.xlu0 %v2303, 32
    %v2307 = vpop.permute.xlu0 %2306
    %v2309 = vmul.f32 %v2301, %v2307
    %2311 = vrot.lane.b32.xlu0 %v2309, 32
    %v2312 = vpop.permute.xlu0 %2311
    %v2314 = vadd.f32 %v2304, %v2312
    %v2315 = vtanh.pop %v2314
    %2317 = vrot.lane.b32.xlu0 %v2315, 32
    %v2318 = vpop.permute.xlu0 %2317
    %v2320 = vmul.f32 %v2301, %v2318
    %v2321 = vld [vmem:[%s781] sm:$0xff]
    %v2322 = vpack.c.bf16 %v2320, %v2320
    %2324 = vrot.lane.b32.xlu0 %v2322, 64
    %v2325 = vpop.permute.xlu0 %2324
    %v2327 = vsel %vm292, %v2325, 0
    %2329 = vmatprep.subr.bf16.mxu0 0
    %2330 = vmatpush1.bf16.msra.mxu0 0
    %2331 = vmatprep.subr.bf16.mxu0 0
    %2332 = vmatpush1.bf16.msra.mxu0 0
    %2333 = vmatprep.subr.bf16.mxu0 0
    %2334 = vmatpush1.bf16.msra.mxu0 0
    %2335 = vmatprep.subr.bf16.mxu0 0
    %2336 = vmatpush1.bf16.msra.mxu0 0
    %2337 = vmatprep.subr.bf16.mxu0 0
    %2338 = vmatpush1.bf16.msra.mxu0 0
    %2339 = vmatprep.subr.bf16.mxu0 0
    %2340 = vmatpush1.bf16.msra.mxu0 0
    %2341 = vmatprep.subr.bf16.mxu0 0
    %2342 = vmatpush1.bf16.msra.mxu0 %v1882
    %2343 = vmatprep.subr.bf16.mxu0 0
    %2344 = vmatpush1.bf16.msra.mxu0 %v1881
    %2345 = vmatprep.subr.bf16.mxu0 0
    %2346 = vmatpush2.bf16.msra.mxu0 0
    %2347 = vmatprep.subr.bf16.mxu0 0
    %2348 = vmatpush2.bf16.msra.mxu0 0
    %2349 = vmatprep.subr.bf16.mxu0 0
    %2350 = vmatpush2.bf16.msra.mxu0 0
    %2351 = vmatprep.subr.bf16.mxu0 0
    %2352 = vmatpush2.bf16.msra.mxu0 0
    %2353 = vmatprep.subr.bf16.mxu0 0
    %2354 = vmatpush2.bf16.msra.mxu0 0
    %2355 = vmatprep.subr.bf16.mxu0 0
    %2356 = vmatpush2.bf16.msra.mxu0 0
    %2357 = vmatprep.subr.bf16.mxu0 0
    %2358 = vmatpush2.bf16.msra.mxu0 0
    %2359 = vmatprep.subr.bf16.mxu0 0
    %2360 = vmatpush2.bf16.msra.mxu0 0
    %2361 = vmatprep.mubr.bf16.mxu0 0
    %2362 = vmatmul.mubr.bf16.gmra.mxu0 %v2327
    %v2363 = vpop.f32.mrf.mxu0
    %v2364 = vadd.f32 0.0, %v2363
    %v2365 = vpop.f32.mrf.mxu0
    %v2366 = vpop.f32.mrf.mxu0
    %v2367 = vpop.f32.mrf.mxu0
    %2368 = vdwg.mxu0
    %v2369 = vadd.f32 %v2321, %v2364
    %v2370 = vxor.u32 %v2369, 2147483648
    %v2371 = vmul.f32 %v2370, 1.442695
    %v2372 = vpow.pop %v2371
    %v2373 = vadd.f32 %v2372, 1.0
    %v2374 = vrcp.pop %v2373
    %v2375 = vmul.f32 1.0, %v2374
    %v2376 = vmul.f32 %v2375, 2.0
    %v2377 = vsub.f32 %v2376, 1.0
    %v2378 = vmul.f32 %v2375, %v2314
    %2380 = vrot.lane.b32.xlu0 %v2377, 32
    %v2381 = vpop.permute.xlu0 %2380
    %v2383 = vmul.f32 %v2375, %v2381
    %2385 = vrot.lane.b32.xlu0 %v2383, 32
    %v2386 = vpop.permute.xlu0 %2385
    %v2388 = vadd.f32 %v2378, %v2386
    %v2389 = vtanh.pop %v2388
    %2391 = vrot.lane.b32.xlu0 %v2389, 32
    %v2392 = vpop.permute.xlu0 %2391
    %v2394 = vmul.f32 %v2375, %v2392
    %v2395 = vld [vmem:[%s863] sm:$0xff]
    %v2396 = vpack.c.bf16 %v2394, %v2394
    %2398 = vrot.lane.b32.xlu0 %v2396, 64
    %v2399 = vpop.permute.xlu0 %2398
    %v2401 = vsel %vm292, %v2399, 0
    %2403 = vmatprep.subr.bf16.mxu0 0
    %2404 = vmatpush1.bf16.msra.mxu0 0
    %2405 = vmatprep.subr.bf16.mxu0 0
    %2406 = vmatpush1.bf16.msra.mxu0 0
    %2407 = vmatprep.subr.bf16.mxu0 0
    %2408 = vmatpush1.bf16.msra.mxu0 0
    %2409 = vmatprep.subr.bf16.mxu0 0
    %2410 = vmatpush1.bf16.msra.mxu0 0
    %2411 = vmatprep.subr.bf16.mxu0 0
    %2412 = vmatpush1.bf16.msra.mxu0 0
    %2413 = vmatprep.subr.bf16.mxu0 0
    %2414 = vmatpush1.bf16.msra.mxu0 0
    %2415 = vmatprep.subr.bf16.mxu0 0
    %2416 = vmatpush1.bf16.msra.mxu0 %v1882
    %2417 = vmatprep.subr.bf16.mxu0 0
    %2418 = vmatpush1.bf16.msra.mxu0 %v1881
    %2419 = vmatprep.subr.bf16.mxu0 0
    %2420 = vmatpush2.bf16.msra.mxu0 0
    %2421 = vmatprep.subr.bf16.mxu0 0
    %2422 = vmatpush2.bf16.msra.mxu0 0
    %2423 = vmatprep.subr.bf16.mxu0 0
    %2424 = vmatpush2.bf16.msra.mxu0 0
    %2425 = vmatprep.subr.bf16.mxu0 0
    %2426 = vmatpush2.bf16.msra.mxu0 0
    %2427 = vmatprep.subr.bf16.mxu0 0
    %2428 = vmatpush2.bf16.msra.mxu0 0
    %2429 = vmatprep.subr.bf16.mxu0 0
    %2430 = vmatpush2.bf16.msra.mxu0 0
    %2431 = vmatprep.subr.bf16.mxu0 0
    %2432 = vmatpush2.bf16.msra.mxu0 0
    %2433 = vmatprep.subr.bf16.mxu0 0
    %2434 = vmatpush2.bf16.msra.mxu0 0
    %2435 = vmatprep.mubr.bf16.mxu0 0
    %2436 = vmatmul.mubr.bf16.gmra.mxu0 %v2401
    %v2437 = vpop.f32.mrf.mxu0
    %v2438 = vadd.f32 0.0, %v2437
    %v2439 = vpop.f32.mrf.mxu0
    %v2440 = vpop.f32.mrf.mxu0
    %v2441 = vpop.f32.mrf.mxu0
    %2442 = vdwg.mxu0
    %v2443 = vadd.f32 %v2395, %v2438
    %v2444 = vxor.u32 %v2443, 2147483648
    %v2445 = vmul.f32 %v2444, 1.442695
    %v2446 = vpow.pop %v2445
    %v2447 = vadd.f32 %v2446, 1.0
    %v2448 = vrcp.pop %v2447
    %v2449 = vmul.f32 1.0, %v2448
    %v2450 = vmul.f32 %v2449, 2.0
    %v2451 = vsub.f32 %v2450, 1.0
    %v2452 = vmul.f32 %v2449, %v2388
    %2454 = vrot.lane.b32.xlu0 %v2451, 32
    %v2455 = vpop.permute.xlu0 %2454
    %v2457 = vmul.f32 %v2449, %v2455
    %2459 = vrot.lane.b32.xlu0 %v2457, 32
    %v2460 = vpop.permute.xlu0 %2459
    %v2462 = vadd.f32 %v2452, %v2460
    %v2463 = vtanh.pop %v2462
    %2465 = vrot.lane.b32.xlu0 %v2463, 32
    %v2466 = vpop.permute.xlu0 %2465
    %v2468 = vmul.f32 %v2449, %v2466
    %v2469 = vpack.c.bf16 %v2468, %v2468
    %v2470 = vld [vmem:[%s10] sm:$0xf]
    %v2471 = vld [vmem:[%s10 + $0x4] sm:$0xf]
    %v2472 = vld [vmem:[%s10 + $0x8] sm:$0xf]
    %v2473 = vld [vmem:[%s10 + $0xc] sm:$0xf]
    %v2474 = vld [vmem:[%s11] sm:$0x1]
    %v2476 = vlaneseq
    %v2477 = vshrl.u32 %v2476, 7
    %v2478 = vsub.s32 0, %v2477
    %v2479 = vrot.slane %v2474, %v2478
    %2482 = vrot.lane.b32.xlu0 %v2469, 64
    %v2483 = vpop.permute.xlu0 %2482
    %v2488 = vunpack.c.l.b16 %v2470
    %v2489 = vunpack.c.l.b16 %v2471
    %v2490 = vunpack.c.l.b16 %v2472
    %v2491 = vunpack.c.l.b16 %v2473
    %v2492 = vpack.c.b16 %v2489, %v2488
    %v2493 = vpack.c.b16 %v2491, %v2490
    %v2497 = vsel %vm292, %v2483, 0
    %2499 = vmatprep.subr.bf16.mxu0 0
    %2500 = vmatpush1.bf16.msra.mxu0 0
    %2501 = vmatprep.subr.bf16.mxu0 0
    %2502 = vmatpush1.bf16.msra.mxu0 0
    %2503 = vmatprep.subr.bf16.mxu0 0
    %2504 = vmatpush1.bf16.msra.mxu0 0
    %2505 = vmatprep.subr.bf16.mxu0 0
    %2506 = vmatpush1.bf16.msra.mxu0 0
    %2507 = vmatprep.subr.bf16.mxu0 0
    %2508 = vmatpush1.bf16.msra.mxu0 0
    %2509 = vmatprep.subr.bf16.mxu0 0
    %2510 = vmatpush1.bf16.msra.mxu0 0
    %2511 = vmatprep.subr.bf16.mxu0 0
    %2512 = vmatpush1.bf16.msra.mxu0 %v2493
    %2513 = vmatprep.subr.bf16.mxu0 0
    %2514 = vmatpush1.bf16.msra.mxu0 %v2492
    %2515 = vmatprep.subr.bf16.mxu0 0
    %2516 = vmatpush2.bf16.msra.mxu0 0
    %2517 = vmatprep.subr.bf16.mxu0 0
    %2518 = vmatpush2.bf16.msra.mxu0 0
    %2519 = vmatprep.subr.bf16.mxu0 0
    %2520 = vmatpush2.bf16.msra.mxu0 0
    %2521 = vmatprep.subr.bf16.mxu0 0
    %2522 = vmatpush2.bf16.msra.mxu0 0
    %2523 = vmatprep.subr.bf16.mxu0 0
    %2524 = vmatpush2.bf16.msra.mxu0 0
    %2525 = vmatprep.subr.bf16.mxu0 0
    %2526 = vmatpush2.bf16.msra.mxu0 0
    %2527 = vmatprep.subr.bf16.mxu0 0
    %2528 = vmatpush2.bf16.msra.mxu0 0
    %2529 = vmatprep.subr.bf16.mxu0 0
    %2530 = vmatpush2.bf16.msra.mxu0 0
    %2531 = vmatprep.mubr.bf16.mxu0 0
    %2532 = vmatmul.mubr.bf16.gmra.mxu0 %v2497
    %v2533 = vpop.f32.mrf.mxu0
    %v2534 = vadd.f32 %v2479, %v2533
    %v2535 = vpop.f32.mrf.mxu0
    %v2536 = vpop.f32.mrf.mxu0
    %v2537 = vpop.f32.mrf.mxu0
    %2538 = vdwg.mxu0
    %2539 = vst.msk [vmem:[#allocation18] sm:$0xff] %vm189, %v2534
    // Predicated region
    $region82: #{tpu_custom_call.1} parent=1 // pred_check
      _
    $region83: #{tpu_custom_call.1} parent=1 // pred_check_branch
      %2541 = sbr.rel (0) target = $region85
    $region84: #{tpu_custom_call.1} parent=1 // pred_region
      %s2543 = ssub.s32 128, 128
      %2544 = vsyncadd [#allocation6], %s2543
      %s2546 = sshll.u32 [#allocation18], 4
      %s2547 = int_to_ptr.vmem [resolvable:$true] %s2546
      %2549 = dma.vmem_to_hbm [thread:$0]  %s2547, 128, %s12, [#allocation6]
    $region85: #{tpu_custom_call.1} parent=1 // pred_fallthru
      _
    // Predicated region
    $region86: #{tpu_custom_call.1} parent=1 // pred_check
      _
    $region87: #{tpu_custom_call.1} parent=1 // pred_check_branch
      %2551 = sbr.rel (0) target = $region89
    $region88: #{tpu_custom_call.1} parent=1 // pred_region
      %2552 = dma.done [#allocation6], 128
    $region89: #{tpu_custom_call.1} parent=1 // pred_fallthru
      _
    %2553 = vsyncpa [#allocation5], 1
    %2554 = vsyncpa [#allocation8], 1
    %2555 = vsyncpa [#allocation11], 1
    %2556 = vsyncpa [#allocation14], 1
    %2557 = vsyncpa [#allocation17], 1
    %2558 = vsyncpa [#allocation6], 1

</llo_original>
